<compile_context>
chip_gen: v7x
topology: tpu7x:2x2x1
jax: 0.10.0
libtpu: 0.0.40
codegen_flags: <defaults>
</compile_context>

<pallas_src>
import functools

import jax
import jax.numpy as jnp
import numpy as np
from jax import lax
from jax.experimental import pallas as pl
from jax.experimental.pallas import tpu as pltpu

# Fixed geometry implied by the PyTorch module (MNIST-sized input).
IMG = 28                       # input spatial size
K1, S1, C1 = 5, 2, 8           # conv1: 5x5 / stride 2 / 8 out channels
OH1 = (IMG - K1) // S1 + 1     # 12
K2, S2, C2 = 5, 2, 16          # conv2: 5x5 / stride 2 / 16 out channels
OH2 = (OH1 - K2) // S2 + 1     # 4
FC_HIDDEN = 64
ROW_SPAN = K1 * IMG            # 140 lanes = 5 input rows
ROW_STEP = S1 * IMG            # 56 lanes  = 2 input rows (stride)


def _round_up(n, m):
    return ((n + m - 1) // m) * m


# ------------------------------ fused kernel ------------------------------- #

def _fused_encoder_kernel(x_ref, cond_ref, a1_ref, b1_ref, a2_ref, b2_ref,
                          wf_ref, wc_ref, bfc_ref, wout_ref, bout_ref,
                          out_ref):
    """Whole encoder forward for one batch tile; everything stays in VMEM."""
    f32 = jnp.float32

    # ---- conv1 + ReLU ------------------------------------------------------
    # x_ref: (TB, 784) row-major flattened 28x28.  Output row `oh` needs input
    # rows 2*oh .. 2*oh+4 == contiguous lanes [56*oh, 56*oh+140).  a1 is the
    # conv1 weight expanded over (kh, w) x (ow, c1)  ->  one matmul per row.
    a1 = a1_ref[...]                                            # (140, 96)
    b1 = b1_ref[...]                                            # (1, 96)
    h1_rows = []
    for oh in range(OH1):
        xs = x_ref[:, ROW_STEP * oh: ROW_STEP * oh + ROW_SPAN]  # (TB, 140)
        acc = jnp.dot(xs, a1, preferred_element_type=f32)       # (TB, 96)
        h1_rows.append(jnp.maximum(acc + b1, 0.0))

    # ---- conv2 + ReLU ------------------------------------------------------
    # h1_rows[r] holds conv1 output row r with lanes (ow, c1) interleaved.
    # Output row oh2 contracts input rows 2*oh2 .. 2*oh2+4 against per-kh
    # weights a2_ref[kh]: (96, 64); output lanes are (ow2, c2) interleaved.
    b2 = b2_ref[...]                                            # (1, 64)
    h2_rows = []
    for oh2 in range(OH2):
        acc = None
        for kh in range(K2):
            d = jnp.dot(h1_rows[2 * oh2 + kh], a2_ref[kh],
                        preferred_element_type=f32)             # (TB, 64)
            acc = d if acc is None else acc + d
        h2_rows.append(jnp.maximum(acc + b2, 0.0))

    # ---- fc + ReLU ---------------------------------------------------------
    # The concat([feat, cond]) @ Wfc is a split matmul; wf_ref[oh2] already
    # carries the NCHW-flatten permutation, so no transpose/reshape is needed.
    acc = jnp.dot(cond_ref[...], wc_ref[...], preferred_element_type=f32)
    acc = acc + bfc_ref[...]
    for oh2 in range(OH2):
        acc = acc + jnp.dot(h2_rows[oh2], wf_ref[oh2],
                            preferred_element_type=f32)
    h = jnp.maximum(acc, 0.0)                                   # (TB, 64)

    # ---- mu / logvar heads: one lane-contiguous slab -----------------------
    out_ref[...] = (jnp.dot(h, wout_ref[...], preferred_element_type=f32)
                    + bout_ref[...])                            # (TB, 2*latent)


# --------------------------- parameter building ---------------------------- #

def init_params(key, latent_dim=8, cond_size=4):
    """Returns (pytorch-layout params for the reference, fused kernel params)."""
    ks = jax.random.split(key, 10)

    def nrm(k, shape, scale=0.1):
        return scale * jax.random.normal(k, shape, dtype=jnp.float32)

    w1_pt = nrm(ks[0], (C1, 1, K1, K1))                        # (8,1,5,5)
    b1 = nrm(ks[1], (C1,))
    w2_pt = nrm(ks[2], (C2, C1, K2, K2))                       # (16,8,5,5)
    b2 = nrm(ks[3], (C2,))
    wfc = nrm(ks[4], (C2 * OH2 * OH2 + cond_size, FC_HIDDEN))  # (260,64)
    bfc = nrm(ks[5], (FC_HIDDEN,))
    wmu = nrm(ks[6], (FC_HIDDEN, latent_dim))
    bmu = nrm(ks[7], (latent_dim,))
    wlv = nrm(ks[8], (FC_HIDDEN, latent_dim))
    blv = nrm(ks[9], (latent_dim,))

    pt = dict(w1=w1_pt, b1=b1, w2=w2_pt, b2=b2, wfc=wfc, bfc=bfc,
              wmu=wmu, bmu=bmu, wlv=wlv, blv=blv)

    # ---- derive fused-kernel weights on the host (one-time, numpy) ---------
    w1 = np.asarray(w1_pt)
    w2 = np.asarray(w2_pt)
    wfc_n = np.asarray(wfc)

    # conv1: a1[kh*28 + w, ow*8 + c1] = w1[c1, 0, kh, w - 2*ow]
    a1 = np.zeros((ROW_SPAN, OH1 * C1), np.float32)            # (140, 96)
    for kh in range(K1):
        for ow in range(OH1):
            for kw in range(K1):
                a1[kh * IMG + S1 * ow + kw, ow * C1:(ow + 1) * C1] = w1[:, 0, kh, kw]
    b1t = np.tile(np.asarray(b1), OH1).reshape(1, -1)          # (1, 96)

    # conv2: a2[kh, ow*8 + c1, ow2*16 + c2] = w2[c2, c1, kh, ow - 2*ow2]
    a2 = np.zeros((K2, OH1 * C1, OH2 * C2), np.float32)        # (5, 96, 64)
    for kh in range(K2):
        for ow2 in range(OH2):
            for kw in range(K2):
                ow = S2 * ow2 + kw
                for ci in range(C1):
                    a2[kh, ow * C1 + ci, ow2 * C2:(ow2 + 1) * C2] = w2[:, ci, kh, kw]
    b2t = np.tile(np.asarray(b2), OH2).reshape(1, -1)          # (1, 64)

    # fc: fold PyTorch's NCHW flatten order (c2, oh2, ow2) into per-oh2 blocks
    # whose rows follow the kernel's (ow2, c2) lane order.
    wf_blocks = np.zeros((OH2, OH2 * C2, FC_HIDDEN), np.float32)  # (4, 64, 64)
    for oh2 in range(OH2):
        for ow2 in range(OH2):
            for c in range(C2):
                f = c * (OH2 * OH2) + oh2 * OH2 + ow2
                wf_blocks[oh2, ow2 * C2 + c, :] = wfc_n[f, :]
    wc = wfc_n[C2 * OH2 * OH2:, :]                             # (4, 64) cond rows

    wout = np.concatenate([np.asarray(wmu), np.asarray(wlv)], axis=1)  # (64, 2L)
    bout = np.concatenate([np.asarray(bmu), np.asarray(blv)]).reshape(1, -1)

    kparams = dict(
        a1=jnp.asarray(a1), b1t=jnp.asarray(b1t),
        a2=jnp.asarray(a2), b2t=jnp.asarray(b2t),
        wf=jnp.asarray(wf_blocks), wc=jnp.asarray(wc),
        bfc=jnp.asarray(np.asarray(bfc).reshape(1, -1)),
        wout=jnp.asarray(wout), bout=jnp.asarray(bout))
    return pt, kparams


# ------------------------------- forward ----------------------------------- #

@functools.partial(jax.jit, static_argnames=("block_b",))
def conv_cvae_encoder_forward(kparams, x_nchw, cond, *, block_b=256):
    B = x_nchw.shape[0]
    latent2 = kparams["wout"].shape[1]
    cond_dim = cond.shape[1]

    # Row-major NCHW flatten (B,1,28,28) -> (B,784); free bitcast-style reshape.
    x_flat = x_nchw.reshape(B, IMG * IMG).astype(jnp.float32)
    cond = cond.astype(jnp.float32)

    tb = min(block_b, _round_up(B, 8))
    bp = _round_up(B, tb)
    if bp != B:
        x_flat = jnp.pad(x_flat, ((0, bp - B), (0, 0)))
        cond = jnp.pad(cond, ((0, bp - B), (0, 0)))

    flops_per_img = 2 * (ROW_SPAN * OH1 * C1 * OH1          # conv1 matmuls
                         + OH1 * C1 * OH2 * C2 * (OH2 * K2)  # conv2 matmuls
                         + cond_dim * FC_HIDDEN
                         + OH2 * C2 * FC_HIDDEN * OH2
                         + FC_HIDDEN * latent2)
    weight_bytes = int(sum(np.prod(kparams[k].shape) for k in kparams)) * 4
    cost = pl.CostEstimate(
        flops=int(flops_per_img * bp),
        transcendentals=0,
        bytes_accessed=int(bp * (IMG * IMG + cond_dim + latent2) * 4
                           + weight_bytes))

    out = pl.pallas_call(
        _fused_encoder_kernel,
        out_shape=jax.ShapeDtypeStruct((bp, latent2), jnp.float32),
        grid_spec=pltpu.PrefetchScalarGridSpec(
            num_scalar_prefetch=0,
            grid=(bp // tb,),
            in_specs=[
                pl.BlockSpec((tb, IMG * IMG), lambda i: (i, 0)),         # x
                pl.BlockSpec((tb, cond_dim), lambda i: (i, 0)),          # cond
                pl.BlockSpec(kparams["a1"].shape, lambda i: (0, 0)),     # a1
                pl.BlockSpec(kparams["b1t"].shape, lambda i: (0, 0)),    # b1
                pl.BlockSpec(kparams["a2"].shape, lambda i: (0, 0, 0)),  # a2
                pl.BlockSpec(kparams["b2t"].shape, lambda i: (0, 0)),    # b2
                pl.BlockSpec(kparams["wf"].shape, lambda i: (0, 0, 0)),  # wf blocks
                pl.BlockSpec(kparams["wc"].shape, lambda i: (0, 0)),     # wc
                pl.BlockSpec(kparams["bfc"].shape, lambda i: (0, 0)),    # bfc
                pl.BlockSpec(kparams["wout"].shape, lambda i: (0, 0)),   # wout
                pl.BlockSpec(kparams["bout"].shape, lambda i: (0, 0)),   # bout
            ],
            out_specs=pl.BlockSpec((tb, latent2), lambda i: (i, 0)),
        ),
        compiler_params=pltpu.CompilerParams(
            dimension_semantics=("parallel",),
            vmem_limit_bytes=32 * 1024 * 1024),
        cost_estimate=cost,
    )(x_flat, cond, kparams["a1"], kparams["b1t"], kparams["a2"],
      kparams["b2t"], kparams["wf"], kparams["wc"], kparams["bfc"],
      kparams["wout"], kparams["bout"])

    out = out[:B]
    latent = latent2 // 2
    return out[:, :latent], out[:, latent:]


# ------------------------------ JAX reference ------------------------------ #

def reference_forward(pt, x_nchw, cond):
    """Pure-JAX mirror of the PyTorch module (ground truth)."""
    h = lax.conv_general_dilated(x_nchw, pt["w1"], (2, 2), "VALID",
                                 dimension_numbers=("NCHW", "OIHW", "NCHW"))
    h = jnp.maximum(h + pt["b1"].reshape(1, -1, 1, 1), 0.0)
    h = lax.conv_general_dilated(h, pt["w2"], (2, 2), "VALID",
                                 dimension_numbers=("NCHW", "OIHW", "NCHW"))
    h = jnp.maximum(h + pt["b2"].reshape(1, -1, 1, 1), 0.0)
    feat = h.reshape(h.shape[0], -1)                      # NCHW flatten
    x = jnp.concatenate([feat, cond], axis=-1)
    x = jnp.maximum(x @ pt["wfc"] + pt["bfc"], 0.0)
    return x @ pt["wmu"] + pt["bmu"], x @ pt["wlv"] + pt["blv"]


# ---------------------------------- main ------------------------------------ #

if __name__ == "__main__":
    B, LATENT, COND = 2, 8, 4
    key = jax.random.PRNGKey(0)
    kx, kc, kp = jax.random.split(key, 3)

    x = jax.random.normal(kx, (B, 1, IMG, IMG), dtype=jnp.float32)   # NCHW input
    cond = jax.random.normal(kc, (B, COND), dtype=jnp.float32)
    pt_params, kparams = init_params(kp, latent_dim=LATENT, cond_size=COND)

    mu, logvar = conv_cvae_encoder_forward(kparams, x, cond)
    jax.block_until_ready((mu, logvar))

    mu_ref, lv_ref = reference_forward(pt_params, x, cond)
    np.testing.assert_allclose(np.asarray(mu), np.asarray(mu_ref),
                               rtol=1e-3, atol=1e-3)
    np.testing.assert_allclose(np.asarray(logvar), np.asarray(lv_ref),
                               rtol=1e-3, atol=1e-3)
    assert mu.shape == (B, LATENT) and logvar.shape == (B, LATENT)

    print("KERNEL_OK")
</pallas_src>

<mosaic_0001>
module attributes {stable_mosaic.version = 11 : i64} {
  func.func @_fused_encoder_kernel(%arg0: i32, %arg1: memref<8x784xf32, #tpu.memory_space<vmem>>, %arg2: memref<8x4xf32, #tpu.memory_space<vmem>>, %arg3: memref<140x96xf32, #tpu.memory_space<vmem>>, %arg4: memref<1x96xf32, #tpu.memory_space<vmem>>, %arg5: memref<5x96x64xf32, #tpu.memory_space<vmem>>, %arg6: memref<1x64xf32, #tpu.memory_space<vmem>>, %arg7: memref<4x64x64xf32, #tpu.memory_space<vmem>>, %arg8: memref<4x64xf32, #tpu.memory_space<vmem>>, %arg9: memref<1x64xf32, #tpu.memory_space<vmem>>, %arg10: memref<64x16xf32, #tpu.memory_space<vmem>>, %arg11: memref<1x16xf32, #tpu.memory_space<vmem>>, %arg12: memref<8x16xf32, #tpu.memory_space<vmem>>) attributes {dimension_semantics = [#tpu.dimension_semantics<parallel>], iteration_bounds = array<i64: 1>, scalar_prefetch = 0 : i64, scratch_operands = 0 : i64, tpu.core_type = #tpu.core_type<tc>, window_params = [{transform_indices = @transform_0, window_bounds = array<i64: 8, 784>}, {transform_indices = @transform_1, window_bounds = array<i64: 8, 4>}, {pipeline_mode = #tpu.pipeline_mode<synchronous>, transform_indices = @transform_2, window_bounds = array<i64: 140, 96>}, {pipeline_mode = #tpu.pipeline_mode<synchronous>, transform_indices = @transform_3, window_bounds = array<i64: 1, 96>}, {pipeline_mode = #tpu.pipeline_mode<synchronous>, transform_indices = @transform_4, window_bounds = array<i64: 5, 96, 64>}, {pipeline_mode = #tpu.pipeline_mode<synchronous>, transform_indices = @transform_5, window_bounds = array<i64: 1, 64>}, {pipeline_mode = #tpu.pipeline_mode<synchronous>, transform_indices = @transform_6, window_bounds = array<i64: 4, 64, 64>}, {pipeline_mode = #tpu.pipeline_mode<synchronous>, transform_indices = @transform_7, window_bounds = array<i64: 4, 64>}, {pipeline_mode = #tpu.pipeline_mode<synchronous>, transform_indices = @transform_8, window_bounds = array<i64: 1, 64>}, {pipeline_mode = #tpu.pipeline_mode<synchronous>, transform_indices = @transform_9, window_bounds = array<i64: 64, 16>}, {pipeline_mode = #tpu.pipeline_mode<synchronous>, transform_indices = @transform_10, window_bounds = array<i64: 1, 16>}, {transform_indices = @transform_11, window_bounds = array<i64: 8, 16>}]} {
    %c0 = arith.constant 0 : index
    %c0_0 = arith.constant 0 : index
    %0 = vector.load %arg3[%c0, %c0_0] : memref<140x96xf32, #tpu.memory_space<vmem>>, vector<140x96xf32>
    %c0_1 = arith.constant 0 : index
    %c0_2 = arith.constant 0 : index
    %1 = vector.load %arg4[%c0_1, %c0_2] : memref<1x96xf32, #tpu.memory_space<vmem>>, vector<1x96xf32>
    %c0_3 = arith.constant 0 : index
    %c0_4 = arith.constant 0 : index
    %2 = vector.load %arg1[%c0_3, %c0_4] : memref<8x784xf32, #tpu.memory_space<vmem>>, vector<8x140xf32>
    %cst = arith.constant dense<0.000000e+00> : vector<8x96xf32>
    %3 = tpu.matmul %2, %0, %cst {dimension_numbers = #tpu.dot_dimension_numbers<[1], [0], [0], [1], [0, 0, 1, 1], [], []>} : vector<8x140xf32>, vector<140x96xf32>, vector<8x96xf32> -> vector<8x96xf32>
    %4 = vector.broadcast %1 : vector<1x96xf32> to vector<8x96xf32>
    %5 = arith.addf %3, %4 : vector<8x96xf32>
    %cst_5 = arith.constant 0.000000e+00 : f32
    %6 = vector.broadcast %cst_5 : f32 to vector<8x96xf32>
    %7 = arith.maximumf %5, %6 : vector<8x96xf32>
    %c0_6 = arith.constant 0 : index
    %c56 = arith.constant 56 : index
    %8 = vector.load %arg1[%c0_6, %c56] : memref<8x784xf32, #tpu.memory_space<vmem>>, vector<8x140xf32>
    %cst_7 = arith.constant dense<0.000000e+00> : vector<8x96xf32>
    %9 = tpu.matmul %8, %0, %cst_7 {dimension_numbers = #tpu.dot_dimension_numbers<[1], [0], [0], [1], [0, 0, 1, 1], [], []>} : vector<8x140xf32>, vector<140x96xf32>, vector<8x96xf32> -> vector<8x96xf32>
    %10 = vector.broadcast %1 : vector<1x96xf32> to vector<8x96xf32>
    %11 = arith.addf %9, %10 : vector<8x96xf32>
    %cst_8 = arith.constant 0.000000e+00 : f32
    %12 = vector.broadcast %cst_8 : f32 to vector<8x96xf32>
    %13 = arith.maximumf %11, %12 : vector<8x96xf32>
    %c0_9 = arith.constant 0 : index
    %c112 = arith.constant 112 : index
    %14 = vector.load %arg1[%c0_9, %c112] : memref<8x784xf32, #tpu.memory_space<vmem>>, vector<8x140xf32>
    %cst_10 = arith.constant dense<0.000000e+00> : vector<8x96xf32>
    %15 = tpu.matmul %14, %0, %cst_10 {dimension_numbers = #tpu.dot_dimension_numbers<[1], [0], [0], [1], [0, 0, 1, 1], [], []>} : vector<8x140xf32>, vector<140x96xf32>, vector<8x96xf32> -> vector<8x96xf32>
    %16 = vector.broadcast %1 : vector<1x96xf32> to vector<8x96xf32>
    %17 = arith.addf %15, %16 : vector<8x96xf32>
    %cst_11 = arith.constant 0.000000e+00 : f32
    %18 = vector.broadcast %cst_11 : f32 to vector<8x96xf32>
    %19 = arith.maximumf %17, %18 : vector<8x96xf32>
    %c0_12 = arith.constant 0 : index
    %c168 = arith.constant 168 : index
    %20 = vector.load %arg1[%c0_12, %c168] : memref<8x784xf32, #tpu.memory_space<vmem>>, vector<8x140xf32>
    %cst_13 = arith.constant dense<0.000000e+00> : vector<8x96xf32>
    %21 = tpu.matmul %20, %0, %cst_13 {dimension_numbers = #tpu.dot_dimension_numbers<[1], [0], [0], [1], [0, 0, 1, 1], [], []>} : vector<8x140xf32>, vector<140x96xf32>, vector<8x96xf32> -> vector<8x96xf32>
    %22 = vector.broadcast %1 : vector<1x96xf32> to vector<8x96xf32>
    %23 = arith.addf %21, %22 : vector<8x96xf32>
    %cst_14 = arith.constant 0.000000e+00 : f32
    %24 = vector.broadcast %cst_14 : f32 to vector<8x96xf32>
    %25 = arith.maximumf %23, %24 : vector<8x96xf32>
    %c0_15 = arith.constant 0 : index
    %c224 = arith.constant 224 : index
    %26 = vector.load %arg1[%c0_15, %c224] : memref<8x784xf32, #tpu.memory_space<vmem>>, vector<8x140xf32>
    %cst_16 = arith.constant dense<0.000000e+00> : vector<8x96xf32>
    %27 = tpu.matmul %26, %0, %cst_16 {dimension_numbers = #tpu.dot_dimension_numbers<[1], [0], [0], [1], [0, 0, 1, 1], [], []>} : vector<8x140xf32>, vector<140x96xf32>, vector<8x96xf32> -> vector<8x96xf32>
    %28 = vector.broadcast %1 : vector<1x96xf32> to vector<8x96xf32>
    %29 = arith.addf %27, %28 : vector<8x96xf32>
    %cst_17 = arith.constant 0.000000e+00 : f32
    %30 = vector.broadcast %cst_17 : f32 to vector<8x96xf32>
    %31 = arith.maximumf %29, %30 : vector<8x96xf32>
    %c0_18 = arith.constant 0 : index
    %c280 = arith.constant 280 : index
    %32 = vector.load %arg1[%c0_18, %c280] : memref<8x784xf32, #tpu.memory_space<vmem>>, vector<8x140xf32>
    %cst_19 = arith.constant dense<0.000000e+00> : vector<8x96xf32>
    %33 = tpu.matmul %32, %0, %cst_19 {dimension_numbers = #tpu.dot_dimension_numbers<[1], [0], [0], [1], [0, 0, 1, 1], [], []>} : vector<8x140xf32>, vector<140x96xf32>, vector<8x96xf32> -> vector<8x96xf32>
    %34 = vector.broadcast %1 : vector<1x96xf32> to vector<8x96xf32>
    %35 = arith.addf %33, %34 : vector<8x96xf32>
    %cst_20 = arith.constant 0.000000e+00 : f32
    %36 = vector.broadcast %cst_20 : f32 to vector<8x96xf32>
    %37 = arith.maximumf %35, %36 : vector<8x96xf32>
    %c0_21 = arith.constant 0 : index
    %c336 = arith.constant 336 : index
    %38 = vector.load %arg1[%c0_21, %c336] : memref<8x784xf32, #tpu.memory_space<vmem>>, vector<8x140xf32>
    %cst_22 = arith.constant dense<0.000000e+00> : vector<8x96xf32>
    %39 = tpu.matmul %38, %0, %cst_22 {dimension_numbers = #tpu.dot_dimension_numbers<[1], [0], [0], [1], [0, 0, 1, 1], [], []>} : vector<8x140xf32>, vector<140x96xf32>, vector<8x96xf32> -> vector<8x96xf32>
    %40 = vector.broadcast %1 : vector<1x96xf32> to vector<8x96xf32>
    %41 = arith.addf %39, %40 : vector<8x96xf32>
    %cst_23 = arith.constant 0.000000e+00 : f32
    %42 = vector.broadcast %cst_23 : f32 to vector<8x96xf32>
    %43 = arith.maximumf %41, %42 : vector<8x96xf32>
    %c0_24 = arith.constant 0 : index
    %c392 = arith.constant 392 : index
    %44 = vector.load %arg1[%c0_24, %c392] : memref<8x784xf32, #tpu.memory_space<vmem>>, vector<8x140xf32>
    %cst_25 = arith.constant dense<0.000000e+00> : vector<8x96xf32>
    %45 = tpu.matmul %44, %0, %cst_25 {dimension_numbers = #tpu.dot_dimension_numbers<[1], [0], [0], [1], [0, 0, 1, 1], [], []>} : vector<8x140xf32>, vector<140x96xf32>, vector<8x96xf32> -> vector<8x96xf32>
    %46 = vector.broadcast %1 : vector<1x96xf32> to vector<8x96xf32>
    %47 = arith.addf %45, %46 : vector<8x96xf32>
    %cst_26 = arith.constant 0.000000e+00 : f32
    %48 = vector.broadcast %cst_26 : f32 to vector<8x96xf32>
    %49 = arith.maximumf %47, %48 : vector<8x96xf32>
    %c0_27 = arith.constant 0 : index
    %c448 = arith.constant 448 : index
    %50 = vector.load %arg1[%c0_27, %c448] : memref<8x784xf32, #tpu.memory_space<vmem>>, vector<8x140xf32>
    %cst_28 = arith.constant dense<0.000000e+00> : vector<8x96xf32>
    %51 = tpu.matmul %50, %0, %cst_28 {dimension_numbers = #tpu.dot_dimension_numbers<[1], [0], [0], [1], [0, 0, 1, 1], [], []>} : vector<8x140xf32>, vector<140x96xf32>, vector<8x96xf32> -> vector<8x96xf32>
    %52 = vector.broadcast %1 : vector<1x96xf32> to vector<8x96xf32>
    %53 = arith.addf %51, %52 : vector<8x96xf32>
    %cst_29 = arith.constant 0.000000e+00 : f32
    %54 = vector.broadcast %cst_29 : f32 to vector<8x96xf32>
    %55 = arith.maximumf %53, %54 : vector<8x96xf32>
    %c0_30 = arith.constant 0 : index
    %c504 = arith.constant 504 : index
    %56 = vector.load %arg1[%c0_30, %c504] : memref<8x784xf32, #tpu.memory_space<vmem>>, vector<8x140xf32>
    %cst_31 = arith.constant dense<0.000000e+00> : vector<8x96xf32>
    %57 = tpu.matmul %56, %0, %cst_31 {dimension_numbers = #tpu.dot_dimension_numbers<[1], [0], [0], [1], [0, 0, 1, 1], [], []>} : vector<8x140xf32>, vector<140x96xf32>, vector<8x96xf32> -> vector<8x96xf32>
    %58 = vector.broadcast %1 : vector<1x96xf32> to vector<8x96xf32>
    %59 = arith.addf %57, %58 : vector<8x96xf32>
    %cst_32 = arith.constant 0.000000e+00 : f32
    %60 = vector.broadcast %cst_32 : f32 to vector<8x96xf32>
    %61 = arith.maximumf %59, %60 : vector<8x96xf32>
    %c0_33 = arith.constant 0 : index
    %c560 = arith.constant 560 : index
    %62 = vector.load %arg1[%c0_33, %c560] : memref<8x784xf32, #tpu.memory_space<vmem>>, vector<8x140xf32>
    %cst_34 = arith.constant dense<0.000000e+00> : vector<8x96xf32>
    %63 = tpu.matmul %62, %0, %cst_34 {dimension_numbers = #tpu.dot_dimension_numbers<[1], [0], [0], [1], [0, 0, 1, 1], [], []>} : vector<8x140xf32>, vector<140x96xf32>, vector<8x96xf32> -> vector<8x96xf32>
    %64 = vector.broadcast %1 : vector<1x96xf32> to vector<8x96xf32>
    %65 = arith.addf %63, %64 : vector<8x96xf32>
    %cst_35 = arith.constant 0.000000e+00 : f32
    %66 = vector.broadcast %cst_35 : f32 to vector<8x96xf32>
    %67 = arith.maximumf %65, %66 : vector<8x96xf32>
    %c0_36 = arith.constant 0 : index
    %c0_37 = arith.constant 0 : index
    %68 = vector.load %arg6[%c0_36, %c0_37] : memref<1x64xf32, #tpu.memory_space<vmem>>, vector<1x64xf32>
    %c0_38 = arith.constant 0 : index
    %c0_39 = arith.constant 0 : index
    %c0_40 = arith.constant 0 : index
    %69 = vector.load %arg5[%c0_38, %c0_39, %c0_40] : memref<5x96x64xf32, #tpu.memory_space<vmem>>, vector<1x96x64xf32>
    %70 = vector.shape_cast %69 : vector<1x96x64xf32> to vector<96x64xf32>
    %cst_41 = arith.constant dense<0.000000e+00> : vector<8x64xf32>
    %71 = tpu.matmul %7, %70, %cst_41 {dimension_numbers = #tpu.dot_dimension_numbers<[1], [0], [0], [1], [0, 0, 1, 1], [], []>} : vector<8x96xf32>, vector<96x64xf32>, vector<8x64xf32> -> vector<8x64xf32>
    %c1 = arith.constant 1 : index
    %c0_42 = arith.constant 0 : index
    %c0_43 = arith.constant 0 : index
    %72 = vector.load %arg5[%c1, %c0_42, %c0_43] : memref<5x96x64xf32, #tpu.memory_space<vmem>>, vector<1x96x64xf32>
    %73 = vector.shape_cast %72 : vector<1x96x64xf32> to vector<96x64xf32>
    %cst_44 = arith.constant dense<0.000000e+00> : vector<8x64xf32>
    %74 = tpu.matmul %13, %73, %cst_44 {dimension_numbers = #tpu.dot_dimension_numbers<[1], [0], [0], [1], [0, 0, 1, 1], [], []>} : vector<8x96xf32>, vector<96x64xf32>, vector<8x64xf32> -> vector<8x64xf32>
    %75 = arith.addf %71, %74 : vector<8x64xf32>
    %c2 = arith.constant 2 : index
    %c0_45 = arith.constant 0 : index
    %c0_46 = arith.constant 0 : index
    %76 = vector.load %arg5[%c2, %c0_45, %c0_46] : memref<5x96x64xf32, #tpu.memory_space<vmem>>, vector<1x96x64xf32>
    %77 = vector.shape_cast %76 : vector<1x96x64xf32> to vector<96x64xf32>
    %cst_47 = arith.constant dense<0.000000e+00> : vector<8x64xf32>
    %78 = tpu.matmul %19, %77, %cst_47 {dimension_numbers = #tpu.dot_dimension_numbers<[1], [0], [0], [1], [0, 0, 1, 1], [], []>} : vector<8x96xf32>, vector<96x64xf32>, vector<8x64xf32> -> vector<8x64xf32>
    %79 = arith.addf %75, %78 : vector<8x64xf32>
    %c3 = arith.constant 3 : index
    %c0_48 = arith.constant 0 : index
    %c0_49 = arith.constant 0 : index
    %80 = vector.load %arg5[%c3, %c0_48, %c0_49] : memref<5x96x64xf32, #tpu.memory_space<vmem>>, vector<1x96x64xf32>
    %81 = vector.shape_cast %80 : vector<1x96x64xf32> to vector<96x64xf32>
    %cst_50 = arith.constant dense<0.000000e+00> : vector<8x64xf32>
    %82 = tpu.matmul %25, %81, %cst_50 {dimension_numbers = #tpu.dot_dimension_numbers<[1], [0], [0], [1], [0, 0, 1, 1], [], []>} : vector<8x96xf32>, vector<96x64xf32>, vector<8x64xf32> -> vector<8x64xf32>
    %83 = arith.addf %79, %82 : vector<8x64xf32>
    %c4 = arith.constant 4 : index
    %c0_51 = arith.constant 0 : index
    %c0_52 = arith.constant 0 : index
    %84 = vector.load %arg5[%c4, %c0_51, %c0_52] : memref<5x96x64xf32, #tpu.memory_space<vmem>>, vector<1x96x64xf32>
    %85 = vector.shape_cast %84 : vector<1x96x64xf32> to vector<96x64xf32>
    %cst_53 = arith.constant dense<0.000000e+00> : vector<8x64xf32>
    %86 = tpu.matmul %31, %85, %cst_53 {dimension_numbers = #tpu.dot_dimension_numbers<[1], [0], [0], [1], [0, 0, 1, 1], [], []>} : vector<8x96xf32>, vector<96x64xf32>, vector<8x64xf32> -> vector<8x64xf32>
    %87 = arith.addf %83, %86 : vector<8x64xf32>
    %88 = vector.broadcast %68 : vector<1x64xf32> to vector<8x64xf32>
    %89 = arith.addf %87, %88 : vector<8x64xf32>
    %cst_54 = arith.constant 0.000000e+00 : f32
    %90 = vector.broadcast %cst_54 : f32 to vector<8x64xf32>
    %91 = arith.maximumf %89, %90 : vector<8x64xf32>
    %c0_55 = arith.constant 0 : index
    %c0_56 = arith.constant 0 : index
    %c0_57 = arith.constant 0 : index
    %92 = vector.load %arg5[%c0_55, %c0_56, %c0_57] : memref<5x96x64xf32, #tpu.memory_space<vmem>>, vector<1x96x64xf32>
    %93 = vector.shape_cast %92 : vector<1x96x64xf32> to vector<96x64xf32>
    %cst_58 = arith.constant dense<0.000000e+00> : vector<8x64xf32>
    %94 = tpu.matmul %19, %93, %cst_58 {dimension_numbers = #tpu.dot_dimension_numbers<[1], [0], [0], [1], [0, 0, 1, 1], [], []>} : vector<8x96xf32>, vector<96x64xf32>, vector<8x64xf32> -> vector<8x64xf32>
    %c1_59 = arith.constant 1 : index
    %c0_60 = arith.constant 0 : index
    %c0_61 = arith.constant 0 : index
    %95 = vector.load %arg5[%c1_59, %c0_60, %c0_61] : memref<5x96x64xf32, #tpu.memory_space<vmem>>, vector<1x96x64xf32>
    %96 = vector.shape_cast %95 : vector<1x96x64xf32> to vector<96x64xf32>
    %cst_62 = arith.constant dense<0.000000e+00> : vector<8x64xf32>
    %97 = tpu.matmul %25, %96, %cst_62 {dimension_numbers = #tpu.dot_dimension_numbers<[1], [0], [0], [1], [0, 0, 1, 1], [], []>} : vector<8x96xf32>, vector<96x64xf32>, vector<8x64xf32> -> vector<8x64xf32>
    %98 = arith.addf %94, %97 : vector<8x64xf32>
    %c2_63 = arith.constant 2 : index
    %c0_64 = arith.constant 0 : index
    %c0_65 = arith.constant 0 : index
    %99 = vector.load %arg5[%c2_63, %c0_64, %c0_65] : memref<5x96x64xf32, #tpu.memory_space<vmem>>, vector<1x96x64xf32>
    %100 = vector.shape_cast %99 : vector<1x96x64xf32> to vector<96x64xf32>
    %cst_66 = arith.constant dense<0.000000e+00> : vector<8x64xf32>
    %101 = tpu.matmul %31, %100, %cst_66 {dimension_numbers = #tpu.dot_dimension_numbers<[1], [0], [0], [1], [0, 0, 1, 1], [], []>} : vector<8x96xf32>, vector<96x64xf32>, vector<8x64xf32> -> vector<8x64xf32>
    %102 = arith.addf %98, %101 : vector<8x64xf32>
    %c3_67 = arith.constant 3 : index
    %c0_68 = arith.constant 0 : index
    %c0_69 = arith.constant 0 : index
    %103 = vector.load %arg5[%c3_67, %c0_68, %c0_69] : memref<5x96x64xf32, #tpu.memory_space<vmem>>, vector<1x96x64xf32>
    %104 = vector.shape_cast %103 : vector<1x96x64xf32> to vector<96x64xf32>
    %cst_70 = arith.constant dense<0.000000e+00> : vector<8x64xf32>
    %105 = tpu.matmul %37, %104, %cst_70 {dimension_numbers = #tpu.dot_dimension_numbers<[1], [0], [0], [1], [0, 0, 1, 1], [], []>} : vector<8x96xf32>, vector<96x64xf32>, vector<8x64xf32> -> vector<8x64xf32>
    %106 = arith.addf %102, %105 : vector<8x64xf32>
    %c4_71 = arith.constant 4 : index
    %c0_72 = arith.constant 0 : index
    %c0_73 = arith.constant 0 : index
    %107 = vector.load %arg5[%c4_71, %c0_72, %c0_73] : memref<5x96x64xf32, #tpu.memory_space<vmem>>, vector<1x96x64xf32>
    %108 = vector.shape_cast %107 : vector<1x96x64xf32> to vector<96x64xf32>
    %cst_74 = arith.constant dense<0.000000e+00> : vector<8x64xf32>
    %109 = tpu.matmul %43, %108, %cst_74 {dimension_numbers = #tpu.dot_dimension_numbers<[1], [0], [0], [1], [0, 0, 1, 1], [], []>} : vector<8x96xf32>, vector<96x64xf32>, vector<8x64xf32> -> vector<8x64xf32>
    %110 = arith.addf %106, %109 : vector<8x64xf32>
    %111 = vector.broadcast %68 : vector<1x64xf32> to vector<8x64xf32>
    %112 = arith.addf %110, %111 : vector<8x64xf32>
    %cst_75 = arith.constant 0.000000e+00 : f32
    %113 = vector.broadcast %cst_75 : f32 to vector<8x64xf32>
    %114 = arith.maximumf %112, %113 : vector<8x64xf32>
    %c0_76 = arith.constant 0 : index
    %c0_77 = arith.constant 0 : index
    %c0_78 = arith.constant 0 : index
    %115 = vector.load %arg5[%c0_76, %c0_77, %c0_78] : memref<5x96x64xf32, #tpu.memory_space<vmem>>, vector<1x96x64xf32>
    %116 = vector.shape_cast %115 : vector<1x96x64xf32> to vector<96x64xf32>
    %cst_79 = arith.constant dense<0.000000e+00> : vector<8x64xf32>
    %117 = tpu.matmul %31, %116, %cst_79 {dimension_numbers = #tpu.dot_dimension_numbers<[1], [0], [0], [1], [0, 0, 1, 1], [], []>} : vector<8x96xf32>, vector<96x64xf32>, vector<8x64xf32> -> vector<8x64xf32>
    %c1_80 = arith.constant 1 : index
    %c0_81 = arith.constant 0 : index
    %c0_82 = arith.constant 0 : index
    %118 = vector.load %arg5[%c1_80, %c0_81, %c0_82] : memref<5x96x64xf32, #tpu.memory_space<vmem>>, vector<1x96x64xf32>
    %119 = vector.shape_cast %118 : vector<1x96x64xf32> to vector<96x64xf32>
    %cst_83 = arith.constant dense<0.000000e+00> : vector<8x64xf32>
    %120 = tpu.matmul %37, %119, %cst_83 {dimension_numbers = #tpu.dot_dimension_numbers<[1], [0], [0], [1], [0, 0, 1, 1], [], []>} : vector<8x96xf32>, vector<96x64xf32>, vector<8x64xf32> -> vector<8x64xf32>
    %121 = arith.addf %117, %120 : vector<8x64xf32>
    %c2_84 = arith.constant 2 : index
    %c0_85 = arith.constant 0 : index
    %c0_86 = arith.constant 0 : index
    %122 = vector.load %arg5[%c2_84, %c0_85, %c0_86] : memref<5x96x64xf32, #tpu.memory_space<vmem>>, vector<1x96x64xf32>
    %123 = vector.shape_cast %122 : vector<1x96x64xf32> to vector<96x64xf32>
    %cst_87 = arith.constant dense<0.000000e+00> : vector<8x64xf32>
    %124 = tpu.matmul %43, %123, %cst_87 {dimension_numbers = #tpu.dot_dimension_numbers<[1], [0], [0], [1], [0, 0, 1, 1], [], []>} : vector<8x96xf32>, vector<96x64xf32>, vector<8x64xf32> -> vector<8x64xf32>
    %125 = arith.addf %121, %124 : vector<8x64xf32>
    %c3_88 = arith.constant 3 : index
    %c0_89 = arith.constant 0 : index
    %c0_90 = arith.constant 0 : index
    %126 = vector.load %arg5[%c3_88, %c0_89, %c0_90] : memref<5x96x64xf32, #tpu.memory_space<vmem>>, vector<1x96x64xf32>
    %127 = vector.shape_cast %126 : vector<1x96x64xf32> to vector<96x64xf32>
    %cst_91 = arith.constant dense<0.000000e+00> : vector<8x64xf32>
    %128 = tpu.matmul %49, %127, %cst_91 {dimension_numbers = #tpu.dot_dimension_numbers<[1], [0], [0], [1], [0, 0, 1, 1], [], []>} : vector<8x96xf32>, vector<96x64xf32>, vector<8x64xf32> -> vector<8x64xf32>
    %129 = arith.addf %125, %128 : vector<8x64xf32>
    %c4_92 = arith.constant 4 : index
    %c0_93 = arith.constant 0 : index
    %c0_94 = arith.constant 0 : index
    %130 = vector.load %arg5[%c4_92, %c0_93, %c0_94] : memref<5x96x64xf32, #tpu.memory_space<vmem>>, vector<1x96x64xf32>
    %131 = vector.shape_cast %130 : vector<1x96x64xf32> to vector<96x64xf32>
    %cst_95 = arith.constant dense<0.000000e+00> : vector<8x64xf32>
    %132 = tpu.matmul %55, %131, %cst_95 {dimension_numbers = #tpu.dot_dimension_numbers<[1], [0], [0], [1], [0, 0, 1, 1], [], []>} : vector<8x96xf32>, vector<96x64xf32>, vector<8x64xf32> -> vector<8x64xf32>
    %133 = arith.addf %129, %132 : vector<8x64xf32>
    %134 = vector.broadcast %68 : vector<1x64xf32> to vector<8x64xf32>
    %135 = arith.addf %133, %134 : vector<8x64xf32>
    %cst_96 = arith.constant 0.000000e+00 : f32
    %136 = vector.broadcast %cst_96 : f32 to vector<8x64xf32>
    %137 = arith.maximumf %135, %136 : vector<8x64xf32>
    %c0_97 = arith.constant 0 : index
    %c0_98 = arith.constant 0 : index
    %c0_99 = arith.constant 0 : index
    %138 = vector.load %arg5[%c0_97, %c0_98, %c0_99] : memref<5x96x64xf32, #tpu.memory_space<vmem>>, vector<1x96x64xf32>
    %139 = vector.shape_cast %138 : vector<1x96x64xf32> to vector<96x64xf32>
    %cst_100 = arith.constant dense<0.000000e+00> : vector<8x64xf32>
    %140 = tpu.matmul %43, %139, %cst_100 {dimension_numbers = #tpu.dot_dimension_numbers<[1], [0], [0], [1], [0, 0, 1, 1], [], []>} : vector<8x96xf32>, vector<96x64xf32>, vector<8x64xf32> -> vector<8x64xf32>
    %c1_101 = arith.constant 1 : index
    %c0_102 = arith.constant 0 : index
    %c0_103 = arith.constant 0 : index
    %141 = vector.load %arg5[%c1_101, %c0_102, %c0_103] : memref<5x96x64xf32, #tpu.memory_space<vmem>>, vector<1x96x64xf32>
    %142 = vector.shape_cast %141 : vector<1x96x64xf32> to vector<96x64xf32>
    %cst_104 = arith.constant dense<0.000000e+00> : vector<8x64xf32>
    %143 = tpu.matmul %49, %142, %cst_104 {dimension_numbers = #tpu.dot_dimension_numbers<[1], [0], [0], [1], [0, 0, 1, 1], [], []>} : vector<8x96xf32>, vector<96x64xf32>, vector<8x64xf32> -> vector<8x64xf32>
    %144 = arith.addf %140, %143 : vector<8x64xf32>
    %c2_105 = arith.constant 2 : index
    %c0_106 = arith.constant 0 : index
    %c0_107 = arith.constant 0 : index
    %145 = vector.load %arg5[%c2_105, %c0_106, %c0_107] : memref<5x96x64xf32, #tpu.memory_space<vmem>>, vector<1x96x64xf32>
    %146 = vector.shape_cast %145 : vector<1x96x64xf32> to vector<96x64xf32>
    %cst_108 = arith.constant dense<0.000000e+00> : vector<8x64xf32>
    %147 = tpu.matmul %55, %146, %cst_108 {dimension_numbers = #tpu.dot_dimension_numbers<[1], [0], [0], [1], [0, 0, 1, 1], [], []>} : vector<8x96xf32>, vector<96x64xf32>, vector<8x64xf32> -> vector<8x64xf32>
    %148 = arith.addf %144, %147 : vector<8x64xf32>
    %c3_109 = arith.constant 3 : index
    %c0_110 = arith.constant 0 : index
    %c0_111 = arith.constant 0 : index
    %149 = vector.load %arg5[%c3_109, %c0_110, %c0_111] : memref<5x96x64xf32, #tpu.memory_space<vmem>>, vector<1x96x64xf32>
    %150 = vector.shape_cast %149 : vector<1x96x64xf32> to vector<96x64xf32>
    %cst_112 = arith.constant dense<0.000000e+00> : vector<8x64xf32>
    %151 = tpu.matmul %61, %150, %cst_112 {dimension_numbers = #tpu.dot_dimension_numbers<[1], [0], [0], [1], [0, 0, 1, 1], [], []>} : vector<8x96xf32>, vector<96x64xf32>, vector<8x64xf32> -> vector<8x64xf32>
    %152 = arith.addf %148, %151 : vector<8x64xf32>
    %c4_113 = arith.constant 4 : index
    %c0_114 = arith.constant 0 : index
    %c0_115 = arith.constant 0 : index
    %153 = vector.load %arg5[%c4_113, %c0_114, %c0_115] : memref<5x96x64xf32, #tpu.memory_space<vmem>>, vector<1x96x64xf32>
    %154 = vector.shape_cast %153 : vector<1x96x64xf32> to vector<96x64xf32>
    %cst_116 = arith.constant dense<0.000000e+00> : vector<8x64xf32>
    %155 = tpu.matmul %67, %154, %cst_116 {dimension_numbers = #tpu.dot_dimension_numbers<[1], [0], [0], [1], [0, 0, 1, 1], [], []>} : vector<8x96xf32>, vector<96x64xf32>, vector<8x64xf32> -> vector<8x64xf32>
    %156 = arith.addf %152, %155 : vector<8x64xf32>
    %157 = vector.broadcast %68 : vector<1x64xf32> to vector<8x64xf32>
    %158 = arith.addf %156, %157 : vector<8x64xf32>
    %cst_117 = arith.constant 0.000000e+00 : f32
    %159 = vector.broadcast %cst_117 : f32 to vector<8x64xf32>
    %160 = arith.maximumf %158, %159 : vector<8x64xf32>
    %c0_118 = arith.constant 0 : index
    %c0_119 = arith.constant 0 : index
    %161 = vector.load %arg2[%c0_118, %c0_119] : memref<8x4xf32, #tpu.memory_space<vmem>>, vector<8x4xf32>
    %c0_120 = arith.constant 0 : index
    %c0_121 = arith.constant 0 : index
    %162 = vector.load %arg8[%c0_120, %c0_121] : memref<4x64xf32, #tpu.memory_space<vmem>>, vector<4x64xf32>
    %cst_122 = arith.constant dense<0.000000e+00> : vector<8x64xf32>
    %163 = tpu.matmul %161, %162, %cst_122 {dimension_numbers = #tpu.dot_dimension_numbers<[1], [0], [0], [1], [0, 0, 1, 1], [], []>} : vector<8x4xf32>, vector<4x64xf32>, vector<8x64xf32> -> vector<8x64xf32>
    %c0_123 = arith.constant 0 : index
    %c0_124 = arith.constant 0 : index
    %164 = vector.load %arg9[%c0_123, %c0_124] : memref<1x64xf32, #tpu.memory_space<vmem>>, vector<1x64xf32>
    %165 = vector.broadcast %164 : vector<1x64xf32> to vector<8x64xf32>
    %166 = arith.addf %163, %165 : vector<8x64xf32>
    %c0_125 = arith.constant 0 : index
    %c0_126 = arith.constant 0 : index
    %c0_127 = arith.constant 0 : index
    %167 = vector.load %arg7[%c0_125, %c0_126, %c0_127] : memref<4x64x64xf32, #tpu.memory_space<vmem>>, vector<1x64x64xf32>
    %168 = vector.shape_cast %167 : vector<1x64x64xf32> to vector<64x64xf32>
    %cst_128 = arith.constant dense<0.000000e+00> : vector<8x64xf32>
    %169 = tpu.matmul %91, %168, %cst_128 {dimension_numbers = #tpu.dot_dimension_numbers<[1], [0], [0], [1], [0, 0, 1, 1], [], []>} : vector<8x64xf32>, vector<64x64xf32>, vector<8x64xf32> -> vector<8x64xf32>
    %170 = arith.addf %166, %169 : vector<8x64xf32>
    %c1_129 = arith.constant 1 : index
    %c0_130 = arith.constant 0 : index
    %c0_131 = arith.constant 0 : index
    %171 = vector.load %arg7[%c1_129, %c0_130, %c0_131] : memref<4x64x64xf32, #tpu.memory_space<vmem>>, vector<1x64x64xf32>
    %172 = vector.shape_cast %171 : vector<1x64x64xf32> to vector<64x64xf32>
    %cst_132 = arith.constant dense<0.000000e+00> : vector<8x64xf32>
    %173 = tpu.matmul %114, %172, %cst_132 {dimension_numbers = #tpu.dot_dimension_numbers<[1], [0], [0], [1], [0, 0, 1, 1], [], []>} : vector<8x64xf32>, vector<64x64xf32>, vector<8x64xf32> -> vector<8x64xf32>
    %174 = arith.addf %170, %173 : vector<8x64xf32>
    %c2_133 = arith.constant 2 : index
    %c0_134 = arith.constant 0 : index
    %c0_135 = arith.constant 0 : index
    %175 = vector.load %arg7[%c2_133, %c0_134, %c0_135] : memref<4x64x64xf32, #tpu.memory_space<vmem>>, vector<1x64x64xf32>
    %176 = vector.shape_cast %175 : vector<1x64x64xf32> to vector<64x64xf32>
    %cst_136 = arith.constant dense<0.000000e+00> : vector<8x64xf32>
    %177 = tpu.matmul %137, %176, %cst_136 {dimension_numbers = #tpu.dot_dimension_numbers<[1], [0], [0], [1], [0, 0, 1, 1], [], []>} : vector<8x64xf32>, vector<64x64xf32>, vector<8x64xf32> -> vector<8x64xf32>
    %178 = arith.addf %174, %177 : vector<8x64xf32>
    %c3_137 = arith.constant 3 : index
    %c0_138 = arith.constant 0 : index
    %c0_139 = arith.constant 0 : index
    %179 = vector.load %arg7[%c3_137, %c0_138, %c0_139] : memref<4x64x64xf32, #tpu.memory_space<vmem>>, vector<1x64x64xf32>
    %180 = vector.shape_cast %179 : vector<1x64x64xf32> to vector<64x64xf32>
    %cst_140 = arith.constant dense<0.000000e+00> : vector<8x64xf32>
    %181 = tpu.matmul %160, %180, %cst_140 {dimension_numbers = #tpu.dot_dimension_numbers<[1], [0], [0], [1], [0, 0, 1, 1], [], []>} : vector<8x64xf32>, vector<64x64xf32>, vector<8x64xf32> -> vector<8x64xf32>
    %182 = arith.addf %178, %181 : vector<8x64xf32>
    %cst_141 = arith.constant 0.000000e+00 : f32
    %183 = vector.broadcast %cst_141 : f32 to vector<8x64xf32>
    %184 = arith.maximumf %182, %183 : vector<8x64xf32>
    %c0_142 = arith.constant 0 : index
    %c0_143 = arith.constant 0 : index
    %185 = vector.load %arg10[%c0_142, %c0_143] : memref<64x16xf32, #tpu.memory_space<vmem>>, vector<64x16xf32>
    %cst_144 = arith.constant dense<0.000000e+00> : vector<8x16xf32>
    %186 = tpu.matmul %184, %185, %cst_144 {dimension_numbers = #tpu.dot_dimension_numbers<[1], [0], [0], [1], [0, 0, 1, 1], [], []>} : vector<8x64xf32>, vector<64x16xf32>, vector<8x16xf32> -> vector<8x16xf32>
    %c0_145 = arith.constant 0 : index
    %c0_146 = arith.constant 0 : index
    %187 = vector.load %arg11[%c0_145, %c0_146] : memref<1x16xf32, #tpu.memory_space<vmem>>, vector<1x16xf32>
    %188 = vector.broadcast %187 : vector<1x16xf32> to vector<8x16xf32>
    %189 = arith.addf %186, %188 : vector<8x16xf32>
    %c0_147 = arith.constant 0 : index
    %c0_148 = arith.constant 0 : index
    %190 = vector.load %arg12[%c0_147, %c0_148] : memref<8x16xf32, #tpu.memory_space<vmem>>, vector<8x16xf32>
    tpu.vector_store %arg12[%c0_147, %c0_148], %189 {strides = array<i32>} : memref<8x16xf32, #tpu.memory_space<vmem>>, vector<8x16xf32>,
    return
  }
  func.func @transform_0(%arg0: i32) -> (i32, i32) {
    %c0_i32 = arith.constant 0 : i32
    %c0_i32_0 = arith.constant 0 : i32
    return %arg0, %c0_i32 : i32, i32
  }
  func.func @transform_1(%arg0: i32) -> (i32, i32) {
    %c0_i32 = arith.constant 0 : i32
    %c0_i32_0 = arith.constant 0 : i32
    return %arg0, %c0_i32 : i32, i32
  }
  func.func @transform_2(%arg0: i32) -> (i32, i32) {
    %c0_i32 = arith.constant 0 : i32
    %c0_i32_0 = arith.constant 0 : i32
    %c0_i32_1 = arith.constant 0 : i32
    return %c0_i32, %c0_i32_0 : i32, i32
  }
  func.func @transform_3(%arg0: i32) -> (i32, i32) {
    %c0_i32 = arith.constant 0 : i32
    %c0_i32_0 = arith.constant 0 : i32
    %c0_i32_1 = arith.constant 0 : i32
    return %c0_i32, %c0_i32_0 : i32, i32
  }
  func.func @transform_4(%arg0: i32) -> (i32, i32, i32) {
    %c0_i32 = arith.constant 0 : i32
    %c0_i32_0 = arith.constant 0 : i32
    %c0_i32_1 = arith.constant 0 : i32
    %c0_i32_2 = arith.constant 0 : i32
    return %c0_i32, %c0_i32_0, %c0_i32_1 : i32, i32, i32
  }
  func.func @transform_5(%arg0: i32) -> (i32, i32) {
    %c0_i32 = arith.constant 0 : i32
    %c0_i32_0 = arith.constant 0 : i32
    %c0_i32_1 = arith.constant 0 : i32
    return %c0_i32, %c0_i32_0 : i32, i32
  }
  func.func @transform_6(%arg0: i32) -> (i32, i32, i32) {
    %c0_i32 = arith.constant 0 : i32
    %c0_i32_0 = arith.constant 0 : i32
    %c0_i32_1 = arith.constant 0 : i32
    %c0_i32_2 = arith.constant 0 : i32
    return %c0_i32, %c0_i32_0, %c0_i32_1 : i32, i32, i32
  }
  func.func @transform_7(%arg0: i32) -> (i32, i32) {
    %c0_i32 = arith.constant 0 : i32
    %c0_i32_0 = arith.constant 0 : i32
    %c0_i32_1 = arith.constant 0 : i32
    return %c0_i32, %c0_i32_0 : i32, i32
  }
  func.func @transform_8(%arg0: i32) -> (i32, i32) {
    %c0_i32 = arith.constant 0 : i32
    %c0_i32_0 = arith.constant 0 : i32
    %c0_i32_1 = arith.constant 0 : i32
    return %c0_i32, %c0_i32_0 : i32, i32
  }
  func.func @transform_9(%arg0: i32) -> (i32, i32) {
    %c0_i32 = arith.constant 0 : i32
    %c0_i32_0 = arith.constant 0 : i32
    %c0_i32_1 = arith.constant 0 : i32
    return %c0_i32, %c0_i32_0 : i32, i32
  }
  func.func @transform_10(%arg0: i32) -> (i32, i32) {
    %c0_i32 = arith.constant 0 : i32
    %c0_i32_0 = arith.constant 0 : i32
    %c0_i32_1 = arith.constant 0 : i32
    return %c0_i32, %c0_i32_0 : i32, i32
  }
  func.func @transform_11(%arg0: i32) -> (i32, i32) {
    %c0_i32 = arith.constant 0 : i32
    %c0_i32_0 = arith.constant 0 : i32
    return %arg0, %c0_i32 : i32, i32
  }
}

</mosaic_0001>

<llo_original>
// kernel: conv_cvae_encoder_forward.1
$region0: #{conv_cvae_encoder_forward.1}
  #allocation0 [shape = 'u32[]', space=smem, size = 0x4, offset = 0x4, fixed_abs, tag = 'smem constant byte address 0x4 - core index']
  #allocation1 [shape = 'u32[144,128]{1,0:T(1,128)}', space=vmem, size = 0x12000, scoped, tag = 'internal scratch']
  %s0 = inlined_call_operand.vmem [shape: f32[8,784], index: 0, kind: input, shape index: {}]
  %s1 = inlined_call_operand.vmem [shape: f32[8,4], index: 1, kind: input, shape index: {}]
  %s2 = inlined_call_operand.vmem [shape: f32[140,96], index: 2, kind: input, shape index: {}]
  %s3 = inlined_call_operand.vmem [shape: f32[1,96], index: 3, kind: input, shape index: {}]
  %s4 = inlined_call_operand.vmem [shape: f32[5,96,64], index: 4, kind: input, shape index: {}]
  %s5 = inlined_call_operand.vmem [shape: f32[1,64], index: 5, kind: input, shape index: {}]
  %s6 = inlined_call_operand.vmem [shape: f32[4,64,64], index: 6, kind: input, shape index: {}]
  %s7 = inlined_call_operand.vmem [shape: f32[4,64], index: 7, kind: input, shape index: {}]
  %s8 = inlined_call_operand.vmem [shape: f32[1,64], index: 8, kind: input, shape index: {}]
  %s9 = inlined_call_operand.vmem [shape: f32[64,16], index: 9, kind: input, shape index: {}]
  %s10 = inlined_call_operand.vmem [shape: f32[1,16], index: 10, kind: input, shape index: {}]
  %s11 = inlined_call_operand.vmem [shape: f32[8,16], index: 11, kind: output, shape index: {}]
  %s12 = sld [smem:[#allocation0]]
  $region54: #{conv_cvae_encoder_forward.1} parent=0
    _
  %s14 = ssub.s32 1, %s12
  %s15 = scalar_select 0, %s14, %s12
  // Predicated region
  $region2: #{conv_cvae_encoder_forward.1} parent=0 // pred_check
    _
  $region3: #{conv_cvae_encoder_forward.1} parent=0 // pred_check_branch
    %17 = sbr.rel (0) target = $region5
  $region4: #{conv_cvae_encoder_forward.1} parent=0 // pred_region
    _
  $region5: #{conv_cvae_encoder_forward.1} parent=0 // pred_fallthru
    _
  // Predicated region
  $region6: #{conv_cvae_encoder_forward.1} parent=0 // pred_check
    _
  $region7: #{conv_cvae_encoder_forward.1} parent=0 // pred_check_branch
    %19 = sbr.rel (0) target = $region9
  $region8: #{conv_cvae_encoder_forward.1} parent=0 // pred_region
    _
  $region9: #{conv_cvae_encoder_forward.1} parent=0 // pred_fallthru
    _
  // Predicated region
  $region10: #{conv_cvae_encoder_forward.1} parent=0 // pred_check
    _
  $region11: #{conv_cvae_encoder_forward.1} parent=0 // pred_check_branch
    %21 = sbr.rel (0) target = $region13
  $region12: #{conv_cvae_encoder_forward.1} parent=0 // pred_region
    _
  $region13: #{conv_cvae_encoder_forward.1} parent=0 // pred_fallthru
    _
  // Predicated region
  $region14: #{conv_cvae_encoder_forward.1} parent=0 // pred_check
    _
  $region15: #{conv_cvae_encoder_forward.1} parent=0 // pred_check_branch
    %23 = sbr.rel (0) target = $region17
  $region16: #{conv_cvae_encoder_forward.1} parent=0 // pred_region
    _
  $region17: #{conv_cvae_encoder_forward.1} parent=0 // pred_fallthru
    _
  // Predicated region
  $region18: #{conv_cvae_encoder_forward.1} parent=0 // pred_check
    _
  $region19: #{conv_cvae_encoder_forward.1} parent=0 // pred_check_branch
    %25 = sbr.rel (0) target = $region21
  $region20: #{conv_cvae_encoder_forward.1} parent=0 // pred_region
    _
  $region21: #{conv_cvae_encoder_forward.1} parent=0 // pred_fallthru
    _
  // Predicated region
  $region22: #{conv_cvae_encoder_forward.1} parent=0 // pred_check
    _
  $region23: #{conv_cvae_encoder_forward.1} parent=0 // pred_check_branch
    %27 = sbr.rel (0) target = $region25
  $region24: #{conv_cvae_encoder_forward.1} parent=0 // pred_region
    _
  $region25: #{conv_cvae_encoder_forward.1} parent=0 // pred_fallthru
    _
  // Predicated region
  $region26: #{conv_cvae_encoder_forward.1} parent=0 // pred_check
    _
  $region27: #{conv_cvae_encoder_forward.1} parent=0 // pred_check_branch
    %29 = sbr.rel (0) target = $region29
  $region28: #{conv_cvae_encoder_forward.1} parent=0 // pred_region
    _
  $region29: #{conv_cvae_encoder_forward.1} parent=0 // pred_fallthru
    _
  // Predicated region
  $region30: #{conv_cvae_encoder_forward.1} parent=0 // pred_check
    _
  $region31: #{conv_cvae_encoder_forward.1} parent=0 // pred_check_branch
    %31 = sbr.rel (0) target = $region33
  $region32: #{conv_cvae_encoder_forward.1} parent=0 // pred_region
    _
  $region33: #{conv_cvae_encoder_forward.1} parent=0 // pred_fallthru
    _
  // Predicated region
  $region34: #{conv_cvae_encoder_forward.1} parent=0 // pred_check
    _
  $region35: #{conv_cvae_encoder_forward.1} parent=0 // pred_check_branch
    %33 = sbr.rel (0) target = $region37
  $region36: #{conv_cvae_encoder_forward.1} parent=0 // pred_region
    _
  $region37: #{conv_cvae_encoder_forward.1} parent=0 // pred_fallthru
    _
  // Predicated region
  $region38: #{conv_cvae_encoder_forward.1} parent=0 // pred_check
    _
  $region39: #{conv_cvae_encoder_forward.1} parent=0 // pred_check_branch
    %35 = sbr.rel (0) target = $region41
  $region40: #{conv_cvae_encoder_forward.1} parent=0 // pred_region
    _
  $region41: #{conv_cvae_encoder_forward.1} parent=0 // pred_fallthru
    _
  // Predicated region
  $region42: #{conv_cvae_encoder_forward.1} parent=0 // pred_check
    _
  $region43: #{conv_cvae_encoder_forward.1} parent=0 // pred_check_branch
    %37 = sbr.rel (0) target = $region45
  $region44: #{conv_cvae_encoder_forward.1} parent=0 // pred_region
    _
  $region45: #{conv_cvae_encoder_forward.1} parent=0 // pred_fallthru
    _
  %v38 = vld [vmem:[%s2] sm:$0xff]
  %v39 = vld [vmem:[%s2 + $0x8] sm:$0xff]
  %v40 = vld [vmem:[%s2 + $0x10] sm:$0xff]
  %v41 = vld [vmem:[%s2 + $0x18] sm:$0xff]
  %v42 = vld [vmem:[%s2 + $0x20] sm:$0xff]
  %v43 = vld [vmem:[%s2 + $0x28] sm:$0xff]
  %v44 = vld [vmem:[%s2 + $0x30] sm:$0xff]
  %v45 = vld [vmem:[%s2 + $0x38] sm:$0xff]
  %v46 = vld [vmem:[%s2 + $0x40] sm:$0xff]
  %v47 = vld [vmem:[%s2 + $0x48] sm:$0xff]
  %v48 = vld [vmem:[%s2 + $0x50] sm:$0xff]
  %v49 = vld [vmem:[%s2 + $0x58] sm:$0xff]
  %v50 = vld [vmem:[%s2 + $0x60] sm:$0xff]
  %v51 = vld [vmem:[%s2 + $0x68] sm:$0xff]
  %v52 = vld [vmem:[%s2 + $0x70] sm:$0xff]
  %v53 = vld [vmem:[%s2 + $0x78] sm:$0xff]
  %v54 = vld [vmem:[%s2 + $0x80] sm:$0xff]
  %v55 = vld [vmem:[%s2 + $0x88] sm:$0xf]
  %v56 = vld [vmem:[%s3] sm:$0x1]
  %v57 = vld [vmem:[%s0] sm:$0xff]
  %v58 = vld [vmem:[%s0 + $0x8] sm:$0xff]
  %v60 = vlaneseq
  %v61 = vshrl.u32 %v60, 7
  %v62 = vsub.s32 0, %v61
  %v63 = vrot.slane %v56, %v62
  %vm65 = vcmask 97280
  %v67 = vsel %vm65, %v58, 0
  %vm69 = vcmask 1043456
  %v71 = vsel %vm69, %v55, 0
  %73 = vmatprep.subr.mxu0 0.0
  %74 = vmatpush1.msra.mxu0 %v38
  %75 = vmatprep.subr.mxu0 0.0
  %76 = vmatpush1.msra.mxu0 %v39
  %77 = vmatprep.subr.mxu0 0.0
  %78 = vmatpush1.msra.mxu0 %v40
  %79 = vmatprep.subr.mxu0 0.0
  %80 = vmatpush1.msra.mxu0 %v41
  %81 = vmatprep.subr.mxu0 0.0
  %82 = vmatpush1.msra.mxu0 %v42
  %83 = vmatprep.subr.mxu0 0.0
  %84 = vmatpush1.msra.mxu0 %v43
  %85 = vmatprep.subr.mxu0 0.0
  %86 = vmatpush1.msra.mxu0 %v44
  %87 = vmatprep.subr.mxu0 0.0
  %88 = vmatpush1.msra.mxu0 %v45
  %89 = vmatprep.subr.mxu0 0.0
  %90 = vmatpush1.msra.mxu0 %v46
  %91 = vmatprep.subr.mxu0 0.0
  %92 = vmatpush1.msra.mxu0 %v47
  %93 = vmatprep.subr.mxu0 0.0
  %94 = vmatpush1.msra.mxu0 %v48
  %95 = vmatprep.subr.mxu0 0.0
  %96 = vmatpush1.msra.mxu0 %v49
  %97 = vmatprep.subr.mxu0 0.0
  %98 = vmatpush1.msra.mxu0 %v50
  %99 = vmatprep.subr.mxu0 0.0
  %100 = vmatpush1.msra.mxu0 %v51
  %101 = vmatprep.subr.mxu0 0.0
  %102 = vmatpush1.msra.mxu0 %v52
  %103 = vmatprep.subr.mxu0 0.0
  %104 = vmatpush1.msra.mxu0 %v53
  %105 = vmatprep.subr.mxu0 0.0
  %106 = vmatpush1.msra.mxu0 %v54
  %107 = vmatprep.subr.mxu0 0.0
  %108 = vmatpush1.msra.mxu0 %v71
  %109 = vmatprep.subr.mxu0 0.0
  %110 = vmatpush1.msra.mxu0 0.0
  %111 = vmatprep.subr.mxu0 0.0
  %112 = vmatpush1.msra.mxu0 0.0
  %113 = vmatprep.subr.mxu0 0.0
  %114 = vmatpush1.msra.mxu0 0.0
  %115 = vmatprep.subr.mxu0 0.0
  %116 = vmatpush1.msra.mxu0 0.0
  %117 = vmatprep.subr.mxu0 0.0
  %118 = vmatpush1.msra.mxu0 0.0
  %119 = vmatprep.subr.mxu0 0.0
  %120 = vmatpush1.msra.mxu0 0.0
  %121 = vmatprep.subr.mxu0 0.0
  %122 = vmatpush1.msra.mxu0 0.0
  %123 = vmatprep.subr.mxu0 0.0
  %124 = vmatpush1.msra.mxu0 0.0
  %125 = vmatprep.subr.mxu0 0.0
  %126 = vmatpush1.msra.mxu0 0.0
  %127 = vmatprep.subr.mxu0 0.0
  %128 = vmatpush1.msra.mxu0 0.0
  %129 = vmatprep.subr.mxu0 0.0
  %130 = vmatpush1.msra.mxu0 0.0
  %131 = vmatprep.subr.mxu0 0.0
  %132 = vmatpush1.msra.mxu0 0.0
  %133 = vmatprep.subr.mxu0 0.0
  %134 = vmatpush1.msra.mxu0 0.0
  %135 = vmatprep.subr.mxu0 0.0
  %136 = vmatpush1.msra.mxu0 0.0
  %137 = vmatprep.mubr.f32.mxu0 %v67
  %138 = vmatmul.mubr.f32.gmra.mrb[0].mxu0 %v57
  %v139 = vpop.f32.mrb[0].mxu0
  %v140 = vadd.f32 %v63, %v139
  %v141 = vpop.f32.mrb[0].mxu0
  %142 = vdwg.mxu0
  %v143 = vmax.f32 %v140, 0.0
  %145 = vrot.lane.b32.xlu0 %v57, 72
  %v146 = vpop.permute.xlu0 %145
  %147 = vrot.lane.b32.xlu0 %v58, 72
  %v148 = vpop.permute.xlu0 %147
  %vm149 = vcmask 588800
  %v150 = vsel %vm149, %v146, %v148
  %v152 = vsel %vm65, %v148, 0
  %154 = vmatprep.subr.mxu0 0.0
  %155 = vmatpush1.msra.mxu0 %v38
  %156 = vmatprep.subr.mxu0 0.0
  %157 = vmatpush1.msra.mxu0 %v39
  %158 = vmatprep.subr.mxu0 0.0
  %159 = vmatpush1.msra.mxu0 %v40
  %160 = vmatprep.subr.mxu0 0.0
  %161 = vmatpush1.msra.mxu0 %v41
  %162 = vmatprep.subr.mxu0 0.0
  %163 = vmatpush1.msra.mxu0 %v42
  %164 = vmatprep.subr.mxu0 0.0
  %165 = vmatpush1.msra.mxu0 %v43
  %166 = vmatprep.subr.mxu0 0.0
  %167 = vmatpush1.msra.mxu0 %v44
  %168 = vmatprep.subr.mxu0 0.0
  %169 = vmatpush1.msra.mxu0 %v45
  %170 = vmatprep.subr.mxu0 0.0
  %171 = vmatpush1.msra.mxu0 %v46
  %172 = vmatprep.subr.mxu0 0.0
  %173 = vmatpush1.msra.mxu0 %v47
  %174 = vmatprep.subr.mxu0 0.0
  %175 = vmatpush1.msra.mxu0 %v48
  %176 = vmatprep.subr.mxu0 0.0
  %177 = vmatpush1.msra.mxu0 %v49
  %178 = vmatprep.subr.mxu0 0.0
  %179 = vmatpush1.msra.mxu0 %v50
  %180 = vmatprep.subr.mxu0 0.0
  %181 = vmatpush1.msra.mxu0 %v51
  %182 = vmatprep.subr.mxu0 0.0
  %183 = vmatpush1.msra.mxu0 %v52
  %184 = vmatprep.subr.mxu0 0.0
  %185 = vmatpush1.msra.mxu0 %v53
  %186 = vmatprep.subr.mxu0 0.0
  %187 = vmatpush1.msra.mxu0 %v54
  %188 = vmatprep.subr.mxu0 0.0
  %189 = vmatpush1.msra.mxu0 %v71
  %190 = vmatprep.subr.mxu0 0.0
  %191 = vmatpush1.msra.mxu0 0.0
  %192 = vmatprep.subr.mxu0 0.0
  %193 = vmatpush1.msra.mxu0 0.0
  %194 = vmatprep.subr.mxu0 0.0
  %195 = vmatpush1.msra.mxu0 0.0
  %196 = vmatprep.subr.mxu0 0.0
  %197 = vmatpush1.msra.mxu0 0.0
  %198 = vmatprep.subr.mxu0 0.0
  %199 = vmatpush1.msra.mxu0 0.0
  %200 = vmatprep.subr.mxu0 0.0
  %201 = vmatpush1.msra.mxu0 0.0
  %202 = vmatprep.subr.mxu0 0.0
  %203 = vmatpush1.msra.mxu0 0.0
  %204 = vmatprep.subr.mxu0 0.0
  %205 = vmatpush1.msra.mxu0 0.0
  %206 = vmatprep.subr.mxu0 0.0
  %207 = vmatpush1.msra.mxu0 0.0
  %208 = vmatprep.subr.mxu0 0.0
  %209 = vmatpush1.msra.mxu0 0.0
  %210 = vmatprep.subr.mxu0 0.0
  %211 = vmatpush1.msra.mxu0 0.0
  %212 = vmatprep.subr.mxu0 0.0
  %213 = vmatpush1.msra.mxu0 0.0
  %214 = vmatprep.subr.mxu0 0.0
  %215 = vmatpush1.msra.mxu0 0.0
  %216 = vmatprep.subr.mxu0 0.0
  %217 = vmatpush1.msra.mxu0 0.0
  %218 = vmatprep.mubr.f32.mxu0 %v152
  %219 = vmatmul.mubr.f32.gmra.mrb[0].mxu0 %v150
  %v220 = vpop.f32.mrb[0].mxu0
  %v221 = vadd.f32 %v63, %v220
  %v222 = vpop.f32.mrb[0].mxu0
  %223 = vdwg.mxu0
  %v224 = vmax.f32 %v221, 0.0
  %225 = vrot.lane.b32.xlu0 %v57, 16
  %v226 = vpop.permute.xlu0 %225
  %227 = vrot.lane.b32.xlu0 %v58, 16
  %v228 = vpop.permute.xlu0 %227
  %vm229 = vcmask 130048
  %v230 = vsel %vm229, %v226, %v228
  %v232 = vsel %vm65, %v228, 0
  %234 = vmatprep.subr.mxu0 0.0
  %235 = vmatpush1.msra.mxu0 %v38
  %236 = vmatprep.subr.mxu0 0.0
  %237 = vmatpush1.msra.mxu0 %v39
  %238 = vmatprep.subr.mxu0 0.0
  %239 = vmatpush1.msra.mxu0 %v40
  %240 = vmatprep.subr.mxu0 0.0
  %241 = vmatpush1.msra.mxu0 %v41
  %242 = vmatprep.subr.mxu0 0.0
  %243 = vmatpush1.msra.mxu0 %v42
  %244 = vmatprep.subr.mxu0 0.0
  %245 = vmatpush1.msra.mxu0 %v43
  %246 = vmatprep.subr.mxu0 0.0
  %247 = vmatpush1.msra.mxu0 %v44
  %248 = vmatprep.subr.mxu0 0.0
  %249 = vmatpush1.msra.mxu0 %v45
  %250 = vmatprep.subr.mxu0 0.0
  %251 = vmatpush1.msra.mxu0 %v46
  %252 = vmatprep.subr.mxu0 0.0
  %253 = vmatpush1.msra.mxu0 %v47
  %254 = vmatprep.subr.mxu0 0.0
  %255 = vmatpush1.msra.mxu0 %v48
  %256 = vmatprep.subr.mxu0 0.0
  %257 = vmatpush1.msra.mxu0 %v49
  %258 = vmatprep.subr.mxu0 0.0
  %259 = vmatpush1.msra.mxu0 %v50
  %260 = vmatprep.subr.mxu0 0.0
  %261 = vmatpush1.msra.mxu0 %v51
  %262 = vmatprep.subr.mxu0 0.0
  %263 = vmatpush1.msra.mxu0 %v52
  %264 = vmatprep.subr.mxu0 0.0
  %265 = vmatpush1.msra.mxu0 %v53
  %266 = vmatprep.subr.mxu0 0.0
  %267 = vmatpush1.msra.mxu0 %v54
  %268 = vmatprep.subr.mxu0 0.0
  %269 = vmatpush1.msra.mxu0 %v71
  %270 = vmatprep.subr.mxu0 0.0
  %271 = vmatpush1.msra.mxu0 0.0
  %272 = vmatprep.subr.mxu0 0.0
  %273 = vmatpush1.msra.mxu0 0.0
  %274 = vmatprep.subr.mxu0 0.0
  %275 = vmatpush1.msra.mxu0 0.0
  %276 = vmatprep.subr.mxu0 0.0
  %277 = vmatpush1.msra.mxu0 0.0
  %278 = vmatprep.subr.mxu0 0.0
  %279 = vmatpush1.msra.mxu0 0.0
  %280 = vmatprep.subr.mxu0 0.0
  %281 = vmatpush1.msra.mxu0 0.0
  %282 = vmatprep.subr.mxu0 0.0
  %283 = vmatpush1.msra.mxu0 0.0
  %284 = vmatprep.subr.mxu0 0.0
  %285 = vmatpush1.msra.mxu0 0.0
  %286 = vmatprep.subr.mxu0 0.0
  %287 = vmatpush1.msra.mxu0 0.0
  %288 = vmatprep.subr.mxu0 0.0
  %289 = vmatpush1.msra.mxu0 0.0
  %290 = vmatprep.subr.mxu0 0.0
  %291 = vmatpush1.msra.mxu0 0.0
  %292 = vmatprep.subr.mxu0 0.0
  %293 = vmatpush1.msra.mxu0 0.0
  %294 = vmatprep.subr.mxu0 0.0
  %295 = vmatpush1.msra.mxu0 0.0
  %296 = vmatprep.subr.mxu0 0.0
  %297 = vmatpush1.msra.mxu0 0.0
  %298 = vmatprep.mubr.f32.mxu0 %v232
  %299 = vmatmul.mubr.f32.gmra.mrb[0].mxu0 %v230
  %v300 = vpop.f32.mrb[0].mxu0
  %v301 = vadd.f32 %v63, %v300
  %v302 = vpop.f32.mrb[0].mxu0
  %303 = vdwg.mxu0
  %v304 = vmax.f32 %v301, 0.0
  %v305 = vld [vmem:[%s0 + $0x8] sm:$0xff]
  %v306 = vld [vmem:[%s0 + $0x10] sm:$0xff]
  %309 = vrot.lane.b32.xlu0 %v305, 88
  %v310 = vpop.permute.xlu0 %309
  %311 = vrot.lane.b32.xlu0 %v306, 88
  %v312 = vpop.permute.xlu0 %311
  %vm313 = vcmask 719872
  %v314 = vsel %vm313, %v310, %v312
  %v316 = vsel %vm65, %v312, 0
  %318 = vmatprep.subr.mxu0 0.0
  %319 = vmatpush1.msra.mxu0 %v38
  %320 = vmatprep.subr.mxu0 0.0
  %321 = vmatpush1.msra.mxu0 %v39
  %322 = vmatprep.subr.mxu0 0.0
  %323 = vmatpush1.msra.mxu0 %v40
  %324 = vmatprep.subr.mxu0 0.0
  %325 = vmatpush1.msra.mxu0 %v41
  %326 = vmatprep.subr.mxu0 0.0
  %327 = vmatpush1.msra.mxu0 %v42
  %328 = vmatprep.subr.mxu0 0.0
  %329 = vmatpush1.msra.mxu0 %v43
  %330 = vmatprep.subr.mxu0 0.0
  %331 = vmatpush1.msra.mxu0 %v44
  %332 = vmatprep.subr.mxu0 0.0
  %333 = vmatpush1.msra.mxu0 %v45
  %334 = vmatprep.subr.mxu0 0.0
  %335 = vmatpush1.msra.mxu0 %v46
  %336 = vmatprep.subr.mxu0 0.0
  %337 = vmatpush1.msra.mxu0 %v47
  %338 = vmatprep.subr.mxu0 0.0
  %339 = vmatpush1.msra.mxu0 %v48
  %340 = vmatprep.subr.mxu0 0.0
  %341 = vmatpush1.msra.mxu0 %v49
  %342 = vmatprep.subr.mxu0 0.0
  %343 = vmatpush1.msra.mxu0 %v50
  %344 = vmatprep.subr.mxu0 0.0
  %345 = vmatpush1.msra.mxu0 %v51
  %346 = vmatprep.subr.mxu0 0.0
  %347 = vmatpush1.msra.mxu0 %v52
  %348 = vmatprep.subr.mxu0 0.0
  %349 = vmatpush1.msra.mxu0 %v53
  %350 = vmatprep.subr.mxu0 0.0
  %351 = vmatpush1.msra.mxu0 %v54
  %352 = vmatprep.subr.mxu0 0.0
  %353 = vmatpush1.msra.mxu0 %v71
  %354 = vmatprep.subr.mxu0 0.0
  %355 = vmatpush1.msra.mxu0 0.0
  %356 = vmatprep.subr.mxu0 0.0
  %357 = vmatpush1.msra.mxu0 0.0
  %358 = vmatprep.subr.mxu0 0.0
  %359 = vmatpush1.msra.mxu0 0.0
  %360 = vmatprep.subr.mxu0 0.0
  %361 = vmatpush1.msra.mxu0 0.0
  %362 = vmatprep.subr.mxu0 0.0
  %363 = vmatpush1.msra.mxu0 0.0
  %364 = vmatprep.subr.mxu0 0.0
  %365 = vmatpush1.msra.mxu0 0.0
  %366 = vmatprep.subr.mxu0 0.0
  %367 = vmatpush1.msra.mxu0 0.0
  %368 = vmatprep.subr.mxu0 0.0
  %369 = vmatpush1.msra.mxu0 0.0
  %370 = vmatprep.subr.mxu0 0.0
  %371 = vmatpush1.msra.mxu0 0.0
  %372 = vmatprep.subr.mxu0 0.0
  %373 = vmatpush1.msra.mxu0 0.0
  %374 = vmatprep.subr.mxu0 0.0
  %375 = vmatpush1.msra.mxu0 0.0
  %376 = vmatprep.subr.mxu0 0.0
  %377 = vmatpush1.msra.mxu0 0.0
  %378 = vmatprep.subr.mxu0 0.0
  %379 = vmatpush1.msra.mxu0 0.0
  %380 = vmatprep.subr.mxu0 0.0
  %381 = vmatpush1.msra.mxu0 0.0
  %382 = vmatprep.mubr.f32.mxu0 %v316
  %383 = vmatmul.mubr.f32.gmra.mrb[0].mxu0 %v314
  %v384 = vpop.f32.mrb[0].mxu0
  %v385 = vadd.f32 %v63, %v384
  %v386 = vpop.f32.mrb[0].mxu0
  %387 = vdwg.mxu0
  %v388 = vmax.f32 %v385, 0.0
  %389 = vrot.lane.b32.xlu0 %v305, 32
  %v390 = vpop.permute.xlu0 %389
  %391 = vrot.lane.b32.xlu0 %v306, 32
  %v392 = vpop.permute.xlu0 %391
  %vm393 = vcmask 261120
  %v394 = vsel %vm393, %v390, %v392
  %v396 = vsel %vm65, %v392, 0
  %398 = vmatprep.subr.mxu0 0.0
  %399 = vmatpush1.msra.mxu0 %v38
  %400 = vmatprep.subr.mxu0 0.0
  %401 = vmatpush1.msra.mxu0 %v39
  %402 = vmatprep.subr.mxu0 0.0
  %403 = vmatpush1.msra.mxu0 %v40
  %404 = vmatprep.subr.mxu0 0.0
  %405 = vmatpush1.msra.mxu0 %v41
  %406 = vmatprep.subr.mxu0 0.0
  %407 = vmatpush1.msra.mxu0 %v42
  %408 = vmatprep.subr.mxu0 0.0
  %409 = vmatpush1.msra.mxu0 %v43
  %410 = vmatprep.subr.mxu0 0.0
  %411 = vmatpush1.msra.mxu0 %v44
  %412 = vmatprep.subr.mxu0 0.0
  %413 = vmatpush1.msra.mxu0 %v45
  %414 = vmatprep.subr.mxu0 0.0
  %415 = vmatpush1.msra.mxu0 %v46
  %416 = vmatprep.subr.mxu0 0.0
  %417 = vmatpush1.msra.mxu0 %v47
  %418 = vmatprep.subr.mxu0 0.0
  %419 = vmatpush1.msra.mxu0 %v48
  %420 = vmatprep.subr.mxu0 0.0
  %421 = vmatpush1.msra.mxu0 %v49
  %422 = vmatprep.subr.mxu0 0.0
  %423 = vmatpush1.msra.mxu0 %v50
  %424 = vmatprep.subr.mxu0 0.0
  %425 = vmatpush1.msra.mxu0 %v51
  %426 = vmatprep.subr.mxu0 0.0
  %427 = vmatpush1.msra.mxu0 %v52
  %428 = vmatprep.subr.mxu0 0.0
  %429 = vmatpush1.msra.mxu0 %v53
  %430 = vmatprep.subr.mxu0 0.0
  %431 = vmatpush1.msra.mxu0 %v54
  %432 = vmatprep.subr.mxu0 0.0
  %433 = vmatpush1.msra.mxu0 %v71
  %434 = vmatprep.subr.mxu0 0.0
  %435 = vmatpush1.msra.mxu0 0.0
  %436 = vmatprep.subr.mxu0 0.0
  %437 = vmatpush1.msra.mxu0 0.0
  %438 = vmatprep.subr.mxu0 0.0
  %439 = vmatpush1.msra.mxu0 0.0
  %440 = vmatprep.subr.mxu0 0.0
  %441 = vmatpush1.msra.mxu0 0.0
  %442 = vmatprep.subr.mxu0 0.0
  %443 = vmatpush1.msra.mxu0 0.0
  %444 = vmatprep.subr.mxu0 0.0
  %445 = vmatpush1.msra.mxu0 0.0
  %446 = vmatprep.subr.mxu0 0.0
  %447 = vmatpush1.msra.mxu0 0.0
  %448 = vmatprep.subr.mxu0 0.0
  %449 = vmatpush1.msra.mxu0 0.0
  %450 = vmatprep.subr.mxu0 0.0
  %451 = vmatpush1.msra.mxu0 0.0
  %452 = vmatprep.subr.mxu0 0.0
  %453 = vmatpush1.msra.mxu0 0.0
  %454 = vmatprep.subr.mxu0 0.0
  %455 = vmatpush1.msra.mxu0 0.0
  %456 = vmatprep.subr.mxu0 0.0
  %457 = vmatpush1.msra.mxu0 0.0
  %458 = vmatprep.subr.mxu0 0.0
  %459 = vmatpush1.msra.mxu0 0.0
  %460 = vmatprep.subr.mxu0 0.0
  %461 = vmatpush1.msra.mxu0 0.0
  %462 = vmatprep.mubr.f32.mxu0 %v396
  %463 = vmatmul.mubr.f32.gmra.mrb[0].mxu0 %v394
  %v464 = vpop.f32.mrb[0].mxu0
  %v465 = vadd.f32 %v63, %v464
  %v466 = vpop.f32.mrb[0].mxu0
  %467 = vdwg.mxu0
  %v468 = vmax.f32 %v465, 0.0
  %v469 = vld [vmem:[%s0 + $0x10] sm:$0xff]
  %v470 = vld [vmem:[%s0 + $0x18] sm:$0xff]
  %473 = vrot.lane.b32.xlu0 %v469, 104
  %v474 = vpop.permute.xlu0 %473
  %475 = vrot.lane.b32.xlu0 %v470, 104
  %v476 = vpop.permute.xlu0 %475
  %vm477 = vcmask 850944
  %v478 = vsel %vm477, %v474, %v476
  %v480 = vsel %vm65, %v476, 0
  %482 = vmatprep.subr.mxu0 0.0
  %483 = vmatpush1.msra.mxu0 %v38
  %484 = vmatprep.subr.mxu0 0.0
  %485 = vmatpush1.msra.mxu0 %v39
  %486 = vmatprep.subr.mxu0 0.0
  %487 = vmatpush1.msra.mxu0 %v40
  %488 = vmatprep.subr.mxu0 0.0
  %489 = vmatpush1.msra.mxu0 %v41
  %490 = vmatprep.subr.mxu0 0.0
  %491 = vmatpush1.msra.mxu0 %v42
  %492 = vmatprep.subr.mxu0 0.0
  %493 = vmatpush1.msra.mxu0 %v43
  %494 = vmatprep.subr.mxu0 0.0
  %495 = vmatpush1.msra.mxu0 %v44
  %496 = vmatprep.subr.mxu0 0.0
  %497 = vmatpush1.msra.mxu0 %v45
  %498 = vmatprep.subr.mxu0 0.0
  %499 = vmatpush1.msra.mxu0 %v46
  %500 = vmatprep.subr.mxu0 0.0
  %501 = vmatpush1.msra.mxu0 %v47
  %502 = vmatprep.subr.mxu0 0.0
  %503 = vmatpush1.msra.mxu0 %v48
  %504 = vmatprep.subr.mxu0 0.0
  %505 = vmatpush1.msra.mxu0 %v49
  %506 = vmatprep.subr.mxu0 0.0
  %507 = vmatpush1.msra.mxu0 %v50
  %508 = vmatprep.subr.mxu0 0.0
  %509 = vmatpush1.msra.mxu0 %v51
  %510 = vmatprep.subr.mxu0 0.0
  %511 = vmatpush1.msra.mxu0 %v52
  %512 = vmatprep.subr.mxu0 0.0
  %513 = vmatpush1.msra.mxu0 %v53
  %514 = vmatprep.subr.mxu0 0.0
  %515 = vmatpush1.msra.mxu0 %v54
  %516 = vmatprep.subr.mxu0 0.0
  %517 = vmatpush1.msra.mxu0 %v71
  %518 = vmatprep.subr.mxu0 0.0
  %519 = vmatpush1.msra.mxu0 0.0
  %520 = vmatprep.subr.mxu0 0.0
  %521 = vmatpush1.msra.mxu0 0.0
  %522 = vmatprep.subr.mxu0 0.0
  %523 = vmatpush1.msra.mxu0 0.0
  %524 = vmatprep.subr.mxu0 0.0
  %525 = vmatpush1.msra.mxu0 0.0
  %526 = vmatprep.subr.mxu0 0.0
  %527 = vmatpush1.msra.mxu0 0.0
  %528 = vmatprep.subr.mxu0 0.0
  %529 = vmatpush1.msra.mxu0 0.0
  %530 = vmatprep.subr.mxu0 0.0
  %531 = vmatpush1.msra.mxu0 0.0
  %532 = vmatprep.subr.mxu0 0.0
  %533 = vmatpush1.msra.mxu0 0.0
  %534 = vmatprep.subr.mxu0 0.0
  %535 = vmatpush1.msra.mxu0 0.0
  %536 = vmatprep.subr.mxu0 0.0
  %537 = vmatpush1.msra.mxu0 0.0
  %538 = vmatprep.subr.mxu0 0.0
  %539 = vmatpush1.msra.mxu0 0.0
  %540 = vmatprep.subr.mxu0 0.0
  %541 = vmatpush1.msra.mxu0 0.0
  %542 = vmatprep.subr.mxu0 0.0
  %543 = vmatpush1.msra.mxu0 0.0
  %544 = vmatprep.subr.mxu0 0.0
  %545 = vmatpush1.msra.mxu0 0.0
  %546 = vmatprep.mubr.f32.mxu0 %v480
  %547 = vmatmul.mubr.f32.gmra.mrb[0].mxu0 %v478
  %v548 = vpop.f32.mrb[0].mxu0
  %v549 = vadd.f32 %v63, %v548
  %v550 = vpop.f32.mrb[0].mxu0
  %551 = vdwg.mxu0
  %v552 = vmax.f32 %v549, 0.0
  %553 = vrot.lane.b32.xlu0 %v469, 48
  %v554 = vpop.permute.xlu0 %553
  %555 = vrot.lane.b32.xlu0 %v470, 48
  %v556 = vpop.permute.xlu0 %555
  %vm557 = vcmask 392192
  %v558 = vsel %vm557, %v554, %v556
  %v560 = vsel %vm65, %v556, 0
  %562 = vmatprep.subr.mxu0 0.0
  %563 = vmatpush1.msra.mxu0 %v38
  %564 = vmatprep.subr.mxu0 0.0
  %565 = vmatpush1.msra.mxu0 %v39
  %566 = vmatprep.subr.mxu0 0.0
  %567 = vmatpush1.msra.mxu0 %v40
  %568 = vmatprep.subr.mxu0 0.0
  %569 = vmatpush1.msra.mxu0 %v41
  %570 = vmatprep.subr.mxu0 0.0
  %571 = vmatpush1.msra.mxu0 %v42
  %572 = vmatprep.subr.mxu0 0.0
  %573 = vmatpush1.msra.mxu0 %v43
  %574 = vmatprep.subr.mxu0 0.0
  %575 = vmatpush1.msra.mxu0 %v44
  %576 = vmatprep.subr.mxu0 0.0
  %577 = vmatpush1.msra.mxu0 %v45
  %578 = vmatprep.subr.mxu0 0.0
  %579 = vmatpush1.msra.mxu0 %v46
  %580 = vmatprep.subr.mxu0 0.0
  %581 = vmatpush1.msra.mxu0 %v47
  %582 = vmatprep.subr.mxu0 0.0
  %583 = vmatpush1.msra.mxu0 %v48
  %584 = vmatprep.subr.mxu0 0.0
  %585 = vmatpush1.msra.mxu0 %v49
  %586 = vmatprep.subr.mxu0 0.0
  %587 = vmatpush1.msra.mxu0 %v50
  %588 = vmatprep.subr.mxu0 0.0
  %589 = vmatpush1.msra.mxu0 %v51
  %590 = vmatprep.subr.mxu0 0.0
  %591 = vmatpush1.msra.mxu0 %v52
  %592 = vmatprep.subr.mxu0 0.0
  %593 = vmatpush1.msra.mxu0 %v53
  %594 = vmatprep.subr.mxu0 0.0
  %595 = vmatpush1.msra.mxu0 %v54
  %596 = vmatprep.subr.mxu0 0.0
  %597 = vmatpush1.msra.mxu0 %v71
  %598 = vmatprep.subr.mxu0 0.0
  %599 = vmatpush1.msra.mxu0 0.0
  %600 = vmatprep.subr.mxu0 0.0
  %601 = vmatpush1.msra.mxu0 0.0
  %602 = vmatprep.subr.mxu0 0.0
  %603 = vmatpush1.msra.mxu0 0.0
  %604 = vmatprep.subr.mxu0 0.0
  %605 = vmatpush1.msra.mxu0 0.0
  %606 = vmatprep.subr.mxu0 0.0
  %607 = vmatpush1.msra.mxu0 0.0
  %608 = vmatprep.subr.mxu0 0.0
  %609 = vmatpush1.msra.mxu0 0.0
  %610 = vmatprep.subr.mxu0 0.0
  %611 = vmatpush1.msra.mxu0 0.0
  %612 = vmatprep.subr.mxu0 0.0
  %613 = vmatpush1.msra.mxu0 0.0
  %614 = vmatprep.subr.mxu0 0.0
  %615 = vmatpush1.msra.mxu0 0.0
  %616 = vmatprep.subr.mxu0 0.0
  %617 = vmatpush1.msra.mxu0 0.0
  %618 = vmatprep.subr.mxu0 0.0
  %619 = vmatpush1.msra.mxu0 0.0
  %620 = vmatprep.subr.mxu0 0.0
  %621 = vmatpush1.msra.mxu0 0.0
  %622 = vmatprep.subr.mxu0 0.0
  %623 = vmatpush1.msra.mxu0 0.0
  %624 = vmatprep.subr.mxu0 0.0
  %625 = vmatpush1.msra.mxu0 0.0
  %626 = vmatprep.mubr.f32.mxu0 %v560
  %627 = vmatmul.mubr.f32.gmra.mrb[0].mxu0 %v558
  %v628 = vpop.f32.mrb[0].mxu0
  %v629 = vadd.f32 %v63, %v628
  %v630 = vpop.f32.mrb[0].mxu0
  %631 = vdwg.mxu0
  %v632 = vmax.f32 %v629, 0.0
  %v633 = vld [vmem:[%s0 + $0x18] sm:$0xff]
  %v634 = vld [vmem:[%s0 + $0x20] sm:$0xff]
  %637 = vrot.lane.b32.xlu0 %v633, 120
  %v638 = vpop.permute.xlu0 %637
  %639 = vrot.lane.b32.xlu0 %v634, 120
  %v640 = vpop.permute.xlu0 %639
  %vm641 = vcmask 982016
  %v642 = vsel %vm641, %v638, %v640
  %v644 = vsel %vm65, %v640, 0
  %646 = vmatprep.subr.mxu0 0.0
  %647 = vmatpush1.msra.mxu0 %v38
  %648 = vmatprep.subr.mxu0 0.0
  %649 = vmatpush1.msra.mxu0 %v39
  %650 = vmatprep.subr.mxu0 0.0
  %651 = vmatpush1.msra.mxu0 %v40
  %652 = vmatprep.subr.mxu0 0.0
  %653 = vmatpush1.msra.mxu0 %v41
  %654 = vmatprep.subr.mxu0 0.0
  %655 = vmatpush1.msra.mxu0 %v42
  %656 = vmatprep.subr.mxu0 0.0
  %657 = vmatpush1.msra.mxu0 %v43
  %658 = vmatprep.subr.mxu0 0.0
  %659 = vmatpush1.msra.mxu0 %v44
  %660 = vmatprep.subr.mxu0 0.0
  %661 = vmatpush1.msra.mxu0 %v45
  %662 = vmatprep.subr.mxu0 0.0
  %663 = vmatpush1.msra.mxu0 %v46
  %664 = vmatprep.subr.mxu0 0.0
  %665 = vmatpush1.msra.mxu0 %v47
  %666 = vmatprep.subr.mxu0 0.0
  %667 = vmatpush1.msra.mxu0 %v48
  %668 = vmatprep.subr.mxu0 0.0
  %669 = vmatpush1.msra.mxu0 %v49
  %670 = vmatprep.subr.mxu0 0.0
  %671 = vmatpush1.msra.mxu0 %v50
  %672 = vmatprep.subr.mxu0 0.0
  %673 = vmatpush1.msra.mxu0 %v51
  %674 = vmatprep.subr.mxu0 0.0
  %675 = vmatpush1.msra.mxu0 %v52
  %676 = vmatprep.subr.mxu0 0.0
  %677 = vmatpush1.msra.mxu0 %v53
  %678 = vmatprep.subr.mxu0 0.0
  %679 = vmatpush1.msra.mxu0 %v54
  %680 = vmatprep.subr.mxu0 0.0
  %681 = vmatpush1.msra.mxu0 %v71
  %682 = vmatprep.subr.mxu0 0.0
  %683 = vmatpush1.msra.mxu0 0.0
  %684 = vmatprep.subr.mxu0 0.0
  %685 = vmatpush1.msra.mxu0 0.0
  %686 = vmatprep.subr.mxu0 0.0
  %687 = vmatpush1.msra.mxu0 0.0
  %688 = vmatprep.subr.mxu0 0.0
  %689 = vmatpush1.msra.mxu0 0.0
  %690 = vmatprep.subr.mxu0 0.0
  %691 = vmatpush1.msra.mxu0 0.0
  %692 = vmatprep.subr.mxu0 0.0
  %693 = vmatpush1.msra.mxu0 0.0
  %694 = vmatprep.subr.mxu0 0.0
  %695 = vmatpush1.msra.mxu0 0.0
  %696 = vmatprep.subr.mxu0 0.0
  %697 = vmatpush1.msra.mxu0 0.0
  %698 = vmatprep.subr.mxu0 0.0
  %699 = vmatpush1.msra.mxu0 0.0
  %700 = vmatprep.subr.mxu0 0.0
  %701 = vmatpush1.msra.mxu0 0.0
  %702 = vmatprep.subr.mxu0 0.0
  %703 = vmatpush1.msra.mxu0 0.0
  %704 = vmatprep.subr.mxu0 0.0
  %705 = vmatpush1.msra.mxu0 0.0
  %706 = vmatprep.subr.mxu0 0.0
  %707 = vmatpush1.msra.mxu0 0.0
  %708 = vmatprep.subr.mxu0 0.0
  %709 = vmatpush1.msra.mxu0 0.0
  %710 = vmatprep.mubr.f32.mxu0 %v644
  %711 = vmatmul.mubr.f32.gmra.mrb[0].mxu0 %v642
  %v712 = vpop.f32.mrb[0].mxu0
  %v713 = vadd.f32 %v63, %v712
  %v714 = vpop.f32.mrb[0].mxu0
  %715 = vdwg.mxu0
  %v716 = vmax.f32 %v713, 0.0
  %717 = vrot.lane.b32.xlu0 %v633, 64
  %v718 = vpop.permute.xlu0 %717
  %719 = vrot.lane.b32.xlu0 %v634, 64
  %v720 = vpop.permute.xlu0 %719
  %vm721 = vcmask 523264
  %v722 = vsel %vm721, %v718, %v720
  %v724 = vsel %vm65, %v720, 0
  %726 = vmatprep.subr.mxu0 0.0
  %727 = vmatpush1.msra.mxu0 %v38
  %728 = vmatprep.subr.mxu0 0.0
  %729 = vmatpush1.msra.mxu0 %v39
  %730 = vmatprep.subr.mxu0 0.0
  %731 = vmatpush1.msra.mxu0 %v40
  %732 = vmatprep.subr.mxu0 0.0
  %733 = vmatpush1.msra.mxu0 %v41
  %734 = vmatprep.subr.mxu0 0.0
  %735 = vmatpush1.msra.mxu0 %v42
  %736 = vmatprep.subr.mxu0 0.0
  %737 = vmatpush1.msra.mxu0 %v43
  %738 = vmatprep.subr.mxu0 0.0
  %739 = vmatpush1.msra.mxu0 %v44
  %740 = vmatprep.subr.mxu0 0.0
  %741 = vmatpush1.msra.mxu0 %v45
  %742 = vmatprep.subr.mxu0 0.0
  %743 = vmatpush1.msra.mxu0 %v46
  %744 = vmatprep.subr.mxu0 0.0
  %745 = vmatpush1.msra.mxu0 %v47
  %746 = vmatprep.subr.mxu0 0.0
  %747 = vmatpush1.msra.mxu0 %v48
  %748 = vmatprep.subr.mxu0 0.0
  %749 = vmatpush1.msra.mxu0 %v49
  %750 = vmatprep.subr.mxu0 0.0
  %751 = vmatpush1.msra.mxu0 %v50
  %752 = vmatprep.subr.mxu0 0.0
  %753 = vmatpush1.msra.mxu0 %v51
  %754 = vmatprep.subr.mxu0 0.0
  %755 = vmatpush1.msra.mxu0 %v52
  %756 = vmatprep.subr.mxu0 0.0
  %757 = vmatpush1.msra.mxu0 %v53
  %758 = vmatprep.subr.mxu0 0.0
  %759 = vmatpush1.msra.mxu0 %v54
  %760 = vmatprep.subr.mxu0 0.0
  %761 = vmatpush1.msra.mxu0 %v71
  %762 = vmatprep.subr.mxu0 0.0
  %763 = vmatpush1.msra.mxu0 0.0
  %764 = vmatprep.subr.mxu0 0.0
  %765 = vmatpush1.msra.mxu0 0.0
  %766 = vmatprep.subr.mxu0 0.0
  %767 = vmatpush1.msra.mxu0 0.0
  %768 = vmatprep.subr.mxu0 0.0
  %769 = vmatpush1.msra.mxu0 0.0
  %770 = vmatprep.subr.mxu0 0.0
  %771 = vmatpush1.msra.mxu0 0.0
  %772 = vmatprep.subr.mxu0 0.0
  %773 = vmatpush1.msra.mxu0 0.0
  %774 = vmatprep.subr.mxu0 0.0
  %775 = vmatpush1.msra.mxu0 0.0
  %776 = vmatprep.subr.mxu0 0.0
  %777 = vmatpush1.msra.mxu0 0.0
  %778 = vmatprep.subr.mxu0 0.0
  %779 = vmatpush1.msra.mxu0 0.0
  %780 = vmatprep.subr.mxu0 0.0
  %781 = vmatpush1.msra.mxu0 0.0
  %782 = vmatprep.subr.mxu0 0.0
  %783 = vmatpush1.msra.mxu0 0.0
  %784 = vmatprep.subr.mxu0 0.0
  %785 = vmatpush1.msra.mxu0 0.0
  %786 = vmatprep.subr.mxu0 0.0
  %787 = vmatpush1.msra.mxu0 0.0
  %788 = vmatprep.subr.mxu0 0.0
  %789 = vmatpush1.msra.mxu0 0.0
  %790 = vmatprep.mubr.f32.mxu0 %v724
  %791 = vmatmul.mubr.f32.gmra.mrb[0].mxu0 %v722
  %v792 = vpop.f32.mrb[0].mxu0
  %v793 = vadd.f32 %v63, %v792
  %v794 = vpop.f32.mrb[0].mxu0
  %795 = vdwg.mxu0
  %v796 = vmax.f32 %v793, 0.0
  %v797 = vld [vmem:[%s0 + $0x18] sm:$0xff]
  %v798 = vld [vmem:[%s0 + $0x20] sm:$0xff]
  %v799 = vld [vmem:[%s0 + $0x28] sm:$0xff]
  %803 = vrot.lane.b32.xlu0 %v797, 8
  %v804 = vpop.permute.xlu0 %803
  %805 = vrot.lane.b32.xlu0 %v798, 8
  %v806 = vpop.permute.xlu0 %805
  %807 = vrot.lane.b32.xlu0 %v799, 8
  %v808 = vpop.permute.xlu0 %807
  %vm809 = vcmask 64512
  %v810 = vsel %vm809, %v804, %v806
  %v811 = vsel %vm809, %v806, %v808
  %v813 = vsel %vm65, %v811, 0
  %815 = vmatprep.subr.mxu0 0.0
  %816 = vmatpush1.msra.mxu0 %v38
  %817 = vmatprep.subr.mxu0 0.0
  %818 = vmatpush1.msra.mxu0 %v39
  %819 = vmatprep.subr.mxu0 0.0
  %820 = vmatpush1.msra.mxu0 %v40
  %821 = vmatprep.subr.mxu0 0.0
  %822 = vmatpush1.msra.mxu0 %v41
  %823 = vmatprep.subr.mxu0 0.0
  %824 = vmatpush1.msra.mxu0 %v42
  %825 = vmatprep.subr.mxu0 0.0
  %826 = vmatpush1.msra.mxu0 %v43
  %827 = vmatprep.subr.mxu0 0.0
  %828 = vmatpush1.msra.mxu0 %v44
  %829 = vmatprep.subr.mxu0 0.0
  %830 = vmatpush1.msra.mxu0 %v45
  %831 = vmatprep.subr.mxu0 0.0
  %832 = vmatpush1.msra.mxu0 %v46
  %833 = vmatprep.subr.mxu0 0.0
  %834 = vmatpush1.msra.mxu0 %v47
  %835 = vmatprep.subr.mxu0 0.0
  %836 = vmatpush1.msra.mxu0 %v48
  %837 = vmatprep.subr.mxu0 0.0
  %838 = vmatpush1.msra.mxu0 %v49
  %839 = vmatprep.subr.mxu0 0.0
  %840 = vmatpush1.msra.mxu0 %v50
  %841 = vmatprep.subr.mxu0 0.0
  %842 = vmatpush1.msra.mxu0 %v51
  %843 = vmatprep.subr.mxu0 0.0
  %844 = vmatpush1.msra.mxu0 %v52
  %845 = vmatprep.subr.mxu0 0.0
  %846 = vmatpush1.msra.mxu0 %v53
  %847 = vmatprep.subr.mxu0 0.0
  %848 = vmatpush1.msra.mxu0 %v54
  %849 = vmatprep.subr.mxu0 0.0
  %850 = vmatpush1.msra.mxu0 %v71
  %851 = vmatprep.subr.mxu0 0.0
  %852 = vmatpush1.msra.mxu0 0.0
  %853 = vmatprep.subr.mxu0 0.0
  %854 = vmatpush1.msra.mxu0 0.0
  %855 = vmatprep.subr.mxu0 0.0
  %856 = vmatpush1.msra.mxu0 0.0
  %857 = vmatprep.subr.mxu0 0.0
  %858 = vmatpush1.msra.mxu0 0.0
  %859 = vmatprep.subr.mxu0 0.0
  %860 = vmatpush1.msra.mxu0 0.0
  %861 = vmatprep.subr.mxu0 0.0
  %862 = vmatpush1.msra.mxu0 0.0
  %863 = vmatprep.subr.mxu0 0.0
  %864 = vmatpush1.msra.mxu0 0.0
  %865 = vmatprep.subr.mxu0 0.0
  %866 = vmatpush1.msra.mxu0 0.0
  %867 = vmatprep.subr.mxu0 0.0
  %868 = vmatpush1.msra.mxu0 0.0
  %869 = vmatprep.subr.mxu0 0.0
  %870 = vmatpush1.msra.mxu0 0.0
  %871 = vmatprep.subr.mxu0 0.0
  %872 = vmatpush1.msra.mxu0 0.0
  %873 = vmatprep.subr.mxu0 0.0
  %874 = vmatpush1.msra.mxu0 0.0
  %875 = vmatprep.subr.mxu0 0.0
  %876 = vmatpush1.msra.mxu0 0.0
  %877 = vmatprep.subr.mxu0 0.0
  %878 = vmatpush1.msra.mxu0 0.0
  %879 = vmatprep.mubr.f32.mxu0 %v813
  %880 = vmatmul.mubr.f32.gmra.mrb[0].mxu0 %v810
  %v881 = vpop.f32.mrb[0].mxu0
  %v882 = vadd.f32 %v63, %v881
  %v883 = vpop.f32.mrb[0].mxu0
  %884 = vdwg.mxu0
  %v885 = vmax.f32 %v882, 0.0
  %886 = vrot.lane.b32.xlu0 %v798, 80
  %v887 = vpop.permute.xlu0 %886
  %888 = vrot.lane.b32.xlu0 %v799, 80
  %v889 = vpop.permute.xlu0 %888
  %vm890 = vcmask 654336
  %v891 = vsel %vm890, %v887, %v889
  %v893 = vsel %vm65, %v889, 0
  %895 = vmatprep.subr.mxu0 0.0
  %896 = vmatpush1.msra.mxu0 %v38
  %897 = vmatprep.subr.mxu0 0.0
  %898 = vmatpush1.msra.mxu0 %v39
  %899 = vmatprep.subr.mxu0 0.0
  %900 = vmatpush1.msra.mxu0 %v40
  %901 = vmatprep.subr.mxu0 0.0
  %902 = vmatpush1.msra.mxu0 %v41
  %903 = vmatprep.subr.mxu0 0.0
  %904 = vmatpush1.msra.mxu0 %v42
  %905 = vmatprep.subr.mxu0 0.0
  %906 = vmatpush1.msra.mxu0 %v43
  %907 = vmatprep.subr.mxu0 0.0
  %908 = vmatpush1.msra.mxu0 %v44
  %909 = vmatprep.subr.mxu0 0.0
  %910 = vmatpush1.msra.mxu0 %v45
  %911 = vmatprep.subr.mxu0 0.0
  %912 = vmatpush1.msra.mxu0 %v46
  %913 = vmatprep.subr.mxu0 0.0
  %914 = vmatpush1.msra.mxu0 %v47
  %915 = vmatprep.subr.mxu0 0.0
  %916 = vmatpush1.msra.mxu0 %v48
  %917 = vmatprep.subr.mxu0 0.0
  %918 = vmatpush1.msra.mxu0 %v49
  %919 = vmatprep.subr.mxu0 0.0
  %920 = vmatpush1.msra.mxu0 %v50
  %921 = vmatprep.subr.mxu0 0.0
  %922 = vmatpush1.msra.mxu0 %v51
  %923 = vmatprep.subr.mxu0 0.0
  %924 = vmatpush1.msra.mxu0 %v52
  %925 = vmatprep.subr.mxu0 0.0
  %926 = vmatpush1.msra.mxu0 %v53
  %927 = vmatprep.subr.mxu0 0.0
  %928 = vmatpush1.msra.mxu0 %v54
  %929 = vmatprep.subr.mxu0 0.0
  %930 = vmatpush1.msra.mxu0 %v71
  %931 = vmatprep.subr.mxu0 0.0
  %932 = vmatpush1.msra.mxu0 0.0
  %933 = vmatprep.subr.mxu0 0.0
  %934 = vmatpush1.msra.mxu0 0.0
  %935 = vmatprep.subr.mxu0 0.0
  %936 = vmatpush1.msra.mxu0 0.0
  %937 = vmatprep.subr.mxu0 0.0
  %938 = vmatpush1.msra.mxu0 0.0
  %939 = vmatprep.subr.mxu0 0.0
  %940 = vmatpush1.msra.mxu0 0.0
  %941 = vmatprep.subr.mxu0 0.0
  %942 = vmatpush1.msra.mxu0 0.0
  %943 = vmatprep.subr.mxu0 0.0
  %944 = vmatpush1.msra.mxu0 0.0
  %945 = vmatprep.subr.mxu0 0.0
  %946 = vmatpush1.msra.mxu0 0.0
  %947 = vmatprep.subr.mxu0 0.0
  %948 = vmatpush1.msra.mxu0 0.0
  %949 = vmatprep.subr.mxu0 0.0
  %950 = vmatpush1.msra.mxu0 0.0
  %951 = vmatprep.subr.mxu0 0.0
  %952 = vmatpush1.msra.mxu0 0.0
  %953 = vmatprep.subr.mxu0 0.0
  %954 = vmatpush1.msra.mxu0 0.0
  %955 = vmatprep.subr.mxu0 0.0
  %956 = vmatpush1.msra.mxu0 0.0
  %957 = vmatprep.subr.mxu0 0.0
  %958 = vmatpush1.msra.mxu0 0.0
  %959 = vmatprep.mubr.f32.mxu0 %v893
  %960 = vmatmul.mubr.f32.gmra.mrb[0].mxu0 %v891
  %v961 = vpop.f32.mrb[0].mxu0
  %v962 = vadd.f32 %v63, %v961
  %v963 = vpop.f32.mrb[0].mxu0
  %964 = vdwg.mxu0
  %v965 = vmax.f32 %v962, 0.0
  %v966 = vld [vmem:[%s5] sm:$0x1]
  %v967 = vld [vmem:[%s4] sm:$0xff]
  %v968 = vld [vmem:[%s4 + $0x8] sm:$0xff]
  %v969 = vld [vmem:[%s4 + $0x10] sm:$0xff]
  %v970 = vld [vmem:[%s4 + $0x18] sm:$0xff]
  %v971 = vld [vmem:[%s4 + $0x20] sm:$0xff]
  %v972 = vld [vmem:[%s4 + $0x28] sm:$0xff]
  %v973 = vld [vmem:[%s4 + $0x30] sm:$0xff]
  %v974 = vld [vmem:[%s4 + $0x38] sm:$0xff]
  %v975 = vld [vmem:[%s4 + $0x40] sm:$0xff]
  %v976 = vld [vmem:[%s4 + $0x48] sm:$0xff]
  %v977 = vld [vmem:[%s4 + $0x50] sm:$0xff]
  %v978 = vld [vmem:[%s4 + $0x58] sm:$0xff]
  %s979 = scalar_lea.vmem %s4, 96
  %v980 = vld [vmem:[%s979] sm:$0xff]
  %v981 = vld [vmem:[%s979 + $0x8] sm:$0xff]
  %v982 = vld [vmem:[%s979 + $0x10] sm:$0xff]
  %v983 = vld [vmem:[%s979 + $0x18] sm:$0xff]
  %v984 = vld [vmem:[%s979 + $0x20] sm:$0xff]
  %v985 = vld [vmem:[%s979 + $0x28] sm:$0xff]
  %v986 = vld [vmem:[%s979 + $0x30] sm:$0xff]
  %v987 = vld [vmem:[%s979 + $0x38] sm:$0xff]
  %v988 = vld [vmem:[%s979 + $0x40] sm:$0xff]
  %v989 = vld [vmem:[%s979 + $0x48] sm:$0xff]
  %v990 = vld [vmem:[%s979 + $0x50] sm:$0xff]
  %v991 = vld [vmem:[%s979 + $0x58] sm:$0xff]
  %vm992 = vcmask 785408
  %v994 = vsel %vm992, %v224, 0
  %996 = vmatprep.subr.mxu0 0.0
  %997 = vmatpush1.msra.mxu0 %v980
  %998 = vmatprep.subr.mxu0 0.0
  %999 = vmatpush1.msra.mxu0 %v981
  %1000 = vmatprep.subr.mxu0 0.0
  %1001 = vmatpush1.msra.mxu0 %v982
  %1002 = vmatprep.subr.mxu0 0.0
  %1003 = vmatpush1.msra.mxu0 %v983
  %1004 = vmatprep.subr.mxu0 0.0
  %1005 = vmatpush1.msra.mxu0 %v984
  %1006 = vmatprep.subr.mxu0 0.0
  %1007 = vmatpush1.msra.mxu0 %v985
  %1008 = vmatprep.subr.mxu0 0.0
  %1009 = vmatpush1.msra.mxu0 %v986
  %1010 = vmatprep.subr.mxu0 0.0
  %1011 = vmatpush1.msra.mxu0 %v987
  %1012 = vmatprep.subr.mxu0 0.0
  %1013 = vmatpush1.msra.mxu0 %v988
  %1014 = vmatprep.subr.mxu0 0.0
  %1015 = vmatpush1.msra.mxu0 %v989
  %1016 = vmatprep.subr.mxu0 0.0
  %1017 = vmatpush1.msra.mxu0 %v990
  %1018 = vmatprep.subr.mxu0 0.0
  %1019 = vmatpush1.msra.mxu0 %v991
  %1020 = vmatprep.subr.mxu0 0.0
  %1021 = vmatpush1.msra.mxu0 0.0
  %1022 = vmatprep.subr.mxu0 0.0
  %1023 = vmatpush1.msra.mxu0 0.0
  %1024 = vmatprep.subr.mxu0 0.0
  %1025 = vmatpush1.msra.mxu0 0.0
  %1026 = vmatprep.subr.mxu0 0.0
  %1027 = vmatpush1.msra.mxu0 0.0
  %1028 = vmatprep.subr.mxu0 0.0
  %1029 = vmatpush1.msra.mxu0 0.0
  %1030 = vmatprep.subr.mxu0 0.0
  %1031 = vmatpush1.msra.mxu0 0.0
  %1032 = vmatprep.subr.mxu0 0.0
  %1033 = vmatpush1.msra.mxu0 0.0
  %1034 = vmatprep.subr.mxu0 0.0
  %1035 = vmatpush1.msra.mxu0 0.0
  %1036 = vmatprep.subr.mxu0 0.0
  %1037 = vmatpush1.msra.mxu0 0.0
  %1038 = vmatprep.subr.mxu0 0.0
  %1039 = vmatpush1.msra.mxu0 0.0
  %1040 = vmatprep.subr.mxu0 0.0
  %1041 = vmatpush1.msra.mxu0 0.0
  %1042 = vmatprep.subr.mxu0 0.0
  %1043 = vmatpush1.msra.mxu0 0.0
  %1044 = vmatprep.subr.mxu0 0.0
  %1045 = vmatpush1.msra.mxu0 0.0
  %1046 = vmatprep.subr.mxu0 0.0
  %1047 = vmatpush1.msra.mxu0 0.0
  %1048 = vmatprep.subr.mxu0 0.0
  %1049 = vmatpush1.msra.mxu0 0.0
  %1050 = vmatprep.subr.mxu0 0.0
  %1051 = vmatpush1.msra.mxu0 0.0
  %1052 = vmatprep.subr.mxu0 0.0
  %1053 = vmatpush1.msra.mxu0 0.0
  %1054 = vmatprep.subr.mxu0 0.0
  %1055 = vmatpush1.msra.mxu0 0.0
  %1056 = vmatprep.subr.mxu0 0.0
  %1057 = vmatpush1.msra.mxu0 0.0
  %1058 = vmatprep.subr.mxu0 0.0
  %1059 = vmatpush1.msra.mxu0 0.0
  %1060 = vmatprep.mubr.f32.mxu0 0.0
  %1061 = vmatmul.mubr.f32.gmra.mrb[0].mxu0 %v994
  %v1062 = vpop.f32.mrb[0].mxu0
  %v1063 = vadd.f32 0.0, %v1062
  %v1064 = vpop.f32.mrb[0].mxu0
  %1065 = vdwg.mxu0
  %v1067 = vsel %vm992, %v143, 0
  %1069 = vmatprep.subr.mxu0 0.0
  %1070 = vmatpush1.msra.mxu0 %v967
  %1071 = vmatprep.subr.mxu0 0.0
  %1072 = vmatpush1.msra.mxu0 %v968
  %1073 = vmatprep.subr.mxu0 0.0
  %1074 = vmatpush1.msra.mxu0 %v969
  %1075 = vmatprep.subr.mxu0 0.0
  %1076 = vmatpush1.msra.mxu0 %v970
  %1077 = vmatprep.subr.mxu0 0.0
  %1078 = vmatpush1.msra.mxu0 %v971
  %1079 = vmatprep.subr.mxu0 0.0
  %1080 = vmatpush1.msra.mxu0 %v972
  %1081 = vmatprep.subr.mxu0 0.0
  %1082 = vmatpush1.msra.mxu0 %v973
  %1083 = vmatprep.subr.mxu0 0.0
  %1084 = vmatpush1.msra.mxu0 %v974
  %1085 = vmatprep.subr.mxu0 0.0
  %1086 = vmatpush1.msra.mxu0 %v975
  %1087 = vmatprep.subr.mxu0 0.0
  %1088 = vmatpush1.msra.mxu0 %v976
  %1089 = vmatprep.subr.mxu0 0.0
  %1090 = vmatpush1.msra.mxu0 %v977
  %1091 = vmatprep.subr.mxu0 0.0
  %1092 = vmatpush1.msra.mxu0 %v978
  %1093 = vmatprep.subr.mxu0 0.0
  %1094 = vmatpush1.msra.mxu0 0.0
  %1095 = vmatprep.subr.mxu0 0.0
  %1096 = vmatpush1.msra.mxu0 0.0
  %1097 = vmatprep.subr.mxu0 0.0
  %1098 = vmatpush1.msra.mxu0 0.0
  %1099 = vmatprep.subr.mxu0 0.0
  %1100 = vmatpush1.msra.mxu0 0.0
  %1101 = vmatprep.subr.mxu0 0.0
  %1102 = vmatpush1.msra.mxu0 0.0
  %1103 = vmatprep.subr.mxu0 0.0
  %1104 = vmatpush1.msra.mxu0 0.0
  %1105 = vmatprep.subr.mxu0 0.0
  %1106 = vmatpush1.msra.mxu0 0.0
  %1107 = vmatprep.subr.mxu0 0.0
  %1108 = vmatpush1.msra.mxu0 0.0
  %1109 = vmatprep.subr.mxu0 0.0
  %1110 = vmatpush1.msra.mxu0 0.0
  %1111 = vmatprep.subr.mxu0 0.0
  %1112 = vmatpush1.msra.mxu0 0.0
  %1113 = vmatprep.subr.mxu0 0.0
  %1114 = vmatpush1.msra.mxu0 0.0
  %1115 = vmatprep.subr.mxu0 0.0
  %1116 = vmatpush1.msra.mxu0 0.0
  %1117 = vmatprep.subr.mxu0 0.0
  %1118 = vmatpush1.msra.mxu0 0.0
  %1119 = vmatprep.subr.mxu0 0.0
  %1120 = vmatpush1.msra.mxu0 0.0
  %1121 = vmatprep.subr.mxu0 0.0
  %1122 = vmatpush1.msra.mxu0 0.0
  %1123 = vmatprep.subr.mxu0 0.0
  %1124 = vmatpush1.msra.mxu0 0.0
  %1125 = vmatprep.subr.mxu0 0.0
  %1126 = vmatpush1.msra.mxu0 0.0
  %1127 = vmatprep.subr.mxu0 0.0
  %1128 = vmatpush1.msra.mxu0 0.0
  %1129 = vmatprep.subr.mxu0 0.0
  %1130 = vmatpush1.msra.mxu0 0.0
  %1131 = vmatprep.subr.mxu0 0.0
  %1132 = vmatpush1.msra.mxu0 0.0
  %1133 = vmatprep.mubr.f32.mxu0 0.0
  %1134 = vmatmul.mubr.f32.gmra.mrb[0].mxu0 %v1067
  %v1135 = vpop.f32.mrb[0].mxu0
  %v1136 = vadd.f32 %v1063, %v1135
  %v1137 = vpop.f32.mrb[0].mxu0
  %1138 = vdwg.mxu0
  %s1139 = scalar_lea.vmem %s4, 192
  %v1140 = vld [vmem:[%s1139] sm:$0xff]
  %v1141 = vld [vmem:[%s1139 + $0x8] sm:$0xff]
  %v1142 = vld [vmem:[%s1139 + $0x10] sm:$0xff]
  %v1143 = vld [vmem:[%s1139 + $0x18] sm:$0xff]
  %v1144 = vld [vmem:[%s1139 + $0x20] sm:$0xff]
  %v1145 = vld [vmem:[%s1139 + $0x28] sm:$0xff]
  %v1146 = vld [vmem:[%s1139 + $0x30] sm:$0xff]
  %v1147 = vld [vmem:[%s1139 + $0x38] sm:$0xff]
  %v1148 = vld [vmem:[%s1139 + $0x40] sm:$0xff]
  %v1149 = vld [vmem:[%s1139 + $0x48] sm:$0xff]
  %v1150 = vld [vmem:[%s1139 + $0x50] sm:$0xff]
  %v1151 = vld [vmem:[%s1139 + $0x58] sm:$0xff]
  %v1153 = vsel %vm992, %v304, 0
  %1155 = vmatprep.subr.mxu0 0.0
  %1156 = vmatpush1.msra.mxu0 %v1140
  %1157 = vmatprep.subr.mxu0 0.0
  %1158 = vmatpush1.msra.mxu0 %v1141
  %1159 = vmatprep.subr.mxu0 0.0
  %1160 = vmatpush1.msra.mxu0 %v1142
  %1161 = vmatprep.subr.mxu0 0.0
  %1162 = vmatpush1.msra.mxu0 %v1143
  %1163 = vmatprep.subr.mxu0 0.0
  %1164 = vmatpush1.msra.mxu0 %v1144
  %1165 = vmatprep.subr.mxu0 0.0
  %1166 = vmatpush1.msra.mxu0 %v1145
  %1167 = vmatprep.subr.mxu0 0.0
  %1168 = vmatpush1.msra.mxu0 %v1146
  %1169 = vmatprep.subr.mxu0 0.0
  %1170 = vmatpush1.msra.mxu0 %v1147
  %1171 = vmatprep.subr.mxu0 0.0
  %1172 = vmatpush1.msra.mxu0 %v1148
  %1173 = vmatprep.subr.mxu0 0.0
  %1174 = vmatpush1.msra.mxu0 %v1149
  %1175 = vmatprep.subr.mxu0 0.0
  %1176 = vmatpush1.msra.mxu0 %v1150
  %1177 = vmatprep.subr.mxu0 0.0
  %1178 = vmatpush1.msra.mxu0 %v1151
  %1179 = vmatprep.subr.mxu0 0.0
  %1180 = vmatpush1.msra.mxu0 0.0
  %1181 = vmatprep.subr.mxu0 0.0
  %1182 = vmatpush1.msra.mxu0 0.0
  %1183 = vmatprep.subr.mxu0 0.0
  %1184 = vmatpush1.msra.mxu0 0.0
  %1185 = vmatprep.subr.mxu0 0.0
  %1186 = vmatpush1.msra.mxu0 0.0
  %1187 = vmatprep.subr.mxu0 0.0
  %1188 = vmatpush1.msra.mxu0 0.0
  %1189 = vmatprep.subr.mxu0 0.0
  %1190 = vmatpush1.msra.mxu0 0.0
  %1191 = vmatprep.subr.mxu0 0.0
  %1192 = vmatpush1.msra.mxu0 0.0
  %1193 = vmatprep.subr.mxu0 0.0
  %1194 = vmatpush1.msra.mxu0 0.0
  %1195 = vmatprep.subr.mxu0 0.0
  %1196 = vmatpush1.msra.mxu0 0.0
  %1197 = vmatprep.subr.mxu0 0.0
  %1198 = vmatpush1.msra.mxu0 0.0
  %1199 = vmatprep.subr.mxu0 0.0
  %1200 = vmatpush1.msra.mxu0 0.0
  %1201 = vmatprep.subr.mxu0 0.0
  %1202 = vmatpush1.msra.mxu0 0.0
  %1203 = vmatprep.subr.mxu0 0.0
  %1204 = vmatpush1.msra.mxu0 0.0
  %1205 = vmatprep.subr.mxu0 0.0
  %1206 = vmatpush1.msra.mxu0 0.0
  %1207 = vmatprep.subr.mxu0 0.0
  %1208 = vmatpush1.msra.mxu0 0.0
  %1209 = vmatprep.subr.mxu0 0.0
  %1210 = vmatpush1.msra.mxu0 0.0
  %1211 = vmatprep.subr.mxu0 0.0
  %1212 = vmatpush1.msra.mxu0 0.0
  %1213 = vmatprep.subr.mxu0 0.0
  %1214 = vmatpush1.msra.mxu0 0.0
  %1215 = vmatprep.subr.mxu0 0.0
  %1216 = vmatpush1.msra.mxu0 0.0
  %1217 = vmatprep.subr.mxu0 0.0
  %1218 = vmatpush1.msra.mxu0 0.0
  %1219 = vmatprep.mubr.f32.mxu0 0.0
  %1220 = vmatmul.mubr.f32.gmra.mrb[0].mxu0 %v1153
  %v1221 = vpop.f32.mrb[0].mxu0
  %v1222 = vadd.f32 0.0, %v1221
  %v1223 = vpop.f32.mrb[0].mxu0
  %1224 = vdwg.mxu0
  %v1225 = vadd.f32 %v1136, %v1222
  %s1226 = scalar_lea.vmem %s4, 288
  %v1227 = vld [vmem:[%s1226] sm:$0xff]
  %v1228 = vld [vmem:[%s1226 + $0x8] sm:$0xff]
  %v1229 = vld [vmem:[%s1226 + $0x10] sm:$0xff]
  %v1230 = vld [vmem:[%s1226 + $0x18] sm:$0xff]
  %v1231 = vld [vmem:[%s1226 + $0x20] sm:$0xff]
  %v1232 = vld [vmem:[%s1226 + $0x28] sm:$0xff]
  %v1233 = vld [vmem:[%s1226 + $0x30] sm:$0xff]
  %v1234 = vld [vmem:[%s1226 + $0x38] sm:$0xff]
  %v1235 = vld [vmem:[%s1226 + $0x40] sm:$0xff]
  %v1236 = vld [vmem:[%s1226 + $0x48] sm:$0xff]
  %v1237 = vld [vmem:[%s1226 + $0x50] sm:$0xff]
  %v1238 = vld [vmem:[%s1226 + $0x58] sm:$0xff]
  %v1240 = vsel %vm992, %v388, 0
  %1242 = vmatprep.subr.mxu0 0.0
  %1243 = vmatpush1.msra.mxu0 %v1227
  %1244 = vmatprep.subr.mxu0 0.0
  %1245 = vmatpush1.msra.mxu0 %v1228
  %1246 = vmatprep.subr.mxu0 0.0
  %1247 = vmatpush1.msra.mxu0 %v1229
  %1248 = vmatprep.subr.mxu0 0.0
  %1249 = vmatpush1.msra.mxu0 %v1230
  %1250 = vmatprep.subr.mxu0 0.0
  %1251 = vmatpush1.msra.mxu0 %v1231
  %1252 = vmatprep.subr.mxu0 0.0
  %1253 = vmatpush1.msra.mxu0 %v1232
  %1254 = vmatprep.subr.mxu0 0.0
  %1255 = vmatpush1.msra.mxu0 %v1233
  %1256 = vmatprep.subr.mxu0 0.0
  %1257 = vmatpush1.msra.mxu0 %v1234
  %1258 = vmatprep.subr.mxu0 0.0
  %1259 = vmatpush1.msra.mxu0 %v1235
  %1260 = vmatprep.subr.mxu0 0.0
  %1261 = vmatpush1.msra.mxu0 %v1236
  %1262 = vmatprep.subr.mxu0 0.0
  %1263 = vmatpush1.msra.mxu0 %v1237
  %1264 = vmatprep.subr.mxu0 0.0
  %1265 = vmatpush1.msra.mxu0 %v1238
  %1266 = vmatprep.subr.mxu0 0.0
  %1267 = vmatpush1.msra.mxu0 0.0
  %1268 = vmatprep.subr.mxu0 0.0
  %1269 = vmatpush1.msra.mxu0 0.0
  %1270 = vmatprep.subr.mxu0 0.0
  %1271 = vmatpush1.msra.mxu0 0.0
  %1272 = vmatprep.subr.mxu0 0.0
  %1273 = vmatpush1.msra.mxu0 0.0
  %1274 = vmatprep.subr.mxu0 0.0
  %1275 = vmatpush1.msra.mxu0 0.0
  %1276 = vmatprep.subr.mxu0 0.0
  %1277 = vmatpush1.msra.mxu0 0.0
  %1278 = vmatprep.subr.mxu0 0.0
  %1279 = vmatpush1.msra.mxu0 0.0
  %1280 = vmatprep.subr.mxu0 0.0
  %1281 = vmatpush1.msra.mxu0 0.0
  %1282 = vmatprep.subr.mxu0 0.0
  %1283 = vmatpush1.msra.mxu0 0.0
  %1284 = vmatprep.subr.mxu0 0.0
  %1285 = vmatpush1.msra.mxu0 0.0
  %1286 = vmatprep.subr.mxu0 0.0
  %1287 = vmatpush1.msra.mxu0 0.0
  %1288 = vmatprep.subr.mxu0 0.0
  %1289 = vmatpush1.msra.mxu0 0.0
  %1290 = vmatprep.subr.mxu0 0.0
  %1291 = vmatpush1.msra.mxu0 0.0
  %1292 = vmatprep.subr.mxu0 0.0
  %1293 = vmatpush1.msra.mxu0 0.0
  %1294 = vmatprep.subr.mxu0 0.0
  %1295 = vmatpush1.msra.mxu0 0.0
  %1296 = vmatprep.subr.mxu0 0.0
  %1297 = vmatpush1.msra.mxu0 0.0
  %1298 = vmatprep.subr.mxu0 0.0
  %1299 = vmatpush1.msra.mxu0 0.0
  %1300 = vmatprep.subr.mxu0 0.0
  %1301 = vmatpush1.msra.mxu0 0.0
  %1302 = vmatprep.subr.mxu0 0.0
  %1303 = vmatpush1.msra.mxu0 0.0
  %1304 = vmatprep.subr.mxu0 0.0
  %1305 = vmatpush1.msra.mxu0 0.0
  %1306 = vmatprep.mubr.f32.mxu0 0.0
  %1307 = vmatmul.mubr.f32.gmra.mrb[0].mxu0 %v1240
  %v1308 = vpop.f32.mrb[0].mxu0
  %v1309 = vadd.f32 0.0, %v1308
  %v1310 = vpop.f32.mrb[0].mxu0
  %1311 = vdwg.mxu0
  %v1312 = vadd.f32 %v1225, %v1309
  %s1313 = scalar_lea.vmem %s4, 384
  %v1314 = vld [vmem:[%s1313] sm:$0xff]
  %v1315 = vld [vmem:[%s1313 + $0x8] sm:$0xff]
  %v1316 = vld [vmem:[%s1313 + $0x10] sm:$0xff]
  %v1317 = vld [vmem:[%s1313 + $0x18] sm:$0xff]
  %v1318 = vld [vmem:[%s1313 + $0x20] sm:$0xff]
  %v1319 = vld [vmem:[%s1313 + $0x28] sm:$0xff]
  %v1320 = vld [vmem:[%s1313 + $0x30] sm:$0xff]
  %v1321 = vld [vmem:[%s1313 + $0x38] sm:$0xff]
  %v1322 = vld [vmem:[%s1313 + $0x40] sm:$0xff]
  %v1323 = vld [vmem:[%s1313 + $0x48] sm:$0xff]
  %v1324 = vld [vmem:[%s1313 + $0x50] sm:$0xff]
  %v1325 = vld [vmem:[%s1313 + $0x58] sm:$0xff]
  %v1327 = vsel %vm992, %v468, 0
  %1329 = vmatprep.subr.mxu0 0.0
  %1330 = vmatpush1.msra.mxu0 %v1314
  %1331 = vmatprep.subr.mxu0 0.0
  %1332 = vmatpush1.msra.mxu0 %v1315
  %1333 = vmatprep.subr.mxu0 0.0
  %1334 = vmatpush1.msra.mxu0 %v1316
  %1335 = vmatprep.subr.mxu0 0.0
  %1336 = vmatpush1.msra.mxu0 %v1317
  %1337 = vmatprep.subr.mxu0 0.0
  %1338 = vmatpush1.msra.mxu0 %v1318
  %1339 = vmatprep.subr.mxu0 0.0
  %1340 = vmatpush1.msra.mxu0 %v1319
  %1341 = vmatprep.subr.mxu0 0.0
  %1342 = vmatpush1.msra.mxu0 %v1320
  %1343 = vmatprep.subr.mxu0 0.0
  %1344 = vmatpush1.msra.mxu0 %v1321
  %1345 = vmatprep.subr.mxu0 0.0
  %1346 = vmatpush1.msra.mxu0 %v1322
  %1347 = vmatprep.subr.mxu0 0.0
  %1348 = vmatpush1.msra.mxu0 %v1323
  %1349 = vmatprep.subr.mxu0 0.0
  %1350 = vmatpush1.msra.mxu0 %v1324
  %1351 = vmatprep.subr.mxu0 0.0
  %1352 = vmatpush1.msra.mxu0 %v1325
  %1353 = vmatprep.subr.mxu0 0.0
  %1354 = vmatpush1.msra.mxu0 0.0
  %1355 = vmatprep.subr.mxu0 0.0
  %1356 = vmatpush1.msra.mxu0 0.0
  %1357 = vmatprep.subr.mxu0 0.0
  %1358 = vmatpush1.msra.mxu0 0.0
  %1359 = vmatprep.subr.mxu0 0.0
  %1360 = vmatpush1.msra.mxu0 0.0
  %1361 = vmatprep.subr.mxu0 0.0
  %1362 = vmatpush1.msra.mxu0 0.0
  %1363 = vmatprep.subr.mxu0 0.0
  %1364 = vmatpush1.msra.mxu0 0.0
  %1365 = vmatprep.subr.mxu0 0.0
  %1366 = vmatpush1.msra.mxu0 0.0
  %1367 = vmatprep.subr.mxu0 0.0
  %1368 = vmatpush1.msra.mxu0 0.0
  %1369 = vmatprep.subr.mxu0 0.0
  %1370 = vmatpush1.msra.mxu0 0.0
  %1371 = vmatprep.subr.mxu0 0.0
  %1372 = vmatpush1.msra.mxu0 0.0
  %1373 = vmatprep.subr.mxu0 0.0
  %1374 = vmatpush1.msra.mxu0 0.0
  %1375 = vmatprep.subr.mxu0 0.0
  %1376 = vmatpush1.msra.mxu0 0.0
  %1377 = vmatprep.subr.mxu0 0.0
  %1378 = vmatpush1.msra.mxu0 0.0
  %1379 = vmatprep.subr.mxu0 0.0
  %1380 = vmatpush1.msra.mxu0 0.0
  %1381 = vmatprep.subr.mxu0 0.0
  %1382 = vmatpush1.msra.mxu0 0.0
  %1383 = vmatprep.subr.mxu0 0.0
  %1384 = vmatpush1.msra.mxu0 0.0
  %1385 = vmatprep.subr.mxu0 0.0
  %1386 = vmatpush1.msra.mxu0 0.0
  %1387 = vmatprep.subr.mxu0 0.0
  %1388 = vmatpush1.msra.mxu0 0.0
  %1389 = vmatprep.subr.mxu0 0.0
  %1390 = vmatpush1.msra.mxu0 0.0
  %1391 = vmatprep.subr.mxu0 0.0
  %1392 = vmatpush1.msra.mxu0 0.0
  %1393 = vmatprep.mubr.f32.mxu0 0.0
  %1394 = vmatmul.mubr.f32.gmra.mrb[0].mxu0 %v1327
  %v1395 = vpop.f32.mrb[0].mxu0
  %v1396 = vadd.f32 0.0, %v1395
  %v1397 = vpop.f32.mrb[0].mxu0
  %1398 = vdwg.mxu0
  %v1399 = vadd.f32 %v1312, %v1396
  %v1401 = vlaneseq
  %v1402 = vshrl.u32 %v1401, 7
  %v1403 = vsub.s32 0, %v1402
  %v1404 = vrot.slane %v966, %v1403
  %v1406 = vadd.f32 %v1399, %v1404
  %v1407 = vmax.f32 %v1406, 0.0
  %1408 = vmatprep.subr.mxu0 0.0
  %1409 = vmatpush1.msra.mxu0 %v980
  %1410 = vmatprep.subr.mxu0 0.0
  %1411 = vmatpush1.msra.mxu0 %v981
  %1412 = vmatprep.subr.mxu0 0.0
  %1413 = vmatpush1.msra.mxu0 %v982
  %1414 = vmatprep.subr.mxu0 0.0
  %1415 = vmatpush1.msra.mxu0 %v983
  %1416 = vmatprep.subr.mxu0 0.0
  %1417 = vmatpush1.msra.mxu0 %v984
  %1418 = vmatprep.subr.mxu0 0.0
  %1419 = vmatpush1.msra.mxu0 %v985
  %1420 = vmatprep.subr.mxu0 0.0
  %1421 = vmatpush1.msra.mxu0 %v986
  %1422 = vmatprep.subr.mxu0 0.0
  %1423 = vmatpush1.msra.mxu0 %v987
  %1424 = vmatprep.subr.mxu0 0.0
  %1425 = vmatpush1.msra.mxu0 %v988
  %1426 = vmatprep.subr.mxu0 0.0
  %1427 = vmatpush1.msra.mxu0 %v989
  %1428 = vmatprep.subr.mxu0 0.0
  %1429 = vmatpush1.msra.mxu0 %v990
  %1430 = vmatprep.subr.mxu0 0.0
  %1431 = vmatpush1.msra.mxu0 %v991
  %1432 = vmatprep.subr.mxu0 0.0
  %1433 = vmatpush1.msra.mxu0 0.0
  %1434 = vmatprep.subr.mxu0 0.0
  %1435 = vmatpush1.msra.mxu0 0.0
  %1436 = vmatprep.subr.mxu0 0.0
  %1437 = vmatpush1.msra.mxu0 0.0
  %1438 = vmatprep.subr.mxu0 0.0
  %1439 = vmatpush1.msra.mxu0 0.0
  %1440 = vmatprep.subr.mxu0 0.0
  %1441 = vmatpush1.msra.mxu0 0.0
  %1442 = vmatprep.subr.mxu0 0.0
  %1443 = vmatpush1.msra.mxu0 0.0
  %1444 = vmatprep.subr.mxu0 0.0
  %1445 = vmatpush1.msra.mxu0 0.0
  %1446 = vmatprep.subr.mxu0 0.0
  %1447 = vmatpush1.msra.mxu0 0.0
  %1448 = vmatprep.subr.mxu0 0.0
  %1449 = vmatpush1.msra.mxu0 0.0
  %1450 = vmatprep.subr.mxu0 0.0
  %1451 = vmatpush1.msra.mxu0 0.0
  %1452 = vmatprep.subr.mxu0 0.0
  %1453 = vmatpush1.msra.mxu0 0.0
  %1454 = vmatprep.subr.mxu0 0.0
  %1455 = vmatpush1.msra.mxu0 0.0
  %1456 = vmatprep.subr.mxu0 0.0
  %1457 = vmatpush1.msra.mxu0 0.0
  %1458 = vmatprep.subr.mxu0 0.0
  %1459 = vmatpush1.msra.mxu0 0.0
  %1460 = vmatprep.subr.mxu0 0.0
  %1461 = vmatpush1.msra.mxu0 0.0
  %1462 = vmatprep.subr.mxu0 0.0
  %1463 = vmatpush1.msra.mxu0 0.0
  %1464 = vmatprep.subr.mxu0 0.0
  %1465 = vmatpush1.msra.mxu0 0.0
  %1466 = vmatprep.subr.mxu0 0.0
  %1467 = vmatpush1.msra.mxu0 0.0
  %1468 = vmatprep.subr.mxu0 0.0
  %1469 = vmatpush1.msra.mxu0 0.0
  %1470 = vmatprep.subr.mxu0 0.0
  %1471 = vmatpush1.msra.mxu0 0.0
  %1472 = vmatprep.mubr.f32.mxu0 0.0
  %1473 = vmatmul.mubr.f32.gmra.mrb[0].mxu0 %v1240
  %v1474 = vpop.f32.mrb[0].mxu0
  %v1475 = vadd.f32 0.0, %v1474
  %v1476 = vpop.f32.mrb[0].mxu0
  %1477 = vdwg.mxu0
  %1478 = vmatprep.subr.mxu0 0.0
  %1479 = vmatpush1.msra.mxu0 %v967
  %1480 = vmatprep.subr.mxu0 0.0
  %1481 = vmatpush1.msra.mxu0 %v968
  %1482 = vmatprep.subr.mxu0 0.0
  %1483 = vmatpush1.msra.mxu0 %v969
  %1484 = vmatprep.subr.mxu0 0.0
  %1485 = vmatpush1.msra.mxu0 %v970
  %1486 = vmatprep.subr.mxu0 0.0
  %1487 = vmatpush1.msra.mxu0 %v971
  %1488 = vmatprep.subr.mxu0 0.0
  %1489 = vmatpush1.msra.mxu0 %v972
  %1490 = vmatprep.subr.mxu0 0.0
  %1491 = vmatpush1.msra.mxu0 %v973
  %1492 = vmatprep.subr.mxu0 0.0
  %1493 = vmatpush1.msra.mxu0 %v974
  %1494 = vmatprep.subr.mxu0 0.0
  %1495 = vmatpush1.msra.mxu0 %v975
  %1496 = vmatprep.subr.mxu0 0.0
  %1497 = vmatpush1.msra.mxu0 %v976
  %1498 = vmatprep.subr.mxu0 0.0
  %1499 = vmatpush1.msra.mxu0 %v977
  %1500 = vmatprep.subr.mxu0 0.0
  %1501 = vmatpush1.msra.mxu0 %v978
  %1502 = vmatprep.subr.mxu0 0.0
  %1503 = vmatpush1.msra.mxu0 0.0
  %1504 = vmatprep.subr.mxu0 0.0
  %1505 = vmatpush1.msra.mxu0 0.0
  %1506 = vmatprep.subr.mxu0 0.0
  %1507 = vmatpush1.msra.mxu0 0.0
  %1508 = vmatprep.subr.mxu0 0.0
  %1509 = vmatpush1.msra.mxu0 0.0
  %1510 = vmatprep.subr.mxu0 0.0
  %1511 = vmatpush1.msra.mxu0 0.0
  %1512 = vmatprep.subr.mxu0 0.0
  %1513 = vmatpush1.msra.mxu0 0.0
  %1514 = vmatprep.subr.mxu0 0.0
  %1515 = vmatpush1.msra.mxu0 0.0
  %1516 = vmatprep.subr.mxu0 0.0
  %1517 = vmatpush1.msra.mxu0 0.0
  %1518 = vmatprep.subr.mxu0 0.0
  %1519 = vmatpush1.msra.mxu0 0.0
  %1520 = vmatprep.subr.mxu0 0.0
  %1521 = vmatpush1.msra.mxu0 0.0
  %1522 = vmatprep.subr.mxu0 0.0
  %1523 = vmatpush1.msra.mxu0 0.0
  %1524 = vmatprep.subr.mxu0 0.0
  %1525 = vmatpush1.msra.mxu0 0.0
  %1526 = vmatprep.subr.mxu0 0.0
  %1527 = vmatpush1.msra.mxu0 0.0
  %1528 = vmatprep.subr.mxu0 0.0
  %1529 = vmatpush1.msra.mxu0 0.0
  %1530 = vmatprep.subr.mxu0 0.0
  %1531 = vmatpush1.msra.mxu0 0.0
  %1532 = vmatprep.subr.mxu0 0.0
  %1533 = vmatpush1.msra.mxu0 0.0
  %1534 = vmatprep.subr.mxu0 0.0
  %1535 = vmatpush1.msra.mxu0 0.0
  %1536 = vmatprep.subr.mxu0 0.0
  %1537 = vmatpush1.msra.mxu0 0.0
  %1538 = vmatprep.subr.mxu0 0.0
  %1539 = vmatpush1.msra.mxu0 0.0
  %1540 = vmatprep.subr.mxu0 0.0
  %1541 = vmatpush1.msra.mxu0 0.0
  %1542 = vmatprep.mubr.f32.mxu0 0.0
  %1543 = vmatmul.mubr.f32.gmra.mrb[0].mxu0 %v1153
  %v1544 = vpop.f32.mrb[0].mxu0
  %v1545 = vadd.f32 %v1475, %v1544
  %v1546 = vpop.f32.mrb[0].mxu0
  %1547 = vdwg.mxu0
  %1548 = vmatprep.subr.mxu0 0.0
  %1549 = vmatpush1.msra.mxu0 %v1140
  %1550 = vmatprep.subr.mxu0 0.0
  %1551 = vmatpush1.msra.mxu0 %v1141
  %1552 = vmatprep.subr.mxu0 0.0
  %1553 = vmatpush1.msra.mxu0 %v1142
  %1554 = vmatprep.subr.mxu0 0.0
  %1555 = vmatpush1.msra.mxu0 %v1143
  %1556 = vmatprep.subr.mxu0 0.0
  %1557 = vmatpush1.msra.mxu0 %v1144
  %1558 = vmatprep.subr.mxu0 0.0
  %1559 = vmatpush1.msra.mxu0 %v1145
  %1560 = vmatprep.subr.mxu0 0.0
  %1561 = vmatpush1.msra.mxu0 %v1146
  %1562 = vmatprep.subr.mxu0 0.0
  %1563 = vmatpush1.msra.mxu0 %v1147
  %1564 = vmatprep.subr.mxu0 0.0
  %1565 = vmatpush1.msra.mxu0 %v1148
  %1566 = vmatprep.subr.mxu0 0.0
  %1567 = vmatpush1.msra.mxu0 %v1149
  %1568 = vmatprep.subr.mxu0 0.0
  %1569 = vmatpush1.msra.mxu0 %v1150
  %1570 = vmatprep.subr.mxu0 0.0
  %1571 = vmatpush1.msra.mxu0 %v1151
  %1572 = vmatprep.subr.mxu0 0.0
  %1573 = vmatpush1.msra.mxu0 0.0
  %1574 = vmatprep.subr.mxu0 0.0
  %1575 = vmatpush1.msra.mxu0 0.0
  %1576 = vmatprep.subr.mxu0 0.0
  %1577 = vmatpush1.msra.mxu0 0.0
  %1578 = vmatprep.subr.mxu0 0.0
  %1579 = vmatpush1.msra.mxu0 0.0
  %1580 = vmatprep.subr.mxu0 0.0
  %1581 = vmatpush1.msra.mxu0 0.0
  %1582 = vmatprep.subr.mxu0 0.0
  %1583 = vmatpush1.msra.mxu0 0.0
  %1584 = vmatprep.subr.mxu0 0.0
  %1585 = vmatpush1.msra.mxu0 0.0
  %1586 = vmatprep.subr.mxu0 0.0
  %1587 = vmatpush1.msra.mxu0 0.0
  %1588 = vmatprep.subr.mxu0 0.0
  %1589 = vmatpush1.msra.mxu0 0.0
  %1590 = vmatprep.subr.mxu0 0.0
  %1591 = vmatpush1.msra.mxu0 0.0
  %1592 = vmatprep.subr.mxu0 0.0
  %1593 = vmatpush1.msra.mxu0 0.0
  %1594 = vmatprep.subr.mxu0 0.0
  %1595 = vmatpush1.msra.mxu0 0.0
  %1596 = vmatprep.subr.mxu0 0.0
  %1597 = vmatpush1.msra.mxu0 0.0
  %1598 = vmatprep.subr.mxu0 0.0
  %1599 = vmatpush1.msra.mxu0 0.0
  %1600 = vmatprep.subr.mxu0 0.0
  %1601 = vmatpush1.msra.mxu0 0.0
  %1602 = vmatprep.subr.mxu0 0.0
  %1603 = vmatpush1.msra.mxu0 0.0
  %1604 = vmatprep.subr.mxu0 0.0
  %1605 = vmatpush1.msra.mxu0 0.0
  %1606 = vmatprep.subr.mxu0 0.0
  %1607 = vmatpush1.msra.mxu0 0.0
  %1608 = vmatprep.subr.mxu0 0.0
  %1609 = vmatpush1.msra.mxu0 0.0
  %1610 = vmatprep.subr.mxu0 0.0
  %1611 = vmatpush1.msra.mxu0 0.0
  %1612 = vmatprep.mubr.f32.mxu0 0.0
  %1613 = vmatmul.mubr.f32.gmra.mrb[0].mxu0 %v1327
  %v1614 = vpop.f32.mrb[0].mxu0
  %v1615 = vadd.f32 0.0, %v1614
  %v1616 = vpop.f32.mrb[0].mxu0
  %1617 = vdwg.mxu0
  %v1618 = vadd.f32 %v1545, %v1615
  %v1620 = vsel %vm992, %v552, 0
  %1622 = vmatprep.subr.mxu0 0.0
  %1623 = vmatpush1.msra.mxu0 %v1227
  %1624 = vmatprep.subr.mxu0 0.0
  %1625 = vmatpush1.msra.mxu0 %v1228
  %1626 = vmatprep.subr.mxu0 0.0
  %1627 = vmatpush1.msra.mxu0 %v1229
  %1628 = vmatprep.subr.mxu0 0.0
  %1629 = vmatpush1.msra.mxu0 %v1230
  %1630 = vmatprep.subr.mxu0 0.0
  %1631 = vmatpush1.msra.mxu0 %v1231
  %1632 = vmatprep.subr.mxu0 0.0
  %1633 = vmatpush1.msra.mxu0 %v1232
  %1634 = vmatprep.subr.mxu0 0.0
  %1635 = vmatpush1.msra.mxu0 %v1233
  %1636 = vmatprep.subr.mxu0 0.0
  %1637 = vmatpush1.msra.mxu0 %v1234
  %1638 = vmatprep.subr.mxu0 0.0
  %1639 = vmatpush1.msra.mxu0 %v1235
  %1640 = vmatprep.subr.mxu0 0.0
  %1641 = vmatpush1.msra.mxu0 %v1236
  %1642 = vmatprep.subr.mxu0 0.0
  %1643 = vmatpush1.msra.mxu0 %v1237
  %1644 = vmatprep.subr.mxu0 0.0
  %1645 = vmatpush1.msra.mxu0 %v1238
  %1646 = vmatprep.subr.mxu0 0.0
  %1647 = vmatpush1.msra.mxu0 0.0
  %1648 = vmatprep.subr.mxu0 0.0
  %1649 = vmatpush1.msra.mxu0 0.0
  %1650 = vmatprep.subr.mxu0 0.0
  %1651 = vmatpush1.msra.mxu0 0.0
  %1652 = vmatprep.subr.mxu0 0.0
  %1653 = vmatpush1.msra.mxu0 0.0
  %1654 = vmatprep.subr.mxu0 0.0
  %1655 = vmatpush1.msra.mxu0 0.0
  %1656 = vmatprep.subr.mxu0 0.0
  %1657 = vmatpush1.msra.mxu0 0.0
  %1658 = vmatprep.subr.mxu0 0.0
  %1659 = vmatpush1.msra.mxu0 0.0
  %1660 = vmatprep.subr.mxu0 0.0
  %1661 = vmatpush1.msra.mxu0 0.0
  %1662 = vmatprep.subr.mxu0 0.0
  %1663 = vmatpush1.msra.mxu0 0.0
  %1664 = vmatprep.subr.mxu0 0.0
  %1665 = vmatpush1.msra.mxu0 0.0
  %1666 = vmatprep.subr.mxu0 0.0
  %1667 = vmatpush1.msra.mxu0 0.0
  %1668 = vmatprep.subr.mxu0 0.0
  %1669 = vmatpush1.msra.mxu0 0.0
  %1670 = vmatprep.subr.mxu0 0.0
  %1671 = vmatpush1.msra.mxu0 0.0
  %1672 = vmatprep.subr.mxu0 0.0
  %1673 = vmatpush1.msra.mxu0 0.0
  %1674 = vmatprep.subr.mxu0 0.0
  %1675 = vmatpush1.msra.mxu0 0.0
  %1676 = vmatprep.subr.mxu0 0.0
  %1677 = vmatpush1.msra.mxu0 0.0
  %1678 = vmatprep.subr.mxu0 0.0
  %1679 = vmatpush1.msra.mxu0 0.0
  %1680 = vmatprep.subr.mxu0 0.0
  %1681 = vmatpush1.msra.mxu0 0.0
  %1682 = vmatprep.subr.mxu0 0.0
  %1683 = vmatpush1.msra.mxu0 0.0
  %1684 = vmatprep.subr.mxu0 0.0
  %1685 = vmatpush1.msra.mxu0 0.0
  %1686 = vmatprep.mubr.f32.mxu0 0.0
  %1687 = vmatmul.mubr.f32.gmra.mrb[0].mxu0 %v1620
  %v1688 = vpop.f32.mrb[0].mxu0
  %v1689 = vadd.f32 0.0, %v1688
  %v1690 = vpop.f32.mrb[0].mxu0
  %1691 = vdwg.mxu0
  %v1692 = vadd.f32 %v1618, %v1689
  %v1694 = vsel %vm992, %v632, 0
  %1696 = vmatprep.subr.mxu0 0.0
  %1697 = vmatpush1.msra.mxu0 %v1314
  %1698 = vmatprep.subr.mxu0 0.0
  %1699 = vmatpush1.msra.mxu0 %v1315
  %1700 = vmatprep.subr.mxu0 0.0
  %1701 = vmatpush1.msra.mxu0 %v1316
  %1702 = vmatprep.subr.mxu0 0.0
  %1703 = vmatpush1.msra.mxu0 %v1317
  %1704 = vmatprep.subr.mxu0 0.0
  %1705 = vmatpush1.msra.mxu0 %v1318
  %1706 = vmatprep.subr.mxu0 0.0
  %1707 = vmatpush1.msra.mxu0 %v1319
  %1708 = vmatprep.subr.mxu0 0.0
  %1709 = vmatpush1.msra.mxu0 %v1320
  %1710 = vmatprep.subr.mxu0 0.0
  %1711 = vmatpush1.msra.mxu0 %v1321
  %1712 = vmatprep.subr.mxu0 0.0
  %1713 = vmatpush1.msra.mxu0 %v1322
  %1714 = vmatprep.subr.mxu0 0.0
  %1715 = vmatpush1.msra.mxu0 %v1323
  %1716 = vmatprep.subr.mxu0 0.0
  %1717 = vmatpush1.msra.mxu0 %v1324
  %1718 = vmatprep.subr.mxu0 0.0
  %1719 = vmatpush1.msra.mxu0 %v1325
  %1720 = vmatprep.subr.mxu0 0.0
  %1721 = vmatpush1.msra.mxu0 0.0
  %1722 = vmatprep.subr.mxu0 0.0
  %1723 = vmatpush1.msra.mxu0 0.0
  %1724 = vmatprep.subr.mxu0 0.0
  %1725 = vmatpush1.msra.mxu0 0.0
  %1726 = vmatprep.subr.mxu0 0.0
  %1727 = vmatpush1.msra.mxu0 0.0
  %1728 = vmatprep.subr.mxu0 0.0
  %1729 = vmatpush1.msra.mxu0 0.0
  %1730 = vmatprep.subr.mxu0 0.0
  %1731 = vmatpush1.msra.mxu0 0.0
  %1732 = vmatprep.subr.mxu0 0.0
  %1733 = vmatpush1.msra.mxu0 0.0
  %1734 = vmatprep.subr.mxu0 0.0
  %1735 = vmatpush1.msra.mxu0 0.0
  %1736 = vmatprep.subr.mxu0 0.0
  %1737 = vmatpush1.msra.mxu0 0.0
  %1738 = vmatprep.subr.mxu0 0.0
  %1739 = vmatpush1.msra.mxu0 0.0
  %1740 = vmatprep.subr.mxu0 0.0
  %1741 = vmatpush1.msra.mxu0 0.0
  %1742 = vmatprep.subr.mxu0 0.0
  %1743 = vmatpush1.msra.mxu0 0.0
  %1744 = vmatprep.subr.mxu0 0.0
  %1745 = vmatpush1.msra.mxu0 0.0
  %1746 = vmatprep.subr.mxu0 0.0
  %1747 = vmatpush1.msra.mxu0 0.0
  %1748 = vmatprep.subr.mxu0 0.0
  %1749 = vmatpush1.msra.mxu0 0.0
  %1750 = vmatprep.subr.mxu0 0.0
  %1751 = vmatpush1.msra.mxu0 0.0
  %1752 = vmatprep.subr.mxu0 0.0
  %1753 = vmatpush1.msra.mxu0 0.0
  %1754 = vmatprep.subr.mxu0 0.0
  %1755 = vmatpush1.msra.mxu0 0.0
  %1756 = vmatprep.subr.mxu0 0.0
  %1757 = vmatpush1.msra.mxu0 0.0
  %1758 = vmatprep.subr.mxu0 0.0
  %1759 = vmatpush1.msra.mxu0 0.0
  %1760 = vmatprep.mubr.f32.mxu0 0.0
  %1761 = vmatmul.mubr.f32.gmra.mrb[0].mxu0 %v1694
  %v1762 = vpop.f32.mrb[0].mxu0
  %v1763 = vadd.f32 0.0, %v1762
  %v1764 = vpop.f32.mrb[0].mxu0
  %1765 = vdwg.mxu0
  %v1766 = vadd.f32 %v1692, %v1763
  %v1767 = vadd.f32 %v1766, %v1404
  %v1768 = vmax.f32 %v1767, 0.0
  %1769 = vmatprep.subr.mxu0 0.0
  %1770 = vmatpush1.msra.mxu0 %v980
  %1771 = vmatprep.subr.mxu0 0.0
  %1772 = vmatpush1.msra.mxu0 %v981
  %1773 = vmatprep.subr.mxu0 0.0
  %1774 = vmatpush1.msra.mxu0 %v982
  %1775 = vmatprep.subr.mxu0 0.0
  %1776 = vmatpush1.msra.mxu0 %v983
  %1777 = vmatprep.subr.mxu0 0.0
  %1778 = vmatpush1.msra.mxu0 %v984
  %1779 = vmatprep.subr.mxu0 0.0
  %1780 = vmatpush1.msra.mxu0 %v985
  %1781 = vmatprep.subr.mxu0 0.0
  %1782 = vmatpush1.msra.mxu0 %v986
  %1783 = vmatprep.subr.mxu0 0.0
  %1784 = vmatpush1.msra.mxu0 %v987
  %1785 = vmatprep.subr.mxu0 0.0
  %1786 = vmatpush1.msra.mxu0 %v988
  %1787 = vmatprep.subr.mxu0 0.0
  %1788 = vmatpush1.msra.mxu0 %v989
  %1789 = vmatprep.subr.mxu0 0.0
  %1790 = vmatpush1.msra.mxu0 %v990
  %1791 = vmatprep.subr.mxu0 0.0
  %1792 = vmatpush1.msra.mxu0 %v991
  %1793 = vmatprep.subr.mxu0 0.0
  %1794 = vmatpush1.msra.mxu0 0.0
  %1795 = vmatprep.subr.mxu0 0.0
  %1796 = vmatpush1.msra.mxu0 0.0
  %1797 = vmatprep.subr.mxu0 0.0
  %1798 = vmatpush1.msra.mxu0 0.0
  %1799 = vmatprep.subr.mxu0 0.0
  %1800 = vmatpush1.msra.mxu0 0.0
  %1801 = vmatprep.subr.mxu0 0.0
  %1802 = vmatpush1.msra.mxu0 0.0
  %1803 = vmatprep.subr.mxu0 0.0
  %1804 = vmatpush1.msra.mxu0 0.0
  %1805 = vmatprep.subr.mxu0 0.0
  %1806 = vmatpush1.msra.mxu0 0.0
  %1807 = vmatprep.subr.mxu0 0.0
  %1808 = vmatpush1.msra.mxu0 0.0
  %1809 = vmatprep.subr.mxu0 0.0
  %1810 = vmatpush1.msra.mxu0 0.0
  %1811 = vmatprep.subr.mxu0 0.0
  %1812 = vmatpush1.msra.mxu0 0.0
  %1813 = vmatprep.subr.mxu0 0.0
  %1814 = vmatpush1.msra.mxu0 0.0
  %1815 = vmatprep.subr.mxu0 0.0
  %1816 = vmatpush1.msra.mxu0 0.0
  %1817 = vmatprep.subr.mxu0 0.0
  %1818 = vmatpush1.msra.mxu0 0.0
  %1819 = vmatprep.subr.mxu0 0.0
  %1820 = vmatpush1.msra.mxu0 0.0
  %1821 = vmatprep.subr.mxu0 0.0
  %1822 = vmatpush1.msra.mxu0 0.0
  %1823 = vmatprep.subr.mxu0 0.0
  %1824 = vmatpush1.msra.mxu0 0.0
  %1825 = vmatprep.subr.mxu0 0.0
  %1826 = vmatpush1.msra.mxu0 0.0
  %1827 = vmatprep.subr.mxu0 0.0
  %1828 = vmatpush1.msra.mxu0 0.0
  %1829 = vmatprep.subr.mxu0 0.0
  %1830 = vmatpush1.msra.mxu0 0.0
  %1831 = vmatprep.subr.mxu0 0.0
  %1832 = vmatpush1.msra.mxu0 0.0
  %1833 = vmatprep.mubr.f32.mxu0 0.0
  %1834 = vmatmul.mubr.f32.gmra.mrb[0].mxu0 %v1620
  %v1835 = vpop.f32.mrb[0].mxu0
  %v1836 = vadd.f32 0.0, %v1835
  %v1837 = vpop.f32.mrb[0].mxu0
  %1838 = vdwg.mxu0
  %1839 = vmatprep.subr.mxu0 0.0
  %1840 = vmatpush1.msra.mxu0 %v967
  %1841 = vmatprep.subr.mxu0 0.0
  %1842 = vmatpush1.msra.mxu0 %v968
  %1843 = vmatprep.subr.mxu0 0.0
  %1844 = vmatpush1.msra.mxu0 %v969
  %1845 = vmatprep.subr.mxu0 0.0
  %1846 = vmatpush1.msra.mxu0 %v970
  %1847 = vmatprep.subr.mxu0 0.0
  %1848 = vmatpush1.msra.mxu0 %v971
  %1849 = vmatprep.subr.mxu0 0.0
  %1850 = vmatpush1.msra.mxu0 %v972
  %1851 = vmatprep.subr.mxu0 0.0
  %1852 = vmatpush1.msra.mxu0 %v973
  %1853 = vmatprep.subr.mxu0 0.0
  %1854 = vmatpush1.msra.mxu0 %v974
  %1855 = vmatprep.subr.mxu0 0.0
  %1856 = vmatpush1.msra.mxu0 %v975
  %1857 = vmatprep.subr.mxu0 0.0
  %1858 = vmatpush1.msra.mxu0 %v976
  %1859 = vmatprep.subr.mxu0 0.0
  %1860 = vmatpush1.msra.mxu0 %v977
  %1861 = vmatprep.subr.mxu0 0.0
  %1862 = vmatpush1.msra.mxu0 %v978
  %1863 = vmatprep.subr.mxu0 0.0
  %1864 = vmatpush1.msra.mxu0 0.0
  %1865 = vmatprep.subr.mxu0 0.0
  %1866 = vmatpush1.msra.mxu0 0.0
  %1867 = vmatprep.subr.mxu0 0.0
  %1868 = vmatpush1.msra.mxu0 0.0
  %1869 = vmatprep.subr.mxu0 0.0
  %1870 = vmatpush1.msra.mxu0 0.0
  %1871 = vmatprep.subr.mxu0 0.0
  %1872 = vmatpush1.msra.mxu0 0.0
  %1873 = vmatprep.subr.mxu0 0.0
  %1874 = vmatpush1.msra.mxu0 0.0
  %1875 = vmatprep.subr.mxu0 0.0
  %1876 = vmatpush1.msra.mxu0 0.0
  %1877 = vmatprep.subr.mxu0 0.0
  %1878 = vmatpush1.msra.mxu0 0.0
  %1879 = vmatprep.subr.mxu0 0.0
  %1880 = vmatpush1.msra.mxu0 0.0
  %1881 = vmatprep.subr.mxu0 0.0
  %1882 = vmatpush1.msra.mxu0 0.0
  %1883 = vmatprep.subr.mxu0 0.0
  %1884 = vmatpush1.msra.mxu0 0.0
  %1885 = vmatprep.subr.mxu0 0.0
  %1886 = vmatpush1.msra.mxu0 0.0
  %1887 = vmatprep.subr.mxu0 0.0
  %1888 = vmatpush1.msra.mxu0 0.0
  %1889 = vmatprep.subr.mxu0 0.0
  %1890 = vmatpush1.msra.mxu0 0.0
  %1891 = vmatprep.subr.mxu0 0.0
  %1892 = vmatpush1.msra.mxu0 0.0
  %1893 = vmatprep.subr.mxu0 0.0
  %1894 = vmatpush1.msra.mxu0 0.0
  %1895 = vmatprep.subr.mxu0 0.0
  %1896 = vmatpush1.msra.mxu0 0.0
  %1897 = vmatprep.subr.mxu0 0.0
  %1898 = vmatpush1.msra.mxu0 0.0
  %1899 = vmatprep.subr.mxu0 0.0
  %1900 = vmatpush1.msra.mxu0 0.0
  %1901 = vmatprep.subr.mxu0 0.0
  %1902 = vmatpush1.msra.mxu0 0.0
  %1903 = vmatprep.mubr.f32.mxu0 0.0
  %1904 = vmatmul.mubr.f32.gmra.mrb[0].mxu0 %v1327
  %v1905 = vpop.f32.mrb[0].mxu0
  %v1906 = vadd.f32 %v1836, %v1905
  %v1907 = vpop.f32.mrb[0].mxu0
  %1908 = vdwg.mxu0
  %1909 = vmatprep.subr.mxu0 0.0
  %1910 = vmatpush1.msra.mxu0 %v1140
  %1911 = vmatprep.subr.mxu0 0.0
  %1912 = vmatpush1.msra.mxu0 %v1141
  %1913 = vmatprep.subr.mxu0 0.0
  %1914 = vmatpush1.msra.mxu0 %v1142
  %1915 = vmatprep.subr.mxu0 0.0
  %1916 = vmatpush1.msra.mxu0 %v1143
  %1917 = vmatprep.subr.mxu0 0.0
  %1918 = vmatpush1.msra.mxu0 %v1144
  %1919 = vmatprep.subr.mxu0 0.0
  %1920 = vmatpush1.msra.mxu0 %v1145
  %1921 = vmatprep.subr.mxu0 0.0
  %1922 = vmatpush1.msra.mxu0 %v1146
  %1923 = vmatprep.subr.mxu0 0.0
  %1924 = vmatpush1.msra.mxu0 %v1147
  %1925 = vmatprep.subr.mxu0 0.0
  %1926 = vmatpush1.msra.mxu0 %v1148
  %1927 = vmatprep.subr.mxu0 0.0
  %1928 = vmatpush1.msra.mxu0 %v1149
  %1929 = vmatprep.subr.mxu0 0.0
  %1930 = vmatpush1.msra.mxu0 %v1150
  %1931 = vmatprep.subr.mxu0 0.0
  %1932 = vmatpush1.msra.mxu0 %v1151
  %1933 = vmatprep.subr.mxu0 0.0
  %1934 = vmatpush1.msra.mxu0 0.0
  %1935 = vmatprep.subr.mxu0 0.0
  %1936 = vmatpush1.msra.mxu0 0.0
  %1937 = vmatprep.subr.mxu0 0.0
  %1938 = vmatpush1.msra.mxu0 0.0
  %1939 = vmatprep.subr.mxu0 0.0
  %1940 = vmatpush1.msra.mxu0 0.0
  %1941 = vmatprep.subr.mxu0 0.0
  %1942 = vmatpush1.msra.mxu0 0.0
  %1943 = vmatprep.subr.mxu0 0.0
  %1944 = vmatpush1.msra.mxu0 0.0
  %1945 = vmatprep.subr.mxu0 0.0
  %1946 = vmatpush1.msra.mxu0 0.0
  %1947 = vmatprep.subr.mxu0 0.0
  %1948 = vmatpush1.msra.mxu0 0.0
  %1949 = vmatprep.subr.mxu0 0.0
  %1950 = vmatpush1.msra.mxu0 0.0
  %1951 = vmatprep.subr.mxu0 0.0
  %1952 = vmatpush1.msra.mxu0 0.0
  %1953 = vmatprep.subr.mxu0 0.0
  %1954 = vmatpush1.msra.mxu0 0.0
  %1955 = vmatprep.subr.mxu0 0.0
  %1956 = vmatpush1.msra.mxu0 0.0
  %1957 = vmatprep.subr.mxu0 0.0
  %1958 = vmatpush1.msra.mxu0 0.0
  %1959 = vmatprep.subr.mxu0 0.0
  %1960 = vmatpush1.msra.mxu0 0.0
  %1961 = vmatprep.subr.mxu0 0.0
  %1962 = vmatpush1.msra.mxu0 0.0
  %1963 = vmatprep.subr.mxu0 0.0
  %1964 = vmatpush1.msra.mxu0 0.0
  %1965 = vmatprep.subr.mxu0 0.0
  %1966 = vmatpush1.msra.mxu0 0.0
  %1967 = vmatprep.subr.mxu0 0.0
  %1968 = vmatpush1.msra.mxu0 0.0
  %1969 = vmatprep.subr.mxu0 0.0
  %1970 = vmatpush1.msra.mxu0 0.0
  %1971 = vmatprep.subr.mxu0 0.0
  %1972 = vmatpush1.msra.mxu0 0.0
  %1973 = vmatprep.mubr.f32.mxu0 0.0
  %1974 = vmatmul.mubr.f32.gmra.mrb[0].mxu0 %v1694
  %v1975 = vpop.f32.mrb[0].mxu0
  %v1976 = vadd.f32 0.0, %v1975
  %v1977 = vpop.f32.mrb[0].mxu0
  %1978 = vdwg.mxu0
  %v1979 = vadd.f32 %v1906, %v1976
  %v1981 = vsel %vm992, %v716, 0
  %1983 = vmatprep.subr.mxu0 0.0
  %1984 = vmatpush1.msra.mxu0 %v1227
  %1985 = vmatprep.subr.mxu0 0.0
  %1986 = vmatpush1.msra.mxu0 %v1228
  %1987 = vmatprep.subr.mxu0 0.0
  %1988 = vmatpush1.msra.mxu0 %v1229
  %1989 = vmatprep.subr.mxu0 0.0
  %1990 = vmatpush1.msra.mxu0 %v1230
  %1991 = vmatprep.subr.mxu0 0.0
  %1992 = vmatpush1.msra.mxu0 %v1231
  %1993 = vmatprep.subr.mxu0 0.0
  %1994 = vmatpush1.msra.mxu0 %v1232
  %1995 = vmatprep.subr.mxu0 0.0
  %1996 = vmatpush1.msra.mxu0 %v1233
  %1997 = vmatprep.subr.mxu0 0.0
  %1998 = vmatpush1.msra.mxu0 %v1234
  %1999 = vmatprep.subr.mxu0 0.0
  %2000 = vmatpush1.msra.mxu0 %v1235
  %2001 = vmatprep.subr.mxu0 0.0
  %2002 = vmatpush1.msra.mxu0 %v1236
  %2003 = vmatprep.subr.mxu0 0.0
  %2004 = vmatpush1.msra.mxu0 %v1237
  %2005 = vmatprep.subr.mxu0 0.0
  %2006 = vmatpush1.msra.mxu0 %v1238
  %2007 = vmatprep.subr.mxu0 0.0
  %2008 = vmatpush1.msra.mxu0 0.0
  %2009 = vmatprep.subr.mxu0 0.0
  %2010 = vmatpush1.msra.mxu0 0.0
  %2011 = vmatprep.subr.mxu0 0.0
  %2012 = vmatpush1.msra.mxu0 0.0
  %2013 = vmatprep.subr.mxu0 0.0
  %2014 = vmatpush1.msra.mxu0 0.0
  %2015 = vmatprep.subr.mxu0 0.0
  %2016 = vmatpush1.msra.mxu0 0.0
  %2017 = vmatprep.subr.mxu0 0.0
  %2018 = vmatpush1.msra.mxu0 0.0
  %2019 = vmatprep.subr.mxu0 0.0
  %2020 = vmatpush1.msra.mxu0 0.0
  %2021 = vmatprep.subr.mxu0 0.0
  %2022 = vmatpush1.msra.mxu0 0.0
  %2023 = vmatprep.subr.mxu0 0.0
  %2024 = vmatpush1.msra.mxu0 0.0
  %2025 = vmatprep.subr.mxu0 0.0
  %2026 = vmatpush1.msra.mxu0 0.0
  %2027 = vmatprep.subr.mxu0 0.0
  %2028 = vmatpush1.msra.mxu0 0.0
  %2029 = vmatprep.subr.mxu0 0.0
  %2030 = vmatpush1.msra.mxu0 0.0
  %2031 = vmatprep.subr.mxu0 0.0
  %2032 = vmatpush1.msra.mxu0 0.0
  %2033 = vmatprep.subr.mxu0 0.0
  %2034 = vmatpush1.msra.mxu0 0.0
  %2035 = vmatprep.subr.mxu0 0.0
  %2036 = vmatpush1.msra.mxu0 0.0
  %2037 = vmatprep.subr.mxu0 0.0
  %2038 = vmatpush1.msra.mxu0 0.0
  %2039 = vmatprep.subr.mxu0 0.0
  %2040 = vmatpush1.msra.mxu0 0.0
  %2041 = vmatprep.subr.mxu0 0.0
  %2042 = vmatpush1.msra.mxu0 0.0
  %2043 = vmatprep.subr.mxu0 0.0
  %2044 = vmatpush1.msra.mxu0 0.0
  %2045 = vmatprep.subr.mxu0 0.0
  %2046 = vmatpush1.msra.mxu0 0.0
  %2047 = vmatprep.mubr.f32.mxu0 0.0
  %2048 = vmatmul.mubr.f32.gmra.mrb[0].mxu0 %v1981
  %v2049 = vpop.f32.mrb[0].mxu0
  %v2050 = vadd.f32 0.0, %v2049
  %v2051 = vpop.f32.mrb[0].mxu0
  %2052 = vdwg.mxu0
  %v2053 = vadd.f32 %v1979, %v2050
  %v2055 = vsel %vm992, %v796, 0
  %2057 = vmatprep.subr.mxu0 0.0
  %2058 = vmatpush1.msra.mxu0 %v1314
  %2059 = vmatprep.subr.mxu0 0.0
  %2060 = vmatpush1.msra.mxu0 %v1315
  %2061 = vmatprep.subr.mxu0 0.0
  %2062 = vmatpush1.msra.mxu0 %v1316
  %2063 = vmatprep.subr.mxu0 0.0
  %2064 = vmatpush1.msra.mxu0 %v1317
  %2065 = vmatprep.subr.mxu0 0.0
  %2066 = vmatpush1.msra.mxu0 %v1318
  %2067 = vmatprep.subr.mxu0 0.0
  %2068 = vmatpush1.msra.mxu0 %v1319
  %2069 = vmatprep.subr.mxu0 0.0
  %2070 = vmatpush1.msra.mxu0 %v1320
  %2071 = vmatprep.subr.mxu0 0.0
  %2072 = vmatpush1.msra.mxu0 %v1321
  %2073 = vmatprep.subr.mxu0 0.0
  %2074 = vmatpush1.msra.mxu0 %v1322
  %2075 = vmatprep.subr.mxu0 0.0
  %2076 = vmatpush1.msra.mxu0 %v1323
  %2077 = vmatprep.subr.mxu0 0.0
  %2078 = vmatpush1.msra.mxu0 %v1324
  %2079 = vmatprep.subr.mxu0 0.0
  %2080 = vmatpush1.msra.mxu0 %v1325
  %2081 = vmatprep.subr.mxu0 0.0
  %2082 = vmatpush1.msra.mxu0 0.0
  %2083 = vmatprep.subr.mxu0 0.0
  %2084 = vmatpush1.msra.mxu0 0.0
  %2085 = vmatprep.subr.mxu0 0.0
  %2086 = vmatpush1.msra.mxu0 0.0
  %2087 = vmatprep.subr.mxu0 0.0
  %2088 = vmatpush1.msra.mxu0 0.0
  %2089 = vmatprep.subr.mxu0 0.0
  %2090 = vmatpush1.msra.mxu0 0.0
  %2091 = vmatprep.subr.mxu0 0.0
  %2092 = vmatpush1.msra.mxu0 0.0
  %2093 = vmatprep.subr.mxu0 0.0
  %2094 = vmatpush1.msra.mxu0 0.0
  %2095 = vmatprep.subr.mxu0 0.0
  %2096 = vmatpush1.msra.mxu0 0.0
  %2097 = vmatprep.subr.mxu0 0.0
  %2098 = vmatpush1.msra.mxu0 0.0
  %2099 = vmatprep.subr.mxu0 0.0
  %2100 = vmatpush1.msra.mxu0 0.0
  %2101 = vmatprep.subr.mxu0 0.0
  %2102 = vmatpush1.msra.mxu0 0.0
  %2103 = vmatprep.subr.mxu0 0.0
  %2104 = vmatpush1.msra.mxu0 0.0
  %2105 = vmatprep.subr.mxu0 0.0
  %2106 = vmatpush1.msra.mxu0 0.0
  %2107 = vmatprep.subr.mxu0 0.0
  %2108 = vmatpush1.msra.mxu0 0.0
  %2109 = vmatprep.subr.mxu0 0.0
  %2110 = vmatpush1.msra.mxu0 0.0
  %2111 = vmatprep.subr.mxu0 0.0
  %2112 = vmatpush1.msra.mxu0 0.0
  %2113 = vmatprep.subr.mxu0 0.0
  %2114 = vmatpush1.msra.mxu0 0.0
  %2115 = vmatprep.subr.mxu0 0.0
  %2116 = vmatpush1.msra.mxu0 0.0
  %2117 = vmatprep.subr.mxu0 0.0
  %2118 = vmatpush1.msra.mxu0 0.0
  %2119 = vmatprep.subr.mxu0 0.0
  %2120 = vmatpush1.msra.mxu0 0.0
  %2121 = vmatprep.mubr.f32.mxu0 0.0
  %2122 = vmatmul.mubr.f32.gmra.mrb[0].mxu0 %v2055
  %v2123 = vpop.f32.mrb[0].mxu0
  %v2124 = vadd.f32 0.0, %v2123
  %v2125 = vpop.f32.mrb[0].mxu0
  %2126 = vdwg.mxu0
  %v2127 = vadd.f32 %v2053, %v2124
  %v2128 = vadd.f32 %v2127, %v1404
  %v2129 = vmax.f32 %v2128, 0.0
  %2130 = vmatprep.subr.mxu0 0.0
  %2131 = vmatpush1.msra.mxu0 %v980
  %2132 = vmatprep.subr.mxu0 0.0
  %2133 = vmatpush1.msra.mxu0 %v981
  %2134 = vmatprep.subr.mxu0 0.0
  %2135 = vmatpush1.msra.mxu0 %v982
  %2136 = vmatprep.subr.mxu0 0.0
  %2137 = vmatpush1.msra.mxu0 %v983
  %2138 = vmatprep.subr.mxu0 0.0
  %2139 = vmatpush1.msra.mxu0 %v984
  %2140 = vmatprep.subr.mxu0 0.0
  %2141 = vmatpush1.msra.mxu0 %v985
  %2142 = vmatprep.subr.mxu0 0.0
  %2143 = vmatpush1.msra.mxu0 %v986
  %2144 = vmatprep.subr.mxu0 0.0
  %2145 = vmatpush1.msra.mxu0 %v987
  %2146 = vmatprep.subr.mxu0 0.0
  %2147 = vmatpush1.msra.mxu0 %v988
  %2148 = vmatprep.subr.mxu0 0.0
  %2149 = vmatpush1.msra.mxu0 %v989
  %2150 = vmatprep.subr.mxu0 0.0
  %2151 = vmatpush1.msra.mxu0 %v990
  %2152 = vmatprep.subr.mxu0 0.0
  %2153 = vmatpush1.msra.mxu0 %v991
  %2154 = vmatprep.subr.mxu0 0.0
  %2155 = vmatpush1.msra.mxu0 0.0
  %2156 = vmatprep.subr.mxu0 0.0
  %2157 = vmatpush1.msra.mxu0 0.0
  %2158 = vmatprep.subr.mxu0 0.0
  %2159 = vmatpush1.msra.mxu0 0.0
  %2160 = vmatprep.subr.mxu0 0.0
  %2161 = vmatpush1.msra.mxu0 0.0
  %2162 = vmatprep.subr.mxu0 0.0
  %2163 = vmatpush1.msra.mxu0 0.0
  %2164 = vmatprep.subr.mxu0 0.0
  %2165 = vmatpush1.msra.mxu0 0.0
  %2166 = vmatprep.subr.mxu0 0.0
  %2167 = vmatpush1.msra.mxu0 0.0
  %2168 = vmatprep.subr.mxu0 0.0
  %2169 = vmatpush1.msra.mxu0 0.0
  %2170 = vmatprep.subr.mxu0 0.0
  %2171 = vmatpush1.msra.mxu0 0.0
  %2172 = vmatprep.subr.mxu0 0.0
  %2173 = vmatpush1.msra.mxu0 0.0
  %2174 = vmatprep.subr.mxu0 0.0
  %2175 = vmatpush1.msra.mxu0 0.0
  %2176 = vmatprep.subr.mxu0 0.0
  %2177 = vmatpush1.msra.mxu0 0.0
  %2178 = vmatprep.subr.mxu0 0.0
  %2179 = vmatpush1.msra.mxu0 0.0
  %2180 = vmatprep.subr.mxu0 0.0
  %2181 = vmatpush1.msra.mxu0 0.0
  %2182 = vmatprep.subr.mxu0 0.0
  %2183 = vmatpush1.msra.mxu0 0.0
  %2184 = vmatprep.subr.mxu0 0.0
  %2185 = vmatpush1.msra.mxu0 0.0
  %2186 = vmatprep.subr.mxu0 0.0
  %2187 = vmatpush1.msra.mxu0 0.0
  %2188 = vmatprep.subr.mxu0 0.0
  %2189 = vmatpush1.msra.mxu0 0.0
  %2190 = vmatprep.subr.mxu0 0.0
  %2191 = vmatpush1.msra.mxu0 0.0
  %2192 = vmatprep.subr.mxu0 0.0
  %2193 = vmatpush1.msra.mxu0 0.0
  %2194 = vmatprep.mubr.f32.mxu0 0.0
  %2195 = vmatmul.mubr.f32.gmra.mrb[0].mxu0 %v1981
  %v2196 = vpop.f32.mrb[0].mxu0
  %v2197 = vadd.f32 0.0, %v2196
  %v2198 = vpop.f32.mrb[0].mxu0
  %2199 = vdwg.mxu0
  %2200 = vmatprep.subr.mxu0 0.0
  %2201 = vmatpush1.msra.mxu0 %v967
  %2202 = vmatprep.subr.mxu0 0.0
  %2203 = vmatpush1.msra.mxu0 %v968
  %2204 = vmatprep.subr.mxu0 0.0
  %2205 = vmatpush1.msra.mxu0 %v969
  %2206 = vmatprep.subr.mxu0 0.0
  %2207 = vmatpush1.msra.mxu0 %v970
  %2208 = vmatprep.subr.mxu0 0.0
  %2209 = vmatpush1.msra.mxu0 %v971
  %2210 = vmatprep.subr.mxu0 0.0
  %2211 = vmatpush1.msra.mxu0 %v972
  %2212 = vmatprep.subr.mxu0 0.0
  %2213 = vmatpush1.msra.mxu0 %v973
  %2214 = vmatprep.subr.mxu0 0.0
  %2215 = vmatpush1.msra.mxu0 %v974
  %2216 = vmatprep.subr.mxu0 0.0
  %2217 = vmatpush1.msra.mxu0 %v975
  %2218 = vmatprep.subr.mxu0 0.0
  %2219 = vmatpush1.msra.mxu0 %v976
  %2220 = vmatprep.subr.mxu0 0.0
  %2221 = vmatpush1.msra.mxu0 %v977
  %2222 = vmatprep.subr.mxu0 0.0
  %2223 = vmatpush1.msra.mxu0 %v978
  %2224 = vmatprep.subr.mxu0 0.0
  %2225 = vmatpush1.msra.mxu0 0.0
  %2226 = vmatprep.subr.mxu0 0.0
  %2227 = vmatpush1.msra.mxu0 0.0
  %2228 = vmatprep.subr.mxu0 0.0
  %2229 = vmatpush1.msra.mxu0 0.0
  %2230 = vmatprep.subr.mxu0 0.0
  %2231 = vmatpush1.msra.mxu0 0.0
  %2232 = vmatprep.subr.mxu0 0.0
  %2233 = vmatpush1.msra.mxu0 0.0
  %2234 = vmatprep.subr.mxu0 0.0
  %2235 = vmatpush1.msra.mxu0 0.0
  %2236 = vmatprep.subr.mxu0 0.0
  %2237 = vmatpush1.msra.mxu0 0.0
  %2238 = vmatprep.subr.mxu0 0.0
  %2239 = vmatpush1.msra.mxu0 0.0
  %2240 = vmatprep.subr.mxu0 0.0
  %2241 = vmatpush1.msra.mxu0 0.0
  %2242 = vmatprep.subr.mxu0 0.0
  %2243 = vmatpush1.msra.mxu0 0.0
  %2244 = vmatprep.subr.mxu0 0.0
  %2245 = vmatpush1.msra.mxu0 0.0
  %2246 = vmatprep.subr.mxu0 0.0
  %2247 = vmatpush1.msra.mxu0 0.0
  %2248 = vmatprep.subr.mxu0 0.0
  %2249 = vmatpush1.msra.mxu0 0.0
  %2250 = vmatprep.subr.mxu0 0.0
  %2251 = vmatpush1.msra.mxu0 0.0
  %2252 = vmatprep.subr.mxu0 0.0
  %2253 = vmatpush1.msra.mxu0 0.0
  %2254 = vmatprep.subr.mxu0 0.0
  %2255 = vmatpush1.msra.mxu0 0.0
  %2256 = vmatprep.subr.mxu0 0.0
  %2257 = vmatpush1.msra.mxu0 0.0
  %2258 = vmatprep.subr.mxu0 0.0
  %2259 = vmatpush1.msra.mxu0 0.0
  %2260 = vmatprep.subr.mxu0 0.0
  %2261 = vmatpush1.msra.mxu0 0.0
  %2262 = vmatprep.subr.mxu0 0.0
  %2263 = vmatpush1.msra.mxu0 0.0
  %2264 = vmatprep.mubr.f32.mxu0 0.0
  %2265 = vmatmul.mubr.f32.gmra.mrb[0].mxu0 %v1694
  %v2266 = vpop.f32.mrb[0].mxu0
  %v2267 = vadd.f32 %v2197, %v2266
  %v2268 = vpop.f32.mrb[0].mxu0
  %2269 = vdwg.mxu0
  %2270 = vmatprep.subr.mxu0 0.0
  %2271 = vmatpush1.msra.mxu0 %v1140
  %2272 = vmatprep.subr.mxu0 0.0
  %2273 = vmatpush1.msra.mxu0 %v1141
  %2274 = vmatprep.subr.mxu0 0.0
  %2275 = vmatpush1.msra.mxu0 %v1142
  %2276 = vmatprep.subr.mxu0 0.0
  %2277 = vmatpush1.msra.mxu0 %v1143
  %2278 = vmatprep.subr.mxu0 0.0
  %2279 = vmatpush1.msra.mxu0 %v1144
  %2280 = vmatprep.subr.mxu0 0.0
  %2281 = vmatpush1.msra.mxu0 %v1145
  %2282 = vmatprep.subr.mxu0 0.0
  %2283 = vmatpush1.msra.mxu0 %v1146
  %2284 = vmatprep.subr.mxu0 0.0
  %2285 = vmatpush1.msra.mxu0 %v1147
  %2286 = vmatprep.subr.mxu0 0.0
  %2287 = vmatpush1.msra.mxu0 %v1148
  %2288 = vmatprep.subr.mxu0 0.0
  %2289 = vmatpush1.msra.mxu0 %v1149
  %2290 = vmatprep.subr.mxu0 0.0
  %2291 = vmatpush1.msra.mxu0 %v1150
  %2292 = vmatprep.subr.mxu0 0.0
  %2293 = vmatpush1.msra.mxu0 %v1151
  %2294 = vmatprep.subr.mxu0 0.0
  %2295 = vmatpush1.msra.mxu0 0.0
  %2296 = vmatprep.subr.mxu0 0.0
  %2297 = vmatpush1.msra.mxu0 0.0
  %2298 = vmatprep.subr.mxu0 0.0
  %2299 = vmatpush1.msra.mxu0 0.0
  %2300 = vmatprep.subr.mxu0 0.0
  %2301 = vmatpush1.msra.mxu0 0.0
  %2302 = vmatprep.subr.mxu0 0.0
  %2303 = vmatpush1.msra.mxu0 0.0
  %2304 = vmatprep.subr.mxu0 0.0
  %2305 = vmatpush1.msra.mxu0 0.0
  %2306 = vmatprep.subr.mxu0 0.0
  %2307 = vmatpush1.msra.mxu0 0.0
  %2308 = vmatprep.subr.mxu0 0.0
  %2309 = vmatpush1.msra.mxu0 0.0
  %2310 = vmatprep.subr.mxu0 0.0
  %2311 = vmatpush1.msra.mxu0 0.0
  %2312 = vmatprep.subr.mxu0 0.0
  %2313 = vmatpush1.msra.mxu0 0.0
  %2314 = vmatprep.subr.mxu0 0.0
  %2315 = vmatpush1.msra.mxu0 0.0
  %2316 = vmatprep.subr.mxu0 0.0
  %2317 = vmatpush1.msra.mxu0 0.0
  %2318 = vmatprep.subr.mxu0 0.0
  %2319 = vmatpush1.msra.mxu0 0.0
  %2320 = vmatprep.subr.mxu0 0.0
  %2321 = vmatpush1.msra.mxu0 0.0
  %2322 = vmatprep.subr.mxu0 0.0
  %2323 = vmatpush1.msra.mxu0 0.0
  %2324 = vmatprep.subr.mxu0 0.0
  %2325 = vmatpush1.msra.mxu0 0.0
  %2326 = vmatprep.subr.mxu0 0.0
  %2327 = vmatpush1.msra.mxu0 0.0
  %2328 = vmatprep.subr.mxu0 0.0
  %2329 = vmatpush1.msra.mxu0 0.0
  %2330 = vmatprep.subr.mxu0 0.0
  %2331 = vmatpush1.msra.mxu0 0.0
  %2332 = vmatprep.subr.mxu0 0.0
  %2333 = vmatpush1.msra.mxu0 0.0
  %2334 = vmatprep.mubr.f32.mxu0 0.0
  %2335 = vmatmul.mubr.f32.gmra.mrb[0].mxu0 %v2055
  %v2336 = vpop.f32.mrb[0].mxu0
  %v2337 = vadd.f32 0.0, %v2336
  %v2338 = vpop.f32.mrb[0].mxu0
  %2339 = vdwg.mxu0
  %v2340 = vadd.f32 %v2267, %v2337
  %v2342 = vsel %vm992, %v885, 0
  %2344 = vmatprep.subr.mxu0 0.0
  %2345 = vmatpush1.msra.mxu0 %v1227
  %2346 = vmatprep.subr.mxu0 0.0
  %2347 = vmatpush1.msra.mxu0 %v1228
  %2348 = vmatprep.subr.mxu0 0.0
  %2349 = vmatpush1.msra.mxu0 %v1229
  %2350 = vmatprep.subr.mxu0 0.0
  %2351 = vmatpush1.msra.mxu0 %v1230
  %2352 = vmatprep.subr.mxu0 0.0
  %2353 = vmatpush1.msra.mxu0 %v1231
  %2354 = vmatprep.subr.mxu0 0.0
  %2355 = vmatpush1.msra.mxu0 %v1232
  %2356 = vmatprep.subr.mxu0 0.0
  %2357 = vmatpush1.msra.mxu0 %v1233
  %2358 = vmatprep.subr.mxu0 0.0
  %2359 = vmatpush1.msra.mxu0 %v1234
  %2360 = vmatprep.subr.mxu0 0.0
  %2361 = vmatpush1.msra.mxu0 %v1235
  %2362 = vmatprep.subr.mxu0 0.0
  %2363 = vmatpush1.msra.mxu0 %v1236
  %2364 = vmatprep.subr.mxu0 0.0
  %2365 = vmatpush1.msra.mxu0 %v1237
  %2366 = vmatprep.subr.mxu0 0.0
  %2367 = vmatpush1.msra.mxu0 %v1238
  %2368 = vmatprep.subr.mxu0 0.0
  %2369 = vmatpush1.msra.mxu0 0.0
  %2370 = vmatprep.subr.mxu0 0.0
  %2371 = vmatpush1.msra.mxu0 0.0
  %2372 = vmatprep.subr.mxu0 0.0
  %2373 = vmatpush1.msra.mxu0 0.0
  %2374 = vmatprep.subr.mxu0 0.0
  %2375 = vmatpush1.msra.mxu0 0.0
  %2376 = vmatprep.subr.mxu0 0.0
  %2377 = vmatpush1.msra.mxu0 0.0
  %2378 = vmatprep.subr.mxu0 0.0
  %2379 = vmatpush1.msra.mxu0 0.0
  %2380 = vmatprep.subr.mxu0 0.0
  %2381 = vmatpush1.msra.mxu0 0.0
  %2382 = vmatprep.subr.mxu0 0.0
  %2383 = vmatpush1.msra.mxu0 0.0
  %2384 = vmatprep.subr.mxu0 0.0
  %2385 = vmatpush1.msra.mxu0 0.0
  %2386 = vmatprep.subr.mxu0 0.0
  %2387 = vmatpush1.msra.mxu0 0.0
  %2388 = vmatprep.subr.mxu0 0.0
  %2389 = vmatpush1.msra.mxu0 0.0
  %2390 = vmatprep.subr.mxu0 0.0
  %2391 = vmatpush1.msra.mxu0 0.0
  %2392 = vmatprep.subr.mxu0 0.0
  %2393 = vmatpush1.msra.mxu0 0.0
  %2394 = vmatprep.subr.mxu0 0.0
  %2395 = vmatpush1.msra.mxu0 0.0
  %2396 = vmatprep.subr.mxu0 0.0
  %2397 = vmatpush1.msra.mxu0 0.0
  %2398 = vmatprep.subr.mxu0 0.0
  %2399 = vmatpush1.msra.mxu0 0.0
  %2400 = vmatprep.subr.mxu0 0.0
  %2401 = vmatpush1.msra.mxu0 0.0
  %2402 = vmatprep.subr.mxu0 0.0
  %2403 = vmatpush1.msra.mxu0 0.0
  %2404 = vmatprep.subr.mxu0 0.0
  %2405 = vmatpush1.msra.mxu0 0.0
  %2406 = vmatprep.subr.mxu0 0.0
  %2407 = vmatpush1.msra.mxu0 0.0
  %2408 = vmatprep.mubr.f32.mxu0 0.0
  %2409 = vmatmul.mubr.f32.gmra.mrb[0].mxu0 %v2342
  %v2410 = vpop.f32.mrb[0].mxu0
  %v2411 = vadd.f32 0.0, %v2410
  %v2412 = vpop.f32.mrb[0].mxu0
  %2413 = vdwg.mxu0
  %v2414 = vadd.f32 %v2340, %v2411
  %v2416 = vsel %vm992, %v965, 0
  %2418 = vmatprep.subr.mxu0 0.0
  %2419 = vmatpush1.msra.mxu0 %v1314
  %2420 = vmatprep.subr.mxu0 0.0
  %2421 = vmatpush1.msra.mxu0 %v1315
  %2422 = vmatprep.subr.mxu0 0.0
  %2423 = vmatpush1.msra.mxu0 %v1316
  %2424 = vmatprep.subr.mxu0 0.0
  %2425 = vmatpush1.msra.mxu0 %v1317
  %2426 = vmatprep.subr.mxu0 0.0
  %2427 = vmatpush1.msra.mxu0 %v1318
  %2428 = vmatprep.subr.mxu0 0.0
  %2429 = vmatpush1.msra.mxu0 %v1319
  %2430 = vmatprep.subr.mxu0 0.0
  %2431 = vmatpush1.msra.mxu0 %v1320
  %2432 = vmatprep.subr.mxu0 0.0
  %2433 = vmatpush1.msra.mxu0 %v1321
  %2434 = vmatprep.subr.mxu0 0.0
  %2435 = vmatpush1.msra.mxu0 %v1322
  %2436 = vmatprep.subr.mxu0 0.0
  %2437 = vmatpush1.msra.mxu0 %v1323
  %2438 = vmatprep.subr.mxu0 0.0
  %2439 = vmatpush1.msra.mxu0 %v1324
  %2440 = vmatprep.subr.mxu0 0.0
  %2441 = vmatpush1.msra.mxu0 %v1325
  %2442 = vmatprep.subr.mxu0 0.0
  %2443 = vmatpush1.msra.mxu0 0.0
  %2444 = vmatprep.subr.mxu0 0.0
  %2445 = vmatpush1.msra.mxu0 0.0
  %2446 = vmatprep.subr.mxu0 0.0
  %2447 = vmatpush1.msra.mxu0 0.0
  %2448 = vmatprep.subr.mxu0 0.0
  %2449 = vmatpush1.msra.mxu0 0.0
  %2450 = vmatprep.subr.mxu0 0.0
  %2451 = vmatpush1.msra.mxu0 0.0
  %2452 = vmatprep.subr.mxu0 0.0
  %2453 = vmatpush1.msra.mxu0 0.0
  %2454 = vmatprep.subr.mxu0 0.0
  %2455 = vmatpush1.msra.mxu0 0.0
  %2456 = vmatprep.subr.mxu0 0.0
  %2457 = vmatpush1.msra.mxu0 0.0
  %2458 = vmatprep.subr.mxu0 0.0
  %2459 = vmatpush1.msra.mxu0 0.0
  %2460 = vmatprep.subr.mxu0 0.0
  %2461 = vmatpush1.msra.mxu0 0.0
  %2462 = vmatprep.subr.mxu0 0.0
  %2463 = vmatpush1.msra.mxu0 0.0
  %2464 = vmatprep.subr.mxu0 0.0
  %2465 = vmatpush1.msra.mxu0 0.0
  %2466 = vmatprep.subr.mxu0 0.0
  %2467 = vmatpush1.msra.mxu0 0.0
  %2468 = vmatprep.subr.mxu0 0.0
  %2469 = vmatpush1.msra.mxu0 0.0
  %2470 = vmatprep.subr.mxu0 0.0
  %2471 = vmatpush1.msra.mxu0 0.0
  %2472 = vmatprep.subr.mxu0 0.0
  %2473 = vmatpush1.msra.mxu0 0.0
  %2474 = vmatprep.subr.mxu0 0.0
  %2475 = vmatpush1.msra.mxu0 0.0
  %2476 = vmatprep.subr.mxu0 0.0
  %2477 = vmatpush1.msra.mxu0 0.0
  %2478 = vmatprep.subr.mxu0 0.0
  %2479 = vmatpush1.msra.mxu0 0.0
  %2480 = vmatprep.subr.mxu0 0.0
  %2481 = vmatpush1.msra.mxu0 0.0
  %2482 = vmatprep.mubr.f32.mxu0 0.0
  %2483 = vmatmul.mubr.f32.gmra.mrb[0].mxu0 %v2416
  %v2484 = vpop.f32.mrb[0].mxu0
  %v2485 = vadd.f32 0.0, %v2484
  %v2486 = vpop.f32.mrb[0].mxu0
  %2487 = vdwg.mxu0
  %v2488 = vadd.f32 %v2414, %v2485
  %v2489 = vadd.f32 %v2488, %v1404
  %v2490 = vmax.f32 %v2489, 0.0
  %v2491 = vld [vmem:[%s1] sm:$0xff]
  %v2492 = vld [vmem:[%s7] sm:$0xf]
  %v2493 = vld [vmem:[%s8] sm:$0x1]
  %v2495 = vlaneseq
  %v2496 = vshrl.u32 %v2495, 7
  %v2497 = vsub.s32 0, %v2496
  %v2498 = vrot.slane %v2493, %v2497
  %vm2500 = vcmask 31744
  %v2502 = vsel %vm2500, %v2491, 0
  %v2505 = vsel %vm69, %v2492, 0
  %2507 = vmatprep.subr.mxu0 0.0
  %2508 = vmatpush1.msra.mxu0 %v2505
  %2509 = vmatprep.subr.mxu0 0.0
  %2510 = vmatpush1.msra.mxu0 0.0
  %2511 = vmatprep.subr.mxu0 0.0
  %2512 = vmatpush1.msra.mxu0 0.0
  %2513 = vmatprep.subr.mxu0 0.0
  %2514 = vmatpush1.msra.mxu0 0.0
  %2515 = vmatprep.subr.mxu0 0.0
  %2516 = vmatpush1.msra.mxu0 0.0
  %2517 = vmatprep.subr.mxu0 0.0
  %2518 = vmatpush1.msra.mxu0 0.0
  %2519 = vmatprep.subr.mxu0 0.0
  %2520 = vmatpush1.msra.mxu0 0.0
  %2521 = vmatprep.subr.mxu0 0.0
  %2522 = vmatpush1.msra.mxu0 0.0
  %2523 = vmatprep.subr.mxu0 0.0
  %2524 = vmatpush1.msra.mxu0 0.0
  %2525 = vmatprep.subr.mxu0 0.0
  %2526 = vmatpush1.msra.mxu0 0.0
  %2527 = vmatprep.subr.mxu0 0.0
  %2528 = vmatpush1.msra.mxu0 0.0
  %2529 = vmatprep.subr.mxu0 0.0
  %2530 = vmatpush1.msra.mxu0 0.0
  %2531 = vmatprep.subr.mxu0 0.0
  %2532 = vmatpush1.msra.mxu0 0.0
  %2533 = vmatprep.subr.mxu0 0.0
  %2534 = vmatpush1.msra.mxu0 0.0
  %2535 = vmatprep.subr.mxu0 0.0
  %2536 = vmatpush1.msra.mxu0 0.0
  %2537 = vmatprep.subr.mxu0 0.0
  %2538 = vmatpush1.msra.mxu0 0.0
  %2539 = vmatprep.subr.mxu0 0.0
  %2540 = vmatpush1.msra.mxu0 0.0
  %2541 = vmatprep.subr.mxu0 0.0
  %2542 = vmatpush1.msra.mxu0 0.0
  %2543 = vmatprep.subr.mxu0 0.0
  %2544 = vmatpush1.msra.mxu0 0.0
  %2545 = vmatprep.subr.mxu0 0.0
  %2546 = vmatpush1.msra.mxu0 0.0
  %2547 = vmatprep.subr.mxu0 0.0
  %2548 = vmatpush1.msra.mxu0 0.0
  %2549 = vmatprep.subr.mxu0 0.0
  %2550 = vmatpush1.msra.mxu0 0.0
  %2551 = vmatprep.subr.mxu0 0.0
  %2552 = vmatpush1.msra.mxu0 0.0
  %2553 = vmatprep.subr.mxu0 0.0
  %2554 = vmatpush1.msra.mxu0 0.0
  %2555 = vmatprep.subr.mxu0 0.0
  %2556 = vmatpush1.msra.mxu0 0.0
  %2557 = vmatprep.subr.mxu0 0.0
  %2558 = vmatpush1.msra.mxu0 0.0
  %2559 = vmatprep.subr.mxu0 0.0
  %2560 = vmatpush1.msra.mxu0 0.0
  %2561 = vmatprep.subr.mxu0 0.0
  %2562 = vmatpush1.msra.mxu0 0.0
  %2563 = vmatprep.subr.mxu0 0.0
  %2564 = vmatpush1.msra.mxu0 0.0
  %2565 = vmatprep.subr.mxu0 0.0
  %2566 = vmatpush1.msra.mxu0 0.0
  %2567 = vmatprep.subr.mxu0 0.0
  %2568 = vmatpush1.msra.mxu0 0.0
  %2569 = vmatprep.subr.mxu0 0.0
  %2570 = vmatpush1.msra.mxu0 0.0
  %2571 = vmatprep.mubr.f32.mxu0 0.0
  %2572 = vmatmul.mubr.f32.gmra.mrb[0].mxu0 %v2502
  %v2573 = vpop.f32.mrb[0].mxu0
  %v2574 = vadd.f32 %v2498, %v2573
  %v2575 = vpop.f32.mrb[0].mxu0
  %2576 = vdwg.mxu0
  %v2577 = vld [vmem:[%s6] sm:$0xff]
  %v2578 = vld [vmem:[%s6 + $0x8] sm:$0xff]
  %v2579 = vld [vmem:[%s6 + $0x10] sm:$0xff]
  %v2580 = vld [vmem:[%s6 + $0x18] sm:$0xff]
  %v2581 = vld [vmem:[%s6 + $0x20] sm:$0xff]
  %v2582 = vld [vmem:[%s6 + $0x28] sm:$0xff]
  %v2583 = vld [vmem:[%s6 + $0x30] sm:$0xff]
  %v2584 = vld [vmem:[%s6 + $0x38] sm:$0xff]
  %v2586 = vsel %vm721, %v1407, 0
  %2588 = vmatprep.subr.mxu0 0.0
  %2589 = vmatpush1.msra.mxu0 %v2577
  %2590 = vmatprep.subr.mxu0 0.0
  %2591 = vmatpush1.msra.mxu0 %v2578
  %2592 = vmatprep.subr.mxu0 0.0
  %2593 = vmatpush1.msra.mxu0 %v2579
  %2594 = vmatprep.subr.mxu0 0.0
  %2595 = vmatpush1.msra.mxu0 %v2580
  %2596 = vmatprep.subr.mxu0 0.0
  %2597 = vmatpush1.msra.mxu0 %v2581
  %2598 = vmatprep.subr.mxu0 0.0
  %2599 = vmatpush1.msra.mxu0 %v2582
  %2600 = vmatprep.subr.mxu0 0.0
  %2601 = vmatpush1.msra.mxu0 %v2583
  %2602 = vmatprep.subr.mxu0 0.0
  %2603 = vmatpush1.msra.mxu0 %v2584
  %2604 = vmatprep.subr.mxu0 0.0
  %2605 = vmatpush1.msra.mxu0 0.0
  %2606 = vmatprep.subr.mxu0 0.0
  %2607 = vmatpush1.msra.mxu0 0.0
  %2608 = vmatprep.subr.mxu0 0.0
  %2609 = vmatpush1.msra.mxu0 0.0
  %2610 = vmatprep.subr.mxu0 0.0
  %2611 = vmatpush1.msra.mxu0 0.0
  %2612 = vmatprep.subr.mxu0 0.0
  %2613 = vmatpush1.msra.mxu0 0.0
  %2614 = vmatprep.subr.mxu0 0.0
  %2615 = vmatpush1.msra.mxu0 0.0
  %2616 = vmatprep.subr.mxu0 0.0
  %2617 = vmatpush1.msra.mxu0 0.0
  %2618 = vmatprep.subr.mxu0 0.0
  %2619 = vmatpush1.msra.mxu0 0.0
  %2620 = vmatprep.subr.mxu0 0.0
  %2621 = vmatpush1.msra.mxu0 0.0
  %2622 = vmatprep.subr.mxu0 0.0
  %2623 = vmatpush1.msra.mxu0 0.0
  %2624 = vmatprep.subr.mxu0 0.0
  %2625 = vmatpush1.msra.mxu0 0.0
  %2626 = vmatprep.subr.mxu0 0.0
  %2627 = vmatpush1.msra.mxu0 0.0
  %2628 = vmatprep.subr.mxu0 0.0
  %2629 = vmatpush1.msra.mxu0 0.0
  %2630 = vmatprep.subr.mxu0 0.0
  %2631 = vmatpush1.msra.mxu0 0.0
  %2632 = vmatprep.subr.mxu0 0.0
  %2633 = vmatpush1.msra.mxu0 0.0
  %2634 = vmatprep.subr.mxu0 0.0
  %2635 = vmatpush1.msra.mxu0 0.0
  %2636 = vmatprep.subr.mxu0 0.0
  %2637 = vmatpush1.msra.mxu0 0.0
  %2638 = vmatprep.subr.mxu0 0.0
  %2639 = vmatpush1.msra.mxu0 0.0
  %2640 = vmatprep.subr.mxu0 0.0
  %2641 = vmatpush1.msra.mxu0 0.0
  %2642 = vmatprep.subr.mxu0 0.0
  %2643 = vmatpush1.msra.mxu0 0.0
  %2644 = vmatprep.subr.mxu0 0.0
  %2645 = vmatpush1.msra.mxu0 0.0
  %2646 = vmatprep.subr.mxu0 0.0
  %2647 = vmatpush1.msra.mxu0 0.0
  %2648 = vmatprep.subr.mxu0 0.0
  %2649 = vmatpush1.msra.mxu0 0.0
  %2650 = vmatprep.subr.mxu0 0.0
  %2651 = vmatpush1.msra.mxu0 0.0
  %2652 = vmatprep.mubr.f32.mxu0 0.0
  %2653 = vmatmul.mubr.f32.gmra.mrb[0].mxu0 %v2586
  %v2654 = vpop.f32.mrb[0].mxu0
  %v2655 = vadd.f32 0.0, %v2654
  %v2656 = vpop.f32.mrb[0].mxu0
  %2657 = vdwg.mxu0
  %v2658 = vadd.f32 %v2574, %v2655
  %s2659 = scalar_lea.vmem %s6, 64
  %v2660 = vld [vmem:[%s2659] sm:$0xff]
  %v2661 = vld [vmem:[%s2659 + $0x8] sm:$0xff]
  %v2662 = vld [vmem:[%s2659 + $0x10] sm:$0xff]
  %v2663 = vld [vmem:[%s2659 + $0x18] sm:$0xff]
  %v2664 = vld [vmem:[%s2659 + $0x20] sm:$0xff]
  %v2665 = vld [vmem:[%s2659 + $0x28] sm:$0xff]
  %v2666 = vld [vmem:[%s2659 + $0x30] sm:$0xff]
  %v2667 = vld [vmem:[%s2659 + $0x38] sm:$0xff]
  %v2669 = vsel %vm721, %v1768, 0
  %2671 = vmatprep.subr.mxu0 0.0
  %2672 = vmatpush1.msra.mxu0 %v2660
  %2673 = vmatprep.subr.mxu0 0.0
  %2674 = vmatpush1.msra.mxu0 %v2661
  %2675 = vmatprep.subr.mxu0 0.0
  %2676 = vmatpush1.msra.mxu0 %v2662
  %2677 = vmatprep.subr.mxu0 0.0
  %2678 = vmatpush1.msra.mxu0 %v2663
  %2679 = vmatprep.subr.mxu0 0.0
  %2680 = vmatpush1.msra.mxu0 %v2664
  %2681 = vmatprep.subr.mxu0 0.0
  %2682 = vmatpush1.msra.mxu0 %v2665
  %2683 = vmatprep.subr.mxu0 0.0
  %2684 = vmatpush1.msra.mxu0 %v2666
  %2685 = vmatprep.subr.mxu0 0.0
  %2686 = vmatpush1.msra.mxu0 %v2667
  %2687 = vmatprep.subr.mxu0 0.0
  %2688 = vmatpush1.msra.mxu0 0.0
  %2689 = vmatprep.subr.mxu0 0.0
  %2690 = vmatpush1.msra.mxu0 0.0
  %2691 = vmatprep.subr.mxu0 0.0
  %2692 = vmatpush1.msra.mxu0 0.0
  %2693 = vmatprep.subr.mxu0 0.0
  %2694 = vmatpush1.msra.mxu0 0.0
  %2695 = vmatprep.subr.mxu0 0.0
  %2696 = vmatpush1.msra.mxu0 0.0
  %2697 = vmatprep.subr.mxu0 0.0
  %2698 = vmatpush1.msra.mxu0 0.0
  %2699 = vmatprep.subr.mxu0 0.0
  %2700 = vmatpush1.msra.mxu0 0.0
  %2701 = vmatprep.subr.mxu0 0.0
  %2702 = vmatpush1.msra.mxu0 0.0
  %2703 = vmatprep.subr.mxu0 0.0
  %2704 = vmatpush1.msra.mxu0 0.0
  %2705 = vmatprep.subr.mxu0 0.0
  %2706 = vmatpush1.msra.mxu0 0.0
  %2707 = vmatprep.subr.mxu0 0.0
  %2708 = vmatpush1.msra.mxu0 0.0
  %2709 = vmatprep.subr.mxu0 0.0
  %2710 = vmatpush1.msra.mxu0 0.0
  %2711 = vmatprep.subr.mxu0 0.0
  %2712 = vmatpush1.msra.mxu0 0.0
  %2713 = vmatprep.subr.mxu0 0.0
  %2714 = vmatpush1.msra.mxu0 0.0
  %2715 = vmatprep.subr.mxu0 0.0
  %2716 = vmatpush1.msra.mxu0 0.0
  %2717 = vmatprep.subr.mxu0 0.0
  %2718 = vmatpush1.msra.mxu0 0.0
  %2719 = vmatprep.subr.mxu0 0.0
  %2720 = vmatpush1.msra.mxu0 0.0
  %2721 = vmatprep.subr.mxu0 0.0
  %2722 = vmatpush1.msra.mxu0 0.0
  %2723 = vmatprep.subr.mxu0 0.0
  %2724 = vmatpush1.msra.mxu0 0.0
  %2725 = vmatprep.subr.mxu0 0.0
  %2726 = vmatpush1.msra.mxu0 0.0
  %2727 = vmatprep.subr.mxu0 0.0
  %2728 = vmatpush1.msra.mxu0 0.0
  %2729 = vmatprep.subr.mxu0 0.0
  %2730 = vmatpush1.msra.mxu0 0.0
  %2731 = vmatprep.subr.mxu0 0.0
  %2732 = vmatpush1.msra.mxu0 0.0
  %2733 = vmatprep.subr.mxu0 0.0
  %2734 = vmatpush1.msra.mxu0 0.0
  %2735 = vmatprep.mubr.f32.mxu0 0.0
  %2736 = vmatmul.mubr.f32.gmra.mrb[0].mxu0 %v2669
  %v2737 = vpop.f32.mrb[0].mxu0
  %v2738 = vadd.f32 0.0, %v2737
  %v2739 = vpop.f32.mrb[0].mxu0
  %2740 = vdwg.mxu0
  %v2741 = vadd.f32 %v2658, %v2738
  %s2742 = scalar_lea.vmem %s6, 128
  %v2743 = vld [vmem:[%s2742] sm:$0xff]
  %v2744 = vld [vmem:[%s2742 + $0x8] sm:$0xff]
  %v2745 = vld [vmem:[%s2742 + $0x10] sm:$0xff]
  %v2746 = vld [vmem:[%s2742 + $0x18] sm:$0xff]
  %v2747 = vld [vmem:[%s2742 + $0x20] sm:$0xff]
  %v2748 = vld [vmem:[%s2742 + $0x28] sm:$0xff]
  %v2749 = vld [vmem:[%s2742 + $0x30] sm:$0xff]
  %v2750 = vld [vmem:[%s2742 + $0x38] sm:$0xff]
  %v2752 = vsel %vm721, %v2129, 0
  %2754 = vmatprep.subr.mxu0 0.0
  %2755 = vmatpush1.msra.mxu0 %v2743
  %2756 = vmatprep.subr.mxu0 0.0
  %2757 = vmatpush1.msra.mxu0 %v2744
  %2758 = vmatprep.subr.mxu0 0.0
  %2759 = vmatpush1.msra.mxu0 %v2745
  %2760 = vmatprep.subr.mxu0 0.0
  %2761 = vmatpush1.msra.mxu0 %v2746
  %2762 = vmatprep.subr.mxu0 0.0
  %2763 = vmatpush1.msra.mxu0 %v2747
  %2764 = vmatprep.subr.mxu0 0.0
  %2765 = vmatpush1.msra.mxu0 %v2748
  %2766 = vmatprep.subr.mxu0 0.0
  %2767 = vmatpush1.msra.mxu0 %v2749
  %2768 = vmatprep.subr.mxu0 0.0
  %2769 = vmatpush1.msra.mxu0 %v2750
  %2770 = vmatprep.subr.mxu0 0.0
  %2771 = vmatpush1.msra.mxu0 0.0
  %2772 = vmatprep.subr.mxu0 0.0
  %2773 = vmatpush1.msra.mxu0 0.0
  %2774 = vmatprep.subr.mxu0 0.0
  %2775 = vmatpush1.msra.mxu0 0.0
  %2776 = vmatprep.subr.mxu0 0.0
  %2777 = vmatpush1.msra.mxu0 0.0
  %2778 = vmatprep.subr.mxu0 0.0
  %2779 = vmatpush1.msra.mxu0 0.0
  %2780 = vmatprep.subr.mxu0 0.0
  %2781 = vmatpush1.msra.mxu0 0.0
  %2782 = vmatprep.subr.mxu0 0.0
  %2783 = vmatpush1.msra.mxu0 0.0
  %2784 = vmatprep.subr.mxu0 0.0
  %2785 = vmatpush1.msra.mxu0 0.0
  %2786 = vmatprep.subr.mxu0 0.0
  %2787 = vmatpush1.msra.mxu0 0.0
  %2788 = vmatprep.subr.mxu0 0.0
  %2789 = vmatpush1.msra.mxu0 0.0
  %2790 = vmatprep.subr.mxu0 0.0
  %2791 = vmatpush1.msra.mxu0 0.0
  %2792 = vmatprep.subr.mxu0 0.0
  %2793 = vmatpush1.msra.mxu0 0.0
  %2794 = vmatprep.subr.mxu0 0.0
  %2795 = vmatpush1.msra.mxu0 0.0
  %2796 = vmatprep.subr.mxu0 0.0
  %2797 = vmatpush1.msra.mxu0 0.0
  %2798 = vmatprep.subr.mxu0 0.0
  %2799 = vmatpush1.msra.mxu0 0.0
  %2800 = vmatprep.subr.mxu0 0.0
  %2801 = vmatpush1.msra.mxu0 0.0
  %2802 = vmatprep.subr.mxu0 0.0
  %2803 = vmatpush1.msra.mxu0 0.0
  %2804 = vmatprep.subr.mxu0 0.0
  %2805 = vmatpush1.msra.mxu0 0.0
  %2806 = vmatprep.subr.mxu0 0.0
  %2807 = vmatpush1.msra.mxu0 0.0
  %2808 = vmatprep.subr.mxu0 0.0
  %2809 = vmatpush1.msra.mxu0 0.0
  %2810 = vmatprep.subr.mxu0 0.0
  %2811 = vmatpush1.msra.mxu0 0.0
  %2812 = vmatprep.subr.mxu0 0.0
  %2813 = vmatpush1.msra.mxu0 0.0
  %2814 = vmatprep.subr.mxu0 0.0
  %2815 = vmatpush1.msra.mxu0 0.0
  %2816 = vmatprep.subr.mxu0 0.0
  %2817 = vmatpush1.msra.mxu0 0.0
  %2818 = vmatprep.mubr.f32.mxu0 0.0
  %2819 = vmatmul.mubr.f32.gmra.mrb[0].mxu0 %v2752
  %v2820 = vpop.f32.mrb[0].mxu0
  %v2821 = vadd.f32 0.0, %v2820
  %v2822 = vpop.f32.mrb[0].mxu0
  %2823 = vdwg.mxu0
  %v2824 = vadd.f32 %v2741, %v2821
  %s2825 = scalar_lea.vmem %s6, 192
  %v2826 = vld [vmem:[%s2825] sm:$0xff]
  %v2827 = vld [vmem:[%s2825 + $0x8] sm:$0xff]
  %v2828 = vld [vmem:[%s2825 + $0x10] sm:$0xff]
  %v2829 = vld [vmem:[%s2825 + $0x18] sm:$0xff]
  %v2830 = vld [vmem:[%s2825 + $0x20] sm:$0xff]
  %v2831 = vld [vmem:[%s2825 + $0x28] sm:$0xff]
  %v2832 = vld [vmem:[%s2825 + $0x30] sm:$0xff]
  %v2833 = vld [vmem:[%s2825 + $0x38] sm:$0xff]
  %v2835 = vsel %vm721, %v2490, 0
  %2837 = vmatprep.subr.mxu0 0.0
  %2838 = vmatpush1.msra.mxu0 %v2826
  %2839 = vmatprep.subr.mxu0 0.0
  %2840 = vmatpush1.msra.mxu0 %v2827
  %2841 = vmatprep.subr.mxu0 0.0
  %2842 = vmatpush1.msra.mxu0 %v2828
  %2843 = vmatprep.subr.mxu0 0.0
  %2844 = vmatpush1.msra.mxu0 %v2829
  %2845 = vmatprep.subr.mxu0 0.0
  %2846 = vmatpush1.msra.mxu0 %v2830
  %2847 = vmatprep.subr.mxu0 0.0
  %2848 = vmatpush1.msra.mxu0 %v2831
  %2849 = vmatprep.subr.mxu0 0.0
  %2850 = vmatpush1.msra.mxu0 %v2832
  %2851 = vmatprep.subr.mxu0 0.0
  %2852 = vmatpush1.msra.mxu0 %v2833
  %2853 = vmatprep.subr.mxu0 0.0
  %2854 = vmatpush1.msra.mxu0 0.0
  %2855 = vmatprep.subr.mxu0 0.0
  %2856 = vmatpush1.msra.mxu0 0.0
  %2857 = vmatprep.subr.mxu0 0.0
  %2858 = vmatpush1.msra.mxu0 0.0
  %2859 = vmatprep.subr.mxu0 0.0
  %2860 = vmatpush1.msra.mxu0 0.0
  %2861 = vmatprep.subr.mxu0 0.0
  %2862 = vmatpush1.msra.mxu0 0.0
  %2863 = vmatprep.subr.mxu0 0.0
  %2864 = vmatpush1.msra.mxu0 0.0
  %2865 = vmatprep.subr.mxu0 0.0
  %2866 = vmatpush1.msra.mxu0 0.0
  %2867 = vmatprep.subr.mxu0 0.0
  %2868 = vmatpush1.msra.mxu0 0.0
  %2869 = vmatprep.subr.mxu0 0.0
  %2870 = vmatpush1.msra.mxu0 0.0
  %2871 = vmatprep.subr.mxu0 0.0
  %2872 = vmatpush1.msra.mxu0 0.0
  %2873 = vmatprep.subr.mxu0 0.0
  %2874 = vmatpush1.msra.mxu0 0.0
  %2875 = vmatprep.subr.mxu0 0.0
  %2876 = vmatpush1.msra.mxu0 0.0
  %2877 = vmatprep.subr.mxu0 0.0
  %2878 = vmatpush1.msra.mxu0 0.0
  %2879 = vmatprep.subr.mxu0 0.0
  %2880 = vmatpush1.msra.mxu0 0.0
  %2881 = vmatprep.subr.mxu0 0.0
  %2882 = vmatpush1.msra.mxu0 0.0
  %2883 = vmatprep.subr.mxu0 0.0
  %2884 = vmatpush1.msra.mxu0 0.0
  %2885 = vmatprep.subr.mxu0 0.0
  %2886 = vmatpush1.msra.mxu0 0.0
  %2887 = vmatprep.subr.mxu0 0.0
  %2888 = vmatpush1.msra.mxu0 0.0
  %2889 = vmatprep.subr.mxu0 0.0
  %2890 = vmatpush1.msra.mxu0 0.0
  %2891 = vmatprep.subr.mxu0 0.0
  %2892 = vmatpush1.msra.mxu0 0.0
  %2893 = vmatprep.subr.mxu0 0.0
  %2894 = vmatpush1.msra.mxu0 0.0
  %2895 = vmatprep.subr.mxu0 0.0
  %2896 = vmatpush1.msra.mxu0 0.0
  %2897 = vmatprep.subr.mxu0 0.0
  %2898 = vmatpush1.msra.mxu0 0.0
  %2899 = vmatprep.subr.mxu0 0.0
  %2900 = vmatpush1.msra.mxu0 0.0
  %2901 = vmatprep.mubr.f32.mxu0 0.0
  %2902 = vmatmul.mubr.f32.gmra.mrb[0].mxu0 %v2835
  %v2903 = vpop.f32.mrb[0].mxu0
  %v2904 = vadd.f32 0.0, %v2903
  %v2905 = vpop.f32.mrb[0].mxu0
  %2906 = vdwg.mxu0
  %v2907 = vadd.f32 %v2824, %v2904
  %v2908 = vmax.f32 %v2907, 0.0
  %v2909 = vld [vmem:[%s9] sm:$0xff]
  %v2910 = vld [vmem:[%s9 + $0x8] sm:$0xff]
  %v2911 = vld [vmem:[%s9 + $0x10] sm:$0xff]
  %v2912 = vld [vmem:[%s9 + $0x18] sm:$0xff]
  %v2913 = vld [vmem:[%s9 + $0x20] sm:$0xff]
  %v2914 = vld [vmem:[%s9 + $0x28] sm:$0xff]
  %v2915 = vld [vmem:[%s9 + $0x30] sm:$0xff]
  %v2916 = vld [vmem:[%s9 + $0x38] sm:$0xff]
  %v2917 = vld [vmem:[%s10] sm:$0x1]
  %v2919 = vlaneseq
  %v2920 = vshrl.u32 %v2919, 7
  %v2921 = vsub.s32 0, %v2920
  %v2922 = vrot.slane %v2917, %v2921
  %v2925 = vsel %vm721, %v2908, 0
  %2927 = vmatprep.subr.mxu0 0.0
  %2928 = vmatpush1.msra.mxu0 %v2909
  %2929 = vmatprep.subr.mxu0 0.0
  %2930 = vmatpush1.msra.mxu0 %v2910
  %2931 = vmatprep.subr.mxu0 0.0
  %2932 = vmatpush1.msra.mxu0 %v2911
  %2933 = vmatprep.subr.mxu0 0.0
  %2934 = vmatpush1.msra.mxu0 %v2912
  %2935 = vmatprep.subr.mxu0 0.0
  %2936 = vmatpush1.msra.mxu0 %v2913
  %2937 = vmatprep.subr.mxu0 0.0
  %2938 = vmatpush1.msra.mxu0 %v2914
  %2939 = vmatprep.subr.mxu0 0.0
  %2940 = vmatpush1.msra.mxu0 %v2915
  %2941 = vmatprep.subr.mxu0 0.0
  %2942 = vmatpush1.msra.mxu0 %v2916
  %2943 = vmatprep.subr.mxu0 0.0
  %2944 = vmatpush1.msra.mxu0 0.0
  %2945 = vmatprep.subr.mxu0 0.0
  %2946 = vmatpush1.msra.mxu0 0.0
  %2947 = vmatprep.subr.mxu0 0.0
  %2948 = vmatpush1.msra.mxu0 0.0
  %2949 = vmatprep.subr.mxu0 0.0
  %2950 = vmatpush1.msra.mxu0 0.0
  %2951 = vmatprep.subr.mxu0 0.0
  %2952 = vmatpush1.msra.mxu0 0.0
  %2953 = vmatprep.subr.mxu0 0.0
  %2954 = vmatpush1.msra.mxu0 0.0
  %2955 = vmatprep.subr.mxu0 0.0
  %2956 = vmatpush1.msra.mxu0 0.0
  %2957 = vmatprep.subr.mxu0 0.0
  %2958 = vmatpush1.msra.mxu0 0.0
  %2959 = vmatprep.subr.mxu0 0.0
  %2960 = vmatpush1.msra.mxu0 0.0
  %2961 = vmatprep.subr.mxu0 0.0
  %2962 = vmatpush1.msra.mxu0 0.0
  %2963 = vmatprep.subr.mxu0 0.0
  %2964 = vmatpush1.msra.mxu0 0.0
  %2965 = vmatprep.subr.mxu0 0.0
  %2966 = vmatpush1.msra.mxu0 0.0
  %2967 = vmatprep.subr.mxu0 0.0
  %2968 = vmatpush1.msra.mxu0 0.0
  %2969 = vmatprep.subr.mxu0 0.0
  %2970 = vmatpush1.msra.mxu0 0.0
  %2971 = vmatprep.subr.mxu0 0.0
  %2972 = vmatpush1.msra.mxu0 0.0
  %2973 = vmatprep.subr.mxu0 0.0
  %2974 = vmatpush1.msra.mxu0 0.0
  %2975 = vmatprep.subr.mxu0 0.0
  %2976 = vmatpush1.msra.mxu0 0.0
  %2977 = vmatprep.subr.mxu0 0.0
  %2978 = vmatpush1.msra.mxu0 0.0
  %2979 = vmatprep.subr.mxu0 0.0
  %2980 = vmatpush1.msra.mxu0 0.0
  %2981 = vmatprep.subr.mxu0 0.0
  %2982 = vmatpush1.msra.mxu0 0.0
  %2983 = vmatprep.subr.mxu0 0.0
  %2984 = vmatpush1.msra.mxu0 0.0
  %2985 = vmatprep.subr.mxu0 0.0
  %2986 = vmatpush1.msra.mxu0 0.0
  %2987 = vmatprep.subr.mxu0 0.0
  %2988 = vmatpush1.msra.mxu0 0.0
  %2989 = vmatprep.subr.mxu0 0.0
  %2990 = vmatpush1.msra.mxu0 0.0
  %2991 = vmatprep.mubr.f32.mxu0 0.0
  %2992 = vmatmul.mubr.f32.gmra.mrb[0].mxu0 %v2925
  %v2993 = vpop.f32.mrb[0].mxu0
  %v2994 = vadd.f32 %v2922, %v2993
  %v2995 = vpop.f32.mrb[0].mxu0
  %2996 = vdwg.mxu0
  %2997 = vst.msk [vmem:[%s11] sm:$0xff] %vm229, %v2994
  // Predicated region
  $region46: #{conv_cvae_encoder_forward.1} parent=0 // pred_check
    _
  $region47: #{conv_cvae_encoder_forward.1} parent=0 // pred_check_branch
    %2999 = sbr.rel (0) target = $region49
  $region48: #{conv_cvae_encoder_forward.1} parent=0 // pred_region
    _
  $region49: #{conv_cvae_encoder_forward.1} parent=0 // pred_fallthru
    _
  // Predicated region
  $region50: #{conv_cvae_encoder_forward.1} parent=0 // pred_check
    _
  $region51: #{conv_cvae_encoder_forward.1} parent=0 // pred_check_branch
    %3001 = sbr.rel (0) target = $region53
  $region52: #{conv_cvae_encoder_forward.1} parent=0 // pred_region
    _
  $region53: #{conv_cvae_encoder_forward.1} parent=0 // pred_fallthru
    _

</llo_original>
